<compile_context>
chip_gen: v6e
topology: v6e:2x2x1
jax: 0.10.0
libtpu: 0.0.40
codegen_flags: <defaults>
</compile_context>

<pallas_src>
import functools
import numpy as np
import jax
import jax.numpy as jnp
from jax.experimental import pallas as pl
from jax.experimental.pallas import tpu as pltpu

# ---- config (synthetic, consistent with the module) ----
B = 2
IN_CHANNELS = 4          # len(cfg.grid_attributes)
H, W = 8, 8
K = 4                    # number of villages
HIDDEN = 32              # cfg.encoder_hidden_dim
GLOBAL_DIM = 16          # cfg.global_feature_dim
VILLAGE_DIM = 8          # cfg.village_feature_dim
HW = H * W
N_NODES = HW + K
NUM_GNN_LAYERS = 3

# ---- padded / packed layout constants ----
N_PAD = 128              # node dim padded 68 -> 128
IN_LANES = 8             # grid channels padded 4 -> 8
IN_ROWS = 72             # 64 grid rows + 4 village rows + 1 year row, padded to 72
OUT_ROWS = 16            # rows 0:8 village head, rows 8:16 global head

# rows inside the packed misc-weight buffer (lane width = HIDDEN = 32)
ROW_WG = 0               # [8, 32]  grid projection (channels padded 4->8)
ROW_BG = 8
ROW_WV = 9
ROW_BV = 10
ROW_WY = 11
ROW_BY = 12
ROW_LBIAS = 16           # per layer l: row 16+2l = bs[l], row 17+2l = bn[l]
ROW_WGL = 24             # [64, 32] global mlp weight (out cols padded 16->32)
ROW_BGL = 88
ROW_WVM = 96             # [32, 32] village mlp weight (out cols padded 8->32)
ROW_BVM = 128
MISC_ROWS = 136


# ---------------- host-side graph construction (matches _build_base_edge_index) ----------------
def build_adjacency(Hh, Ww, coords):
    """coords: int array [K, 2] of (row, col). Returns dense A with A[dst, src] += 1."""
    n = Hh * Ww + coords.shape[0]
    A = np.zeros((n, n), dtype=np.float32)
    for i in range(Hh):
        for j in range(Ww):
            src = i * Ww + j
            for di in (-1, 0, 1):
                for dj in (-1, 0, 1):
                    if di == 0 and dj == 0:
                        continue
                    ni, nj = i + di, j + dj
                    if 0 <= ni < Hh and 0 <= nj < Ww:
                        dst = ni * Ww + nj
                        A[dst, src] += 1.0
    for k in range(coords.shape[0]):
        r, c = int(coords[k, 0]), int(coords[k, 1])
        g = r * Ww + c
        v = Hh * Ww + k
        A[v, g] += 1.0   # grid -> village
        A[g, v] += 1.0   # village -> grid
    return A


# ---------------- parameter init (deterministic, Linear-style uniform) ----------------
def _linear(key, fan_in, fan_out):
    s = 1.0 / np.sqrt(fan_in)
    kw, kb = jax.random.split(key)
    Wt = jax.random.uniform(kw, (fan_in, fan_out), jnp.float32, -s, s)
    b = jax.random.uniform(kb, (1, fan_out), jnp.float32, -s, s)
    return Wt, b


def init_params(key):
    ks = jax.random.split(key, 8 + 2 * NUM_GNN_LAYERS)
    p = {}
    p["Wg"], p["bg"] = _linear(ks[0], IN_CHANNELS, HIDDEN)       # grid_proj
    p["Wv"], p["bv"] = _linear(ks[1], 1, HIDDEN)                 # village_proj
    ws, bs, wn, bn = [], [], [], []
    for l in range(NUM_GNN_LAYERS):
        w1, b1 = _linear(ks[2 + 2 * l], HIDDEN, HIDDEN)          # lin_self
        w2, b2 = _linear(ks[3 + 2 * l], HIDDEN, HIDDEN)          # lin_neigh
        ws.append(w1); bs.append(b1[0]); wn.append(w2); bn.append(b2[0])
    p["Ws"] = jnp.stack(ws); p["bs"] = jnp.stack(bs)             # [3,H,H], [3,H]
    p["Wn"] = jnp.stack(wn); p["bn"] = jnp.stack(bn)
    p["Wy"], p["by"] = _linear(ks[2 + 2 * NUM_GNN_LAYERS], 1, HIDDEN)                 # year_mlp
    p["Wgl"], p["bgl"] = _linear(ks[3 + 2 * NUM_GNN_LAYERS], 2 * HIDDEN, GLOBAL_DIM)  # global_mlp
    p["Wvm"], p["bvm"] = _linear(ks[4 + 2 * NUM_GNN_LAYERS], HIDDEN, VILLAGE_DIM)     # village_mlp
    return p


# ---------------- host-side packing ----------------
def pack_params(p, A):
    A_np = np.asarray(A, np.float32)
    n = A_np.shape[0]
    A_pad = np.zeros((N_PAD, N_PAD), np.float32)
    A_pad[:n, :n] = A_np

    # fused per-layer weights: rows 0:32 = lin_self, rows 32:64 = lin_neigh
    wstack = jnp.concatenate([p["Ws"], p["Wn"]], axis=1)         # [L, 64, 32]

    m = np.zeros((MISC_ROWS, HIDDEN), np.float32)
    m[ROW_WG:ROW_WG + IN_CHANNELS, :] = np.asarray(p["Wg"])
    m[ROW_BG, :] = np.asarray(p["bg"][0])
    m[ROW_WV, :] = np.asarray(p["Wv"][0])
    m[ROW_BV, :] = np.asarray(p["bv"][0])
    m[ROW_WY, :] = np.asarray(p["Wy"][0])
    m[ROW_BY, :] = np.asarray(p["by"][0])
    for l in range(NUM_GNN_LAYERS):
        m[ROW_LBIAS + 2 * l, :] = np.asarray(p["bs"][l])
        m[ROW_LBIAS + 2 * l + 1, :] = np.asarray(p["bn"][l])
    m[ROW_WGL:ROW_WGL + 2 * HIDDEN, :GLOBAL_DIM] = np.asarray(p["Wgl"])
    m[ROW_BGL, :GLOBAL_DIM] = np.asarray(p["bgl"][0])
    m[ROW_WVM:ROW_WVM + HIDDEN, :VILLAGE_DIM] = np.asarray(p["Wvm"])
    m[ROW_BVM, :VILLAGE_DIM] = np.asarray(p["bvm"][0])
    return jnp.asarray(A_pad), wstack, jnp.asarray(m)


def pack_inputs(grid_input, village_data, year):
    """One lane-padded input slab per batch: [B, 72, 8]."""
    Bq, C, Hh, Ww = grid_input.shape
    hw = Hh * Ww
    Kq = village_data.shape[1]
    gf = grid_input.reshape(Bq, C, hw).transpose(0, 2, 1).astype(jnp.float32)   # [B, HW, C]
    xin = jnp.zeros((Bq, IN_ROWS, IN_LANES), jnp.float32)
    xin = xin.at[:, :hw, :C].set(gf)
    xin = xin.at[:, hw:hw + Kq, 0].set(village_data[:, :, 2].astype(jnp.float32))
    xin = xin.at[:, hw + Kq, 0].set(year.astype(jnp.float32))
    return xin


def _pick_num_steps(batch):
    # v7x has 2 TensorCores/chip -> keep a 2-wide "parallel" grid there;
    # v5e/v6e are single-TC -> fuse the whole batch into one grid step.
    try:
        kind = jax.devices()[0].device_kind.lower()
    except Exception:
        kind = ""
    cores = 2 if ("v7" in kind or "7x" in kind) else 1
    return cores if (cores > 1 and batch % cores == 0) else 1


# ---------------- Pallas kernel ----------------
def encoder_kernel(xin_ref, A_ref, wstack_ref, wmisc_ref, out_ref, x_ref, *, bpb):
    f32 = jnp.float32
    A = A_ref[...]                                           # [N_PAD, N_PAD]
    deg = jnp.sum(A, axis=1, keepdims=True)                  # in-degree per dst node [N_PAD,1]

    Wg = wmisc_ref[ROW_WG:ROW_WG + IN_LANES, :]              # [8, 32]
    bg = wmisc_ref[ROW_BG:ROW_BG + 1, :]
    Wv = wmisc_ref[ROW_WV:ROW_WV + 1, :]
    bv = wmisc_ref[ROW_BV:ROW_BV + 1, :]
    Wy = wmisc_ref[ROW_WY:ROW_WY + 1, :]
    by = wmisc_ref[ROW_BY:ROW_BY + 1, :]
    Wgl = wmisc_ref[ROW_WGL:ROW_WGL + 2 * HIDDEN, :]         # [64, 32]
    bgl = wmisc_ref[ROW_BGL:ROW_BGL + 1, :]
    Wvm = wmisc_ref[ROW_WVM:ROW_WVM + HIDDEN, :]             # [32, 32]
    bvm = wmisc_ref[ROW_BVM:ROW_BVM + 1, :]

    # ---- node projections -> aligned VMEM scratch (no 68-row concat) ----
    for bi in range(bpb):
        xin = xin_ref[bi]                                    # [72, 8]
        hg = jnp.dot(xin[:HW, :], Wg, preferred_element_type=f32) + bg          # [64, 32]
        hv = xin[HW:HW + K, 0:1] * Wv + bv                                       # [4, 32]
        x_ref[bi, :HW, :] = hg
        x_ref[bi, HW:, :] = jnp.concatenate(
            [hv, jnp.zeros((N_PAD - HW - K, HIDDEN), f32)], axis=0)

    # ---- GraphConv layers, fused: relu([x | A@x] @ [Ws;Wn] + bs + deg*bn) ----
    for l in range(NUM_GNN_LAYERS):
        Wcat = wstack_ref[l]                                 # [64, 32]
        bs = wmisc_ref[ROW_LBIAS + 2 * l:ROW_LBIAS + 2 * l + 1, :]
        bn = wmisc_ref[ROW_LBIAS + 2 * l + 1:ROW_LBIAS + 2 * l + 2, :]
        bias = bs + deg * bn                                 # [N_PAD, 32]
        for bi in range(bpb):
            xc = x_ref[bi]                                   # [128, 32]
            ax = jnp.dot(A, xc, preferred_element_type=f32)  # neighbor aggregation
            cat = jnp.concatenate([xc, ax], axis=-1)         # [128, 64]
            x_ref[bi] = jnp.maximum(
                jnp.dot(cat, Wcat, preferred_element_type=f32) + bias, 0.0)

    # ---- output heads (combined into one lane-padded slab) ----
    for bi in range(bpb):
        xin = xin_ref[bi]
        year = xin[HW + K:HW + K + 1, 0:1]                   # [1, 1]
        grid_mean = jnp.mean(x_ref[bi, :HW, :], axis=0, keepdims=True)           # [1, 32]
        year_feat = jnp.maximum(year * Wy + by, 0.0)                             # [1, 32]
        gin = jnp.concatenate([grid_mean, year_feat], axis=1)                    # [1, 64]
        glob = jnp.maximum(
            jnp.dot(gin, Wgl, preferred_element_type=f32) + bgl, 0.0)            # [1, 32]
        vrows = x_ref[bi, HW:HW + 8, :]                                          # [8, 32]
        vil = jnp.maximum(
            jnp.dot(vrows, Wvm, preferred_element_type=f32) + bvm, 0.0)          # [8, 32]
        out_ref[bi, 0:8, :] = vil
        out_ref[bi, 8:OUT_ROWS, :] = jnp.broadcast_to(glob, (8, HIDDEN))


# ---------------- wrapper ----------------
def feature_encoder_gnn(grid_input, village_data, year, A, p):
    Bq = grid_input.shape[0]
    xin = pack_inputs(grid_input, village_data, year)
    A_pad, wstack, wmisc = pack_params(p, A)

    num_steps = _pick_num_steps(Bq)
    bpb = Bq // num_steps

    out = pl.pallas_call(
        functools.partial(encoder_kernel, bpb=bpb),
        grid=(num_steps,),
        in_specs=[
            pl.BlockSpec((bpb, IN_ROWS, IN_LANES), lambda i: (i, 0, 0)),
            pl.BlockSpec((N_PAD, N_PAD), lambda i: (0, 0)),
            pl.BlockSpec((NUM_GNN_LAYERS, 2 * HIDDEN, HIDDEN), lambda i: (0, 0, 0)),
            pl.BlockSpec((MISC_ROWS, HIDDEN), lambda i: (0, 0)),
        ],
        out_specs=pl.BlockSpec((bpb, OUT_ROWS, HIDDEN), lambda i: (i, 0, 0)),
        out_shape=jax.ShapeDtypeStruct((Bq, OUT_ROWS, HIDDEN), jnp.float32),
        scratch_shapes=[pltpu.VMEM((bpb, N_PAD, HIDDEN), jnp.float32)],
        compiler_params=pltpu.CompilerParams(dimension_semantics=("parallel",)),
    )(xin, A_pad, wstack, wmisc)

    vil = out[:, :K, :VILLAGE_DIM]
    glob = out[:, 8, :GLOBAL_DIM]
    return vil, glob


# ---------------- pure-JAX reference (mirrors the PyTorch forward) ----------------
def reference(grid_input, village_data, year, A, p):
    Bq, C, Hh, Ww = grid_input.shape
    hw = Hh * Ww
    gf = grid_input.reshape(Bq, C, hw).transpose(0, 2, 1)
    hg = gf @ p["Wg"] + p["bg"]
    hv = village_data[:, :, 2:3] * p["Wv"] + p["bv"]
    x = jnp.concatenate([hg, hv], axis=1)
    for l in range(NUM_GNN_LAYERS):
        msg = x @ p["Wn"][l] + p["bn"][l]
        agg = jnp.einsum("nm,bmh->bnh", A, msg)
        slf = x @ p["Ws"][l] + p["bs"][l]
        x = jnp.maximum(slf + agg, 0.0)
    gm = x[:, :hw].mean(axis=1)
    yf = jnp.maximum(year.reshape(Bq, 1) * p["Wy"] + p["by"], 0.0)
    gin = jnp.concatenate([gm, yf], axis=-1)
    glob = jnp.maximum(gin @ p["Wgl"] + p["bgl"], 0.0)
    vil = jnp.maximum(x[:, hw:] @ p["Wvm"] + p["bvm"], 0.0)
    return vil, glob


if __name__ == "__main__":
    key = jax.random.PRNGKey(0)
    k_grid, k_area, k_param = jax.random.split(key, 3)

    grid_input = jax.random.normal(k_grid, (B, IN_CHANNELS, H, W), jnp.float32)

    rows = np.array([1, 3, 5, 7], dtype=np.int64)[:K]
    cols = np.array([2, 4, 6, 0], dtype=np.int64)[:K]
    areas = jax.random.uniform(k_area, (B, K), jnp.float32, 0.1, 2.0)
    coords_np = np.stack([rows, cols], axis=1)
    village_data = jnp.concatenate(
        [jnp.broadcast_to(jnp.asarray(coords_np, jnp.float32), (B, K, 2)),
         areas[..., None]], axis=-1)                                   # [B, K, 3]

    year = jnp.array([3.0, 7.0], jnp.float32)[:B]                      # [B]

    # edge_index -> dense adjacency (host side; the scatter-add is a matmul vs A)
    A = jnp.asarray(build_adjacency(H, W, coords_np))                  # [N, N]

    params = init_params(k_param)

    vil_out, glob_out = feature_encoder_gnn(grid_input, village_data, year, A, params)
    jax.block_until_ready((vil_out, glob_out))

    vil_ref, glob_ref = reference(grid_input, village_data, year, A, params)
    np.testing.assert_allclose(np.asarray(vil_out), np.asarray(vil_ref), rtol=1e-4, atol=1e-4)
    np.testing.assert_allclose(np.asarray(glob_out), np.asarray(glob_ref), rtol=1e-4, atol=1e-4)

    print("KERNEL_OK")
</pallas_src>

<mosaic_0001>
module attributes {stable_mosaic.version = 11 : i64} {
  func.func @encoder_kernel(%arg0: i32, %arg1: memref<2x72x8xf32, #tpu.memory_space<vmem>>, %arg2: memref<128x128xf32, #tpu.memory_space<vmem>>, %arg3: memref<3x64x32xf32, #tpu.memory_space<vmem>>, %arg4: memref<136x32xf32, #tpu.memory_space<vmem>>, %arg5: memref<2x16x32xf32, #tpu.memory_space<vmem>>, %arg6: memref<2x128x32xf32, #tpu.memory_space<vmem>>) attributes {dimension_semantics = [#tpu.dimension_semantics<parallel>], iteration_bounds = array<i64: 1>, scalar_prefetch = 0 : i64, scratch_operands = 1 : i64, tpu.core_type = #tpu.core_type<tc>, window_params = [{transform_indices = @transform_0, window_bounds = array<i64: 2, 72, 8>}, {pipeline_mode = #tpu.pipeline_mode<synchronous>, transform_indices = @transform_1, window_bounds = array<i64: 128, 128>}, {pipeline_mode = #tpu.pipeline_mode<synchronous>, transform_indices = @transform_2, window_bounds = array<i64: 3, 64, 32>}, {pipeline_mode = #tpu.pipeline_mode<synchronous>, transform_indices = @transform_3, window_bounds = array<i64: 136, 32>}, {transform_indices = @transform_4, window_bounds = array<i64: 2, 16, 32>}]} {
    %c0 = arith.constant 0 : index
    %c0_0 = arith.constant 0 : index
    %0 = vector.load %arg2[%c0, %c0_0] : memref<128x128xf32, #tpu.memory_space<vmem>>, vector<128x128xf32>
    %cst = arith.constant dense<0.000000e+00> : vector<128xf32>
    %1 = vector.multi_reduction <add>, %0, %cst [1] : vector<128x128xf32> to vector<128xf32>
    %2 = vector.shape_cast %1 : vector<128xf32> to vector<128x1xf32>
    %c0_1 = arith.constant 0 : index
    %c0_2 = arith.constant 0 : index
    %3 = vector.load %arg4[%c0_1, %c0_2] : memref<136x32xf32, #tpu.memory_space<vmem>>, vector<8x32xf32>
    %c8 = arith.constant 8 : index
    %c0_3 = arith.constant 0 : index
    %4 = vector.load %arg4[%c8, %c0_3] : memref<136x32xf32, #tpu.memory_space<vmem>>, vector<1x32xf32>
    %c9 = arith.constant 9 : index
    %c0_4 = arith.constant 0 : index
    %5 = vector.load %arg4[%c9, %c0_4] : memref<136x32xf32, #tpu.memory_space<vmem>>, vector<1x32xf32>
    %c10 = arith.constant 10 : index
    %c0_5 = arith.constant 0 : index
    %6 = vector.load %arg4[%c10, %c0_5] : memref<136x32xf32, #tpu.memory_space<vmem>>, vector<1x32xf32>
    %c11 = arith.constant 11 : index
    %c0_6 = arith.constant 0 : index
    %7 = vector.load %arg4[%c11, %c0_6] : memref<136x32xf32, #tpu.memory_space<vmem>>, vector<1x32xf32>
    %c12 = arith.constant 12 : index
    %c0_7 = arith.constant 0 : index
    %8 = vector.load %arg4[%c12, %c0_7] : memref<136x32xf32, #tpu.memory_space<vmem>>, vector<1x32xf32>
    %c24 = arith.constant 24 : index
    %c0_8 = arith.constant 0 : index
    %9 = vector.load %arg4[%c24, %c0_8] : memref<136x32xf32, #tpu.memory_space<vmem>>, vector<64x32xf32>
    %c88 = arith.constant 88 : index
    %c0_9 = arith.constant 0 : index
    %10 = vector.load %arg4[%c88, %c0_9] : memref<136x32xf32, #tpu.memory_space<vmem>>, vector<1x32xf32>
    %c96 = arith.constant 96 : index
    %c0_10 = arith.constant 0 : index
    %11 = vector.load %arg4[%c96, %c0_10] : memref<136x32xf32, #tpu.memory_space<vmem>>, vector<32x32xf32>
    %c128 = arith.constant 128 : index
    %c0_11 = arith.constant 0 : index
    %12 = vector.load %arg4[%c128, %c0_11] : memref<136x32xf32, #tpu.memory_space<vmem>>, vector<1x32xf32>
    %c0_12 = arith.constant 0 : index
    %c0_13 = arith.constant 0 : index
    %c0_14 = arith.constant 0 : index
    %13 = vector.load %arg1[%c0_12, %c0_13, %c0_14] : memref<2x72x8xf32, #tpu.memory_space<vmem>>, vector<1x72x8xf32>
    %14 = vector.shape_cast %13 : vector<1x72x8xf32> to vector<72x8xf32>
    %15 = vector.extract_strided_slice %14 {offsets = [0, 0], sizes = [64, 8], strides = [1, 1]} : vector<72x8xf32> to vector<64x8xf32>
    %cst_15 = arith.constant dense<0.000000e+00> : vector<64x32xf32>
    %16 = tpu.matmul %15, %3, %cst_15 {dimension_numbers = #tpu.dot_dimension_numbers<[1], [0], [0], [1], [0, 0, 1, 1], [], []>} : vector<64x8xf32>, vector<8x32xf32>, vector<64x32xf32> -> vector<64x32xf32>
    %17 = vector.broadcast %4 : vector<1x32xf32> to vector<64x32xf32>
    %18 = arith.addf %16, %17 : vector<64x32xf32>
    %19 = vector.extract_strided_slice %14 {offsets = [64, 0], sizes = [4, 1], strides = [1, 1]} : vector<72x8xf32> to vector<4x1xf32>
    %20 = vector.broadcast %19 : vector<4x1xf32> to vector<4x32xf32>
    %21 = vector.broadcast %5 : vector<1x32xf32> to vector<4x32xf32>
    %22 = arith.mulf %20, %21 : vector<4x32xf32>
    %23 = vector.broadcast %6 : vector<1x32xf32> to vector<4x32xf32>
    %24 = arith.addf %22, %23 : vector<4x32xf32>
    %c0_16 = arith.constant 0 : index
    %c0_17 = arith.constant 0 : index
    %c0_18 = arith.constant 0 : index
    %25 = vector.load %arg6[%c0_16, %c0_17, %c0_18] : memref<2x128x32xf32, #tpu.memory_space<vmem>>, vector<1x64x32xf32>
    %26 = vector.shape_cast %25 : vector<1x64x32xf32> to vector<64x32xf32>
    %27 = vector.shape_cast %18 : vector<64x32xf32> to vector<1x64x32xf32>
    tpu.vector_store %arg6[%c0_16, %c0_17, %c0_18], %27 {strides = array<i32>} : memref<2x128x32xf32, #tpu.memory_space<vmem>>, vector<1x64x32xf32>,
    %cst_19 = arith.constant 0.000000e+00 : f32
    %28 = vector.broadcast %cst_19 : f32 to vector<60x32xf32>
    %29 = tpu.concatenate %24, %28 in 0 : vector<4x32xf32>, vector<60x32xf32> -> vector<64x32xf32>
    %c0_20 = arith.constant 0 : index
    %c64 = arith.constant 64 : index
    %c0_21 = arith.constant 0 : index
    %30 = vector.load %arg6[%c0_20, %c64, %c0_21] : memref<2x128x32xf32, #tpu.memory_space<vmem>>, vector<1x64x32xf32>
    %31 = vector.shape_cast %30 : vector<1x64x32xf32> to vector<64x32xf32>
    %32 = vector.shape_cast %29 : vector<64x32xf32> to vector<1x64x32xf32>
    tpu.vector_store %arg6[%c0_20, %c64, %c0_21], %32 {strides = array<i32>} : memref<2x128x32xf32, #tpu.memory_space<vmem>>, vector<1x64x32xf32>,
    %c1 = arith.constant 1 : index
    %c0_22 = arith.constant 0 : index
    %c0_23 = arith.constant 0 : index
    %33 = vector.load %arg1[%c1, %c0_22, %c0_23] : memref<2x72x8xf32, #tpu.memory_space<vmem>>, vector<1x72x8xf32>
    %34 = vector.shape_cast %33 : vector<1x72x8xf32> to vector<72x8xf32>
    %35 = vector.extract_strided_slice %34 {offsets = [0, 0], sizes = [64, 8], strides = [1, 1]} : vector<72x8xf32> to vector<64x8xf32>
    %cst_24 = arith.constant dense<0.000000e+00> : vector<64x32xf32>
    %36 = tpu.matmul %35, %3, %cst_24 {dimension_numbers = #tpu.dot_dimension_numbers<[1], [0], [0], [1], [0, 0, 1, 1], [], []>} : vector<64x8xf32>, vector<8x32xf32>, vector<64x32xf32> -> vector<64x32xf32>
    %37 = vector.broadcast %4 : vector<1x32xf32> to vector<64x32xf32>
    %38 = arith.addf %36, %37 : vector<64x32xf32>
    %39 = vector.extract_strided_slice %34 {offsets = [64, 0], sizes = [4, 1], strides = [1, 1]} : vector<72x8xf32> to vector<4x1xf32>
    %40 = vector.broadcast %39 : vector<4x1xf32> to vector<4x32xf32>
    %41 = vector.broadcast %5 : vector<1x32xf32> to vector<4x32xf32>
    %42 = arith.mulf %40, %41 : vector<4x32xf32>
    %43 = vector.broadcast %6 : vector<1x32xf32> to vector<4x32xf32>
    %44 = arith.addf %42, %43 : vector<4x32xf32>
    %c1_25 = arith.constant 1 : index
    %c0_26 = arith.constant 0 : index
    %c0_27 = arith.constant 0 : index
    %45 = vector.load %arg6[%c1_25, %c0_26, %c0_27] : memref<2x128x32xf32, #tpu.memory_space<vmem>>, vector<1x64x32xf32>
    %46 = vector.shape_cast %45 : vector<1x64x32xf32> to vector<64x32xf32>
    %47 = vector.shape_cast %38 : vector<64x32xf32> to vector<1x64x32xf32>
    tpu.vector_store %arg6[%c1_25, %c0_26, %c0_27], %47 {strides = array<i32>} : memref<2x128x32xf32, #tpu.memory_space<vmem>>, vector<1x64x32xf32>,
    %cst_28 = arith.constant 0.000000e+00 : f32
    %48 = vector.broadcast %cst_28 : f32 to vector<60x32xf32>
    %49 = tpu.concatenate %44, %48 in 0 : vector<4x32xf32>, vector<60x32xf32> -> vector<64x32xf32>
    %c1_29 = arith.constant 1 : index
    %c64_30 = arith.constant 64 : index
    %c0_31 = arith.constant 0 : index
    %50 = vector.load %arg6[%c1_29, %c64_30, %c0_31] : memref<2x128x32xf32, #tpu.memory_space<vmem>>, vector<1x64x32xf32>
    %51 = vector.shape_cast %50 : vector<1x64x32xf32> to vector<64x32xf32>
    %52 = vector.shape_cast %49 : vector<64x32xf32> to vector<1x64x32xf32>
    tpu.vector_store %arg6[%c1_29, %c64_30, %c0_31], %52 {strides = array<i32>} : memref<2x128x32xf32, #tpu.memory_space<vmem>>, vector<1x64x32xf32>,
    %c0_32 = arith.constant 0 : index
    %c0_33 = arith.constant 0 : index
    %c0_34 = arith.constant 0 : index
    %53 = vector.load %arg3[%c0_32, %c0_33, %c0_34] : memref<3x64x32xf32, #tpu.memory_space<vmem>>, vector<1x64x32xf32>
    %54 = vector.shape_cast %53 : vector<1x64x32xf32> to vector<64x32xf32>
    %c16 = arith.constant 16 : index
    %c0_35 = arith.constant 0 : index
    %55 = vector.load %arg4[%c16, %c0_35] : memref<136x32xf32, #tpu.memory_space<vmem>>, vector<1x32xf32>
    %c17 = arith.constant 17 : index
    %c0_36 = arith.constant 0 : index
    %56 = vector.load %arg4[%c17, %c0_36] : memref<136x32xf32, #tpu.memory_space<vmem>>, vector<1x32xf32>
    %57 = vector.broadcast %2 : vector<128x1xf32> to vector<128x32xf32>
    %58 = vector.broadcast %56 : vector<1x32xf32> to vector<128x32xf32>
    %59 = arith.mulf %57, %58 : vector<128x32xf32>
    %60 = vector.broadcast %55 : vector<1x32xf32> to vector<128x32xf32>
    %61 = arith.addf %60, %59 : vector<128x32xf32>
    %c0_37 = arith.constant 0 : index
    %c0_38 = arith.constant 0 : index
    %c0_39 = arith.constant 0 : index
    %62 = vector.load %arg6[%c0_37, %c0_38, %c0_39] : memref<2x128x32xf32, #tpu.memory_space<vmem>>, vector<1x128x32xf32>
    %63 = vector.shape_cast %62 : vector<1x128x32xf32> to vector<128x32xf32>
    %cst_40 = arith.constant dense<0.000000e+00> : vector<128x32xf32>
    %64 = tpu.matmul %0, %63, %cst_40 {dimension_numbers = #tpu.dot_dimension_numbers<[1], [0], [0], [1], [0, 0, 1, 1], [], []>} : vector<128x128xf32>, vector<128x32xf32>, vector<128x32xf32> -> vector<128x32xf32>
    %65 = tpu.concatenate %63, %64 in 1 : vector<128x32xf32>, vector<128x32xf32> -> vector<128x64xf32>
    %cst_41 = arith.constant dense<0.000000e+00> : vector<128x32xf32>
    %66 = tpu.matmul %65, %54, %cst_41 {dimension_numbers = #tpu.dot_dimension_numbers<[1], [0], [0], [1], [0, 0, 1, 1], [], []>} : vector<128x64xf32>, vector<64x32xf32>, vector<128x32xf32> -> vector<128x32xf32>
    %67 = arith.addf %66, %61 : vector<128x32xf32>
    %cst_42 = arith.constant 0.000000e+00 : f32
    %68 = vector.broadcast %cst_42 : f32 to vector<128x32xf32>
    %69 = arith.maximumf %67, %68 : vector<128x32xf32>
    %c0_43 = arith.constant 0 : index
    %c0_44 = arith.constant 0 : index
    %c0_45 = arith.constant 0 : index
    %70 = vector.load %arg6[%c0_43, %c0_44, %c0_45] : memref<2x128x32xf32, #tpu.memory_space<vmem>>, vector<1x128x32xf32>
    %71 = vector.shape_cast %70 : vector<1x128x32xf32> to vector<128x32xf32>
    %72 = vector.shape_cast %69 : vector<128x32xf32> to vector<1x128x32xf32>
    tpu.vector_store %arg6[%c0_43, %c0_44, %c0_45], %72 {strides = array<i32>} : memref<2x128x32xf32, #tpu.memory_space<vmem>>, vector<1x128x32xf32>,
    %c1_46 = arith.constant 1 : index
    %c0_47 = arith.constant 0 : index
    %c0_48 = arith.constant 0 : index
    %73 = vector.load %arg6[%c1_46, %c0_47, %c0_48] : memref<2x128x32xf32, #tpu.memory_space<vmem>>, vector<1x128x32xf32>
    %74 = vector.shape_cast %73 : vector<1x128x32xf32> to vector<128x32xf32>
    %cst_49 = arith.constant dense<0.000000e+00> : vector<128x32xf32>
    %75 = tpu.matmul %0, %74, %cst_49 {dimension_numbers = #tpu.dot_dimension_numbers<[1], [0], [0], [1], [0, 0, 1, 1], [], []>} : vector<128x128xf32>, vector<128x32xf32>, vector<128x32xf32> -> vector<128x32xf32>
    %76 = tpu.concatenate %74, %75 in 1 : vector<128x32xf32>, vector<128x32xf32> -> vector<128x64xf32>
    %cst_50 = arith.constant dense<0.000000e+00> : vector<128x32xf32>
    %77 = tpu.matmul %76, %54, %cst_50 {dimension_numbers = #tpu.dot_dimension_numbers<[1], [0], [0], [1], [0, 0, 1, 1], [], []>} : vector<128x64xf32>, vector<64x32xf32>, vector<128x32xf32> -> vector<128x32xf32>
    %78 = arith.addf %77, %61 : vector<128x32xf32>
    %cst_51 = arith.constant 0.000000e+00 : f32
    %79 = vector.broadcast %cst_51 : f32 to vector<128x32xf32>
    %80 = arith.maximumf %78, %79 : vector<128x32xf32>
    %c1_52 = arith.constant 1 : index
    %c0_53 = arith.constant 0 : index
    %c0_54 = arith.constant 0 : index
    %81 = vector.load %arg6[%c1_52, %c0_53, %c0_54] : memref<2x128x32xf32, #tpu.memory_space<vmem>>, vector<1x128x32xf32>
    %82 = vector.shape_cast %81 : vector<1x128x32xf32> to vector<128x32xf32>
    %83 = vector.shape_cast %80 : vector<128x32xf32> to vector<1x128x32xf32>
    tpu.vector_store %arg6[%c1_52, %c0_53, %c0_54], %83 {strides = array<i32>} : memref<2x128x32xf32, #tpu.memory_space<vmem>>, vector<1x128x32xf32>,
    %c1_55 = arith.constant 1 : index
    %c0_56 = arith.constant 0 : index
    %c0_57 = arith.constant 0 : index
    %84 = vector.load %arg3[%c1_55, %c0_56, %c0_57] : memref<3x64x32xf32, #tpu.memory_space<vmem>>, vector<1x64x32xf32>
    %85 = vector.shape_cast %84 : vector<1x64x32xf32> to vector<64x32xf32>
    %c18 = arith.constant 18 : index
    %c0_58 = arith.constant 0 : index
    %86 = vector.load %arg4[%c18, %c0_58] : memref<136x32xf32, #tpu.memory_space<vmem>>, vector<1x32xf32>
    %c19 = arith.constant 19 : index
    %c0_59 = arith.constant 0 : index
    %87 = vector.load %arg4[%c19, %c0_59] : memref<136x32xf32, #tpu.memory_space<vmem>>, vector<1x32xf32>
    %88 = vector.broadcast %2 : vector<128x1xf32> to vector<128x32xf32>
    %89 = vector.broadcast %87 : vector<1x32xf32> to vector<128x32xf32>
    %90 = arith.mulf %88, %89 : vector<128x32xf32>
    %91 = vector.broadcast %86 : vector<1x32xf32> to vector<128x32xf32>
    %92 = arith.addf %91, %90 : vector<128x32xf32>
    %c0_60 = arith.constant 0 : index
    %c0_61 = arith.constant 0 : index
    %c0_62 = arith.constant 0 : index
    %93 = vector.load %arg6[%c0_60, %c0_61, %c0_62] : memref<2x128x32xf32, #tpu.memory_space<vmem>>, vector<1x128x32xf32>
    %94 = vector.shape_cast %93 : vector<1x128x32xf32> to vector<128x32xf32>
    %cst_63 = arith.constant dense<0.000000e+00> : vector<128x32xf32>
    %95 = tpu.matmul %0, %94, %cst_63 {dimension_numbers = #tpu.dot_dimension_numbers<[1], [0], [0], [1], [0, 0, 1, 1], [], []>} : vector<128x128xf32>, vector<128x32xf32>, vector<128x32xf32> -> vector<128x32xf32>
    %96 = tpu.concatenate %94, %95 in 1 : vector<128x32xf32>, vector<128x32xf32> -> vector<128x64xf32>
    %cst_64 = arith.constant dense<0.000000e+00> : vector<128x32xf32>
    %97 = tpu.matmul %96, %85, %cst_64 {dimension_numbers = #tpu.dot_dimension_numbers<[1], [0], [0], [1], [0, 0, 1, 1], [], []>} : vector<128x64xf32>, vector<64x32xf32>, vector<128x32xf32> -> vector<128x32xf32>
    %98 = arith.addf %97, %92 : vector<128x32xf32>
    %cst_65 = arith.constant 0.000000e+00 : f32
    %99 = vector.broadcast %cst_65 : f32 to vector<128x32xf32>
    %100 = arith.maximumf %98, %99 : vector<128x32xf32>
    %c0_66 = arith.constant 0 : index
    %c0_67 = arith.constant 0 : index
    %c0_68 = arith.constant 0 : index
    %101 = vector.load %arg6[%c0_66, %c0_67, %c0_68] : memref<2x128x32xf32, #tpu.memory_space<vmem>>, vector<1x128x32xf32>
    %102 = vector.shape_cast %101 : vector<1x128x32xf32> to vector<128x32xf32>
    %103 = vector.shape_cast %100 : vector<128x32xf32> to vector<1x128x32xf32>
    tpu.vector_store %arg6[%c0_66, %c0_67, %c0_68], %103 {strides = array<i32>} : memref<2x128x32xf32, #tpu.memory_space<vmem>>, vector<1x128x32xf32>,
    %c1_69 = arith.constant 1 : index
    %c0_70 = arith.constant 0 : index
    %c0_71 = arith.constant 0 : index
    %104 = vector.load %arg6[%c1_69, %c0_70, %c0_71] : memref<2x128x32xf32, #tpu.memory_space<vmem>>, vector<1x128x32xf32>
    %105 = vector.shape_cast %104 : vector<1x128x32xf32> to vector<128x32xf32>
    %cst_72 = arith.constant dense<0.000000e+00> : vector<128x32xf32>
    %106 = tpu.matmul %0, %105, %cst_72 {dimension_numbers = #tpu.dot_dimension_numbers<[1], [0], [0], [1], [0, 0, 1, 1], [], []>} : vector<128x128xf32>, vector<128x32xf32>, vector<128x32xf32> -> vector<128x32xf32>
    %107 = tpu.concatenate %105, %106 in 1 : vector<128x32xf32>, vector<128x32xf32> -> vector<128x64xf32>
    %cst_73 = arith.constant dense<0.000000e+00> : vector<128x32xf32>
    %108 = tpu.matmul %107, %85, %cst_73 {dimension_numbers = #tpu.dot_dimension_numbers<[1], [0], [0], [1], [0, 0, 1, 1], [], []>} : vector<128x64xf32>, vector<64x32xf32>, vector<128x32xf32> -> vector<128x32xf32>
    %109 = arith.addf %108, %92 : vector<128x32xf32>
    %cst_74 = arith.constant 0.000000e+00 : f32
    %110 = vector.broadcast %cst_74 : f32 to vector<128x32xf32>
    %111 = arith.maximumf %109, %110 : vector<128x32xf32>
    %c1_75 = arith.constant 1 : index
    %c0_76 = arith.constant 0 : index
    %c0_77 = arith.constant 0 : index
    %112 = vector.load %arg6[%c1_75, %c0_76, %c0_77] : memref<2x128x32xf32, #tpu.memory_space<vmem>>, vector<1x128x32xf32>
    %113 = vector.shape_cast %112 : vector<1x128x32xf32> to vector<128x32xf32>
    %114 = vector.shape_cast %111 : vector<128x32xf32> to vector<1x128x32xf32>
    tpu.vector_store %arg6[%c1_75, %c0_76, %c0_77], %114 {strides = array<i32>} : memref<2x128x32xf32, #tpu.memory_space<vmem>>, vector<1x128x32xf32>,
    %c2 = arith.constant 2 : index
    %c0_78 = arith.constant 0 : index
    %c0_79 = arith.constant 0 : index
    %115 = vector.load %arg3[%c2, %c0_78, %c0_79] : memref<3x64x32xf32, #tpu.memory_space<vmem>>, vector<1x64x32xf32>
    %116 = vector.shape_cast %115 : vector<1x64x32xf32> to vector<64x32xf32>
    %c20 = arith.constant 20 : index
    %c0_80 = arith.constant 0 : index
    %117 = vector.load %arg4[%c20, %c0_80] : memref<136x32xf32, #tpu.memory_space<vmem>>, vector<1x32xf32>
    %c21 = arith.constant 21 : index
    %c0_81 = arith.constant 0 : index
    %118 = vector.load %arg4[%c21, %c0_81] : memref<136x32xf32, #tpu.memory_space<vmem>>, vector<1x32xf32>
    %119 = vector.broadcast %2 : vector<128x1xf32> to vector<128x32xf32>
    %120 = vector.broadcast %118 : vector<1x32xf32> to vector<128x32xf32>
    %121 = arith.mulf %119, %120 : vector<128x32xf32>
    %122 = vector.broadcast %117 : vector<1x32xf32> to vector<128x32xf32>
    %123 = arith.addf %122, %121 : vector<128x32xf32>
    %c0_82 = arith.constant 0 : index
    %c0_83 = arith.constant 0 : index
    %c0_84 = arith.constant 0 : index
    %124 = vector.load %arg6[%c0_82, %c0_83, %c0_84] : memref<2x128x32xf32, #tpu.memory_space<vmem>>, vector<1x128x32xf32>
    %125 = vector.shape_cast %124 : vector<1x128x32xf32> to vector<128x32xf32>
    %cst_85 = arith.constant dense<0.000000e+00> : vector<128x32xf32>
    %126 = tpu.matmul %0, %125, %cst_85 {dimension_numbers = #tpu.dot_dimension_numbers<[1], [0], [0], [1], [0, 0, 1, 1], [], []>} : vector<128x128xf32>, vector<128x32xf32>, vector<128x32xf32> -> vector<128x32xf32>
    %127 = tpu.concatenate %125, %126 in 1 : vector<128x32xf32>, vector<128x32xf32> -> vector<128x64xf32>
    %cst_86 = arith.constant dense<0.000000e+00> : vector<128x32xf32>
    %128 = tpu.matmul %127, %116, %cst_86 {dimension_numbers = #tpu.dot_dimension_numbers<[1], [0], [0], [1], [0, 0, 1, 1], [], []>} : vector<128x64xf32>, vector<64x32xf32>, vector<128x32xf32> -> vector<128x32xf32>
    %129 = arith.addf %128, %123 : vector<128x32xf32>
    %cst_87 = arith.constant 0.000000e+00 : f32
    %130 = vector.broadcast %cst_87 : f32 to vector<128x32xf32>
    %131 = arith.maximumf %129, %130 : vector<128x32xf32>
    %c0_88 = arith.constant 0 : index
    %c0_89 = arith.constant 0 : index
    %c0_90 = arith.constant 0 : index
    %132 = vector.load %arg6[%c0_88, %c0_89, %c0_90] : memref<2x128x32xf32, #tpu.memory_space<vmem>>, vector<1x128x32xf32>
    %133 = vector.shape_cast %132 : vector<1x128x32xf32> to vector<128x32xf32>
    %134 = vector.shape_cast %131 : vector<128x32xf32> to vector<1x128x32xf32>
    tpu.vector_store %arg6[%c0_88, %c0_89, %c0_90], %134 {strides = array<i32>} : memref<2x128x32xf32, #tpu.memory_space<vmem>>, vector<1x128x32xf32>,
    %c1_91 = arith.constant 1 : index
    %c0_92 = arith.constant 0 : index
    %c0_93 = arith.constant 0 : index
    %135 = vector.load %arg6[%c1_91, %c0_92, %c0_93] : memref<2x128x32xf32, #tpu.memory_space<vmem>>, vector<1x128x32xf32>
    %136 = vector.shape_cast %135 : vector<1x128x32xf32> to vector<128x32xf32>
    %cst_94 = arith.constant dense<0.000000e+00> : vector<128x32xf32>
    %137 = tpu.matmul %0, %136, %cst_94 {dimension_numbers = #tpu.dot_dimension_numbers<[1], [0], [0], [1], [0, 0, 1, 1], [], []>} : vector<128x128xf32>, vector<128x32xf32>, vector<128x32xf32> -> vector<128x32xf32>
    %138 = tpu.concatenate %136, %137 in 1 : vector<128x32xf32>, vector<128x32xf32> -> vector<128x64xf32>
    %cst_95 = arith.constant dense<0.000000e+00> : vector<128x32xf32>
    %139 = tpu.matmul %138, %116, %cst_95 {dimension_numbers = #tpu.dot_dimension_numbers<[1], [0], [0], [1], [0, 0, 1, 1], [], []>} : vector<128x64xf32>, vector<64x32xf32>, vector<128x32xf32> -> vector<128x32xf32>
    %140 = arith.addf %139, %123 : vector<128x32xf32>
    %cst_96 = arith.constant 0.000000e+00 : f32
    %141 = vector.broadcast %cst_96 : f32 to vector<128x32xf32>
    %142 = arith.maximumf %140, %141 : vector<128x32xf32>
    %c1_97 = arith.constant 1 : index
    %c0_98 = arith.constant 0 : index
    %c0_99 = arith.constant 0 : index
    %143 = vector.load %arg6[%c1_97, %c0_98, %c0_99] : memref<2x128x32xf32, #tpu.memory_space<vmem>>, vector<1x128x32xf32>
    %144 = vector.shape_cast %143 : vector<1x128x32xf32> to vector<128x32xf32>
    %145 = vector.shape_cast %142 : vector<128x32xf32> to vector<1x128x32xf32>
    tpu.vector_store %arg6[%c1_97, %c0_98, %c0_99], %145 {strides = array<i32>} : memref<2x128x32xf32, #tpu.memory_space<vmem>>, vector<1x128x32xf32>,
    %c0_100 = arith.constant 0 : index
    %c0_101 = arith.constant 0 : index
    %c0_102 = arith.constant 0 : index
    %146 = vector.load %arg1[%c0_100, %c0_101, %c0_102] : memref<2x72x8xf32, #tpu.memory_space<vmem>>, vector<1x72x8xf32>
    %147 = vector.shape_cast %146 : vector<1x72x8xf32> to vector<72x8xf32>
    %148 = vector.extract_strided_slice %147 {offsets = [68, 0], sizes = [1, 1], strides = [1, 1]} : vector<72x8xf32> to vector<1x1xf32>
    %c0_103 = arith.constant 0 : index
    %c0_104 = arith.constant 0 : index
    %c0_105 = arith.constant 0 : index
    %149 = vector.load %arg6[%c0_103, %c0_104, %c0_105] : memref<2x128x32xf32, #tpu.memory_space<vmem>>, vector<1x64x32xf32>
    %150 = vector.shape_cast %149 : vector<1x64x32xf32> to vector<64x32xf32>
    %cst_106 = arith.constant dense<0.000000e+00> : vector<32xf32>
    %151 = vector.multi_reduction <add>, %150, %cst_106 [0] : vector<64x32xf32> to vector<32xf32>
    %152 = vector.shape_cast %151 : vector<32xf32> to vector<1x32xf32>
    %cst_107 = arith.constant 6.400000e+01 : f32
    %153 = vector.broadcast %cst_107 : f32 to vector<1x32xf32>
    %154 = arith.divf %152, %153 : vector<1x32xf32>
    %155 = vector.broadcast %148 : vector<1x1xf32> to vector<1x32xf32>
    %156 = arith.mulf %155, %7 : vector<1x32xf32>
    %157 = arith.addf %156, %8 : vector<1x32xf32>
    %cst_108 = arith.constant 0.000000e+00 : f32
    %158 = vector.broadcast %cst_108 : f32 to vector<1x32xf32>
    %159 = arith.maximumf %157, %158 : vector<1x32xf32>
    %160 = tpu.concatenate %154, %159 in 1 : vector<1x32xf32>, vector<1x32xf32> -> vector<1x64xf32>
    %cst_109 = arith.constant dense<0.000000e+00> : vector<1x32xf32>
    %161 = tpu.matmul %160, %9, %cst_109 {dimension_numbers = #tpu.dot_dimension_numbers<[1], [0], [0], [1], [0, 0, 1, 1], [], []>} : vector<1x64xf32>, vector<64x32xf32>, vector<1x32xf32> -> vector<1x32xf32>
    %162 = arith.addf %161, %10 : vector<1x32xf32>
    %cst_110 = arith.constant 0.000000e+00 : f32
    %163 = vector.broadcast %cst_110 : f32 to vector<1x32xf32>
    %164 = arith.maximumf %162, %163 : vector<1x32xf32>
    %c0_111 = arith.constant 0 : index
    %c64_112 = arith.constant 64 : index
    %c0_113 = arith.constant 0 : index
    %165 = vector.load %arg6[%c0_111, %c64_112, %c0_113] : memref<2x128x32xf32, #tpu.memory_space<vmem>>, vector<1x8x32xf32>
    %166 = vector.shape_cast %165 : vector<1x8x32xf32> to vector<8x32xf32>
    %cst_114 = arith.constant dense<0.000000e+00> : vector<8x32xf32>
    %167 = tpu.matmul %166, %11, %cst_114 {dimension_numbers = #tpu.dot_dimension_numbers<[1], [0], [0], [1], [0, 0, 1, 1], [], []>} : vector<8x32xf32>, vector<32x32xf32>, vector<8x32xf32> -> vector<8x32xf32>
    %168 = vector.broadcast %12 : vector<1x32xf32> to vector<8x32xf32>
    %169 = arith.addf %167, %168 : vector<8x32xf32>
    %cst_115 = arith.constant 0.000000e+00 : f32
    %170 = vector.broadcast %cst_115 : f32 to vector<8x32xf32>
    %171 = arith.maximumf %169, %170 : vector<8x32xf32>
    %c0_116 = arith.constant 0 : index
    %c0_117 = arith.constant 0 : index
    %c0_118 = arith.constant 0 : index
    %172 = vector.load %arg5[%c0_116, %c0_117, %c0_118] : memref<2x16x32xf32, #tpu.memory_space<vmem>>, vector<1x8x32xf32>
    %173 = vector.shape_cast %172 : vector<1x8x32xf32> to vector<8x32xf32>
    %174 = vector.shape_cast %171 : vector<8x32xf32> to vector<1x8x32xf32>
    tpu.vector_store %arg5[%c0_116, %c0_117, %c0_118], %174 {strides = array<i32>} : memref<2x16x32xf32, #tpu.memory_space<vmem>>, vector<1x8x32xf32>,
    %175 = vector.shape_cast %164 : vector<1x32xf32> to vector<1x32xf32>
    %176 = vector.broadcast %175 : vector<1x32xf32> to vector<8x32xf32>
    %c0_119 = arith.constant 0 : index
    %c8_120 = arith.constant 8 : index
    %c0_121 = arith.constant 0 : index
    %177 = vector.load %arg5[%c0_119, %c8_120, %c0_121] : memref<2x16x32xf32, #tpu.memory_space<vmem>>, vector<1x8x32xf32>
    %178 = vector.shape_cast %177 : vector<1x8x32xf32> to vector<8x32xf32>
    %179 = vector.shape_cast %176 : vector<8x32xf32> to vector<1x8x32xf32>
    tpu.vector_store %arg5[%c0_119, %c8_120, %c0_121], %179 {strides = array<i32>} : memref<2x16x32xf32, #tpu.memory_space<vmem>>, vector<1x8x32xf32>,
    %c1_122 = arith.constant 1 : index
    %c0_123 = arith.constant 0 : index
    %c0_124 = arith.constant 0 : index
    %180 = vector.load %arg1[%c1_122, %c0_123, %c0_124] : memref<2x72x8xf32, #tpu.memory_space<vmem>>, vector<1x72x8xf32>
    %181 = vector.shape_cast %180 : vector<1x72x8xf32> to vector<72x8xf32>
    %182 = vector.extract_strided_slice %181 {offsets = [68, 0], sizes = [1, 1], strides = [1, 1]} : vector<72x8xf32> to vector<1x1xf32>
    %c1_125 = arith.constant 1 : index
    %c0_126 = arith.constant 0 : index
    %c0_127 = arith.constant 0 : index
    %183 = vector.load %arg6[%c1_125, %c0_126, %c0_127] : memref<2x128x32xf32, #tpu.memory_space<vmem>>, vector<1x64x32xf32>
    %184 = vector.shape_cast %183 : vector<1x64x32xf32> to vector<64x32xf32>
    %cst_128 = arith.constant dense<0.000000e+00> : vector<32xf32>
    %185 = vector.multi_reduction <add>, %184, %cst_128 [0] : vector<64x32xf32> to vector<32xf32>
    %186 = vector.shape_cast %185 : vector<32xf32> to vector<1x32xf32>
    %cst_129 = arith.constant 6.400000e+01 : f32
    %187 = vector.broadcast %cst_129 : f32 to vector<1x32xf32>
    %188 = arith.divf %186, %187 : vector<1x32xf32>
    %189 = vector.broadcast %182 : vector<1x1xf32> to vector<1x32xf32>
    %190 = arith.mulf %189, %7 : vector<1x32xf32>
    %191 = arith.addf %190, %8 : vector<1x32xf32>
    %cst_130 = arith.constant 0.000000e+00 : f32
    %192 = vector.broadcast %cst_130 : f32 to vector<1x32xf32>
    %193 = arith.maximumf %191, %192 : vector<1x32xf32>
    %194 = tpu.concatenate %188, %193 in 1 : vector<1x32xf32>, vector<1x32xf32> -> vector<1x64xf32>
    %cst_131 = arith.constant dense<0.000000e+00> : vector<1x32xf32>
    %195 = tpu.matmul %194, %9, %cst_131 {dimension_numbers = #tpu.dot_dimension_numbers<[1], [0], [0], [1], [0, 0, 1, 1], [], []>} : vector<1x64xf32>, vector<64x32xf32>, vector<1x32xf32> -> vector<1x32xf32>
    %196 = arith.addf %195, %10 : vector<1x32xf32>
    %cst_132 = arith.constant 0.000000e+00 : f32
    %197 = vector.broadcast %cst_132 : f32 to vector<1x32xf32>
    %198 = arith.maximumf %196, %197 : vector<1x32xf32>
    %c1_133 = arith.constant 1 : index
    %c64_134 = arith.constant 64 : index
    %c0_135 = arith.constant 0 : index
    %199 = vector.load %arg6[%c1_133, %c64_134, %c0_135] : memref<2x128x32xf32, #tpu.memory_space<vmem>>, vector<1x8x32xf32>
    %200 = vector.shape_cast %199 : vector<1x8x32xf32> to vector<8x32xf32>
    %cst_136 = arith.constant dense<0.000000e+00> : vector<8x32xf32>
    %201 = tpu.matmul %200, %11, %cst_136 {dimension_numbers = #tpu.dot_dimension_numbers<[1], [0], [0], [1], [0, 0, 1, 1], [], []>} : vector<8x32xf32>, vector<32x32xf32>, vector<8x32xf32> -> vector<8x32xf32>
    %202 = vector.broadcast %12 : vector<1x32xf32> to vector<8x32xf32>
    %203 = arith.addf %201, %202 : vector<8x32xf32>
    %cst_137 = arith.constant 0.000000e+00 : f32
    %204 = vector.broadcast %cst_137 : f32 to vector<8x32xf32>
    %205 = arith.maximumf %203, %204 : vector<8x32xf32>
    %c1_138 = arith.constant 1 : index
    %c0_139 = arith.constant 0 : index
    %c0_140 = arith.constant 0 : index
    %206 = vector.load %arg5[%c1_138, %c0_139, %c0_140] : memref<2x16x32xf32, #tpu.memory_space<vmem>>, vector<1x8x32xf32>
    %207 = vector.shape_cast %206 : vector<1x8x32xf32> to vector<8x32xf32>
    %208 = vector.shape_cast %205 : vector<8x32xf32> to vector<1x8x32xf32>
    tpu.vector_store %arg5[%c1_138, %c0_139, %c0_140], %208 {strides = array<i32>} : memref<2x16x32xf32, #tpu.memory_space<vmem>>, vector<1x8x32xf32>,
    %209 = vector.shape_cast %198 : vector<1x32xf32> to vector<1x32xf32>
    %210 = vector.broadcast %209 : vector<1x32xf32> to vector<8x32xf32>
    %c1_141 = arith.constant 1 : index
    %c8_142 = arith.constant 8 : index
    %c0_143 = arith.constant 0 : index
    %211 = vector.load %arg5[%c1_141, %c8_142, %c0_143] : memref<2x16x32xf32, #tpu.memory_space<vmem>>, vector<1x8x32xf32>
    %212 = vector.shape_cast %211 : vector<1x8x32xf32> to vector<8x32xf32>
    %213 = vector.shape_cast %210 : vector<8x32xf32> to vector<1x8x32xf32>
    tpu.vector_store %arg5[%c1_141, %c8_142, %c0_143], %213 {strides = array<i32>} : memref<2x16x32xf32, #tpu.memory_space<vmem>>, vector<1x8x32xf32>,
    return
  }
  func.func @transform_0(%arg0: i32) -> (i32, i32, i32) {
    %c0_i32 = arith.constant 0 : i32
    %c0_i32_0 = arith.constant 0 : i32
    %c0_i32_1 = arith.constant 0 : i32
    return %arg0, %c0_i32, %c0_i32_0 : i32, i32, i32
  }
  func.func @transform_1(%arg0: i32) -> (i32, i32) {
    %c0_i32 = arith.constant 0 : i32
    %c0_i32_0 = arith.constant 0 : i32
    %c0_i32_1 = arith.constant 0 : i32
    return %c0_i32, %c0_i32_0 : i32, i32
  }
  func.func @transform_2(%arg0: i32) -> (i32, i32, i32) {
    %c0_i32 = arith.constant 0 : i32
    %c0_i32_0 = arith.constant 0 : i32
    %c0_i32_1 = arith.constant 0 : i32
    %c0_i32_2 = arith.constant 0 : i32
    return %c0_i32, %c0_i32_0, %c0_i32_1 : i32, i32, i32
  }
  func.func @transform_3(%arg0: i32) -> (i32, i32) {
    %c0_i32 = arith.constant 0 : i32
    %c0_i32_0 = arith.constant 0 : i32
    %c0_i32_1 = arith.constant 0 : i32
    return %c0_i32, %c0_i32_0 : i32, i32
  }
  func.func @transform_4(%arg0: i32) -> (i32, i32, i32) {
    %c0_i32 = arith.constant 0 : i32
    %c0_i32_0 = arith.constant 0 : i32
    %c0_i32_1 = arith.constant 0 : i32
    return %arg0, %c0_i32, %c0_i32_0 : i32, i32, i32
  }
}

</mosaic_0001>

<llo_original>
// kernel: tpu_custom_call.1
$region0: #{tpu_custom_call.1}
  #allocation0 [shape = 'u32[]', space=smem, size = 0x4, offset = 0x4, fixed_abs, tag = 'smem constant byte address 0x4 - core index']
  #allocation1 [shape = 'u32[144,128]{1,0:T(1,128)}', space=vmem, size = 0x12000, scoped, tag = 'internal scratch']
  #allocation2 [shape = 'f32[2,128,32]{2,1,0:T(8,128)}', space=vmem, size = 0x20000, scoped, tag = 'scratch operand']
  %s0 = inlined_call_operand.vmem [shape: f32[2,72,8], index: 0, kind: input, shape index: {}]
  %s1 = inlined_call_operand.vmem [shape: f32[128,128], index: 1, kind: input, shape index: {}]
  %s2 = inlined_call_operand.vmem [shape: f32[3,64,32], index: 2, kind: input, shape index: {}]
  %s3 = inlined_call_operand.vmem [shape: f32[136,32], index: 3, kind: input, shape index: {}]
  %s4 = inlined_call_operand.hbm [shape: f32[2,16,32], index: 4, kind: output, shape index: {}]
  %s5 = sld [smem:[#allocation0]]
  $region26: #{tpu_custom_call.1} parent=0
    _
  %s7 = ssub.s32 1, %s5
  %s8 = scalar_select 0, %s7, %s5
  $region1: #{tpu_custom_call.1} parent=0
    #allocation3 [shape = 'u8[16384]{0}', space=vmem, size = 0x4000, scoped, tag = 'output window, operand 0, single buffered']
    #allocation4 [shape = 's32[1]{0}', space=sflag, size = 0x4, scoped, tag = 'scoped memory for tpu_custom_call.1']
    %9 = vsyncpa [#allocation4], 0
    // Predicated region
    $region2: #{tpu_custom_call.1} parent=1 // pred_check
      _
    $region3: #{tpu_custom_call.1} parent=1 // pred_check_branch
      %11 = sbr.rel (0) target = $region5
    $region4: #{tpu_custom_call.1} parent=1 // pred_region
      _
    $region5: #{tpu_custom_call.1} parent=1 // pred_fallthru
      _
    // Predicated region
    $region6: #{tpu_custom_call.1} parent=1 // pred_check
      _
    $region7: #{tpu_custom_call.1} parent=1 // pred_check_branch
      %13 = sbr.rel (0) target = $region9
    $region8: #{tpu_custom_call.1} parent=1 // pred_region
      _
    $region9: #{tpu_custom_call.1} parent=1 // pred_fallthru
      _
    // Predicated region
    $region10: #{tpu_custom_call.1} parent=1 // pred_check
      _
    $region11: #{tpu_custom_call.1} parent=1 // pred_check_branch
      %15 = sbr.rel (0) target = $region13
    $region12: #{tpu_custom_call.1} parent=1 // pred_region
      _
    $region13: #{tpu_custom_call.1} parent=1 // pred_fallthru
      _
    // Predicated region
    $region14: #{tpu_custom_call.1} parent=1 // pred_check
      _
    $region15: #{tpu_custom_call.1} parent=1 // pred_check_branch
      %17 = sbr.rel (0) target = $region17
    $region16: #{tpu_custom_call.1} parent=1 // pred_region
      _
    $region17: #{tpu_custom_call.1} parent=1 // pred_fallthru
      _
    %v18 = vld [vmem:[%s1] sm:$0xff]
    %v19 = vld [vmem:[%s1 + $0x8] sm:$0xff]
    %v20 = vld [vmem:[%s1 + $0x10] sm:$0xff]
    %v21 = vld [vmem:[%s1 + $0x18] sm:$0xff]
    %v22 = vld [vmem:[%s1 + $0x20] sm:$0xff]
    %v23 = vld [vmem:[%s1 + $0x28] sm:$0xff]
    %v24 = vld [vmem:[%s1 + $0x30] sm:$0xff]
    %v25 = vld [vmem:[%s1 + $0x38] sm:$0xff]
    %v26 = vld [vmem:[%s1 + $0x40] sm:$0xff]
    %v27 = vld [vmem:[%s1 + $0x48] sm:$0xff]
    %v28 = vld [vmem:[%s1 + $0x50] sm:$0xff]
    %v29 = vld [vmem:[%s1 + $0x58] sm:$0xff]
    %v30 = vld [vmem:[%s1 + $0x60] sm:$0xff]
    %v31 = vld [vmem:[%s1 + $0x68] sm:$0xff]
    %v32 = vld [vmem:[%s1 + $0x70] sm:$0xff]
    %v33 = vld [vmem:[%s1 + $0x78] sm:$0xff]
    %34 = vadd.xlane.f32.xlu0 %v18
    %v35 = vpop.xlane.xlu0 %34
    %36 = vadd.xlane.f32.xlu0 %v19
    %v37 = vpop.xlane.xlu0 %36
    %38 = vadd.xlane.f32.xlu0 %v20
    %v39 = vpop.xlane.xlu0 %38
    %40 = vadd.xlane.f32.xlu0 %v21
    %v41 = vpop.xlane.xlu0 %40
    %42 = vadd.xlane.f32.xlu0 %v22
    %v43 = vpop.xlane.xlu0 %42
    %44 = vadd.xlane.f32.xlu0 %v23
    %v45 = vpop.xlane.xlu0 %44
    %46 = vadd.xlane.f32.xlu0 %v24
    %v47 = vpop.xlane.xlu0 %46
    %48 = vadd.xlane.f32.xlu0 %v25
    %v49 = vpop.xlane.xlu0 %48
    %50 = vadd.xlane.f32.xlu0 %v26
    %v51 = vpop.xlane.xlu0 %50
    %52 = vadd.xlane.f32.xlu0 %v27
    %v53 = vpop.xlane.xlu0 %52
    %54 = vadd.xlane.f32.xlu0 %v28
    %v55 = vpop.xlane.xlu0 %54
    %56 = vadd.xlane.f32.xlu0 %v29
    %v57 = vpop.xlane.xlu0 %56
    %58 = vadd.xlane.f32.xlu0 %v30
    %v59 = vpop.xlane.xlu0 %58
    %60 = vadd.xlane.f32.xlu0 %v31
    %v61 = vpop.xlane.xlu0 %60
    %62 = vadd.xlane.f32.xlu0 %v32
    %v63 = vpop.xlane.xlu0 %62
    %64 = vadd.xlane.f32.xlu0 %v33
    %v65 = vpop.xlane.xlu0 %64
    %v66 = vld [vmem:[%s3] sm:$0xff]
    %v67 = vld [vmem:[%s3 + $0x8] sm:$0x1]
    %v68 = vld [vmem:[%s3 + $0x9] sm:$0x1]
    %v69 = vld [vmem:[%s3 + $0xa] sm:$0x1]
    %v70 = vld [vmem:[%s3 + $0xb] sm:$0x1]
    %v71 = vld [vmem:[%s3 + $0xc] sm:$0x1]
    %v72 = vld [vmem:[%s3 + $0x18] sm:$0xff]
    %v73 = vld [vmem:[%s3 + $0x20] sm:$0xff]
    %v74 = vld [vmem:[%s3 + $0x28] sm:$0xff]
    %v75 = vld [vmem:[%s3 + $0x30] sm:$0xff]
    %v76 = vld [vmem:[%s3 + $0x38] sm:$0xff]
    %v77 = vld [vmem:[%s3 + $0x40] sm:$0xff]
    %v78 = vld [vmem:[%s3 + $0x48] sm:$0xff]
    %v79 = vld [vmem:[%s3 + $0x50] sm:$0xff]
    %v80 = vld [vmem:[%s3 + $0x58] sm:$0x1]
    %v81 = vld [vmem:[%s3 + $0x60] sm:$0xff]
    %v82 = vld [vmem:[%s3 + $0x68] sm:$0xff]
    %v83 = vld [vmem:[%s3 + $0x70] sm:$0xff]
    %v84 = vld [vmem:[%s3 + $0x78] sm:$0xff]
    %v85 = vld [vmem:[%s3 + $0x80] sm:$0x1]
    %v86 = vld [vmem:[%s0] sm:$0xff]
    %v87 = vld [vmem:[%s0 + $0x8] sm:$0xff]
    %v88 = vld [vmem:[%s0 + $0x10] sm:$0xff]
    %v89 = vld [vmem:[%s0 + $0x18] sm:$0xff]
    %v90 = vld [vmem:[%s0 + $0x20] sm:$0xff]
    %v91 = vld [vmem:[%s0 + $0x28] sm:$0xff]
    %v92 = vld [vmem:[%s0 + $0x30] sm:$0xff]
    %v93 = vld [vmem:[%s0 + $0x38] sm:$0xff]
    %v94 = vld [vmem:[%s0 + $0x40] sm:$0xff]
    %v95 = vlaneseq
    %v96 = vshrl.u32 %v95, 7
    %v97 = vsub.s32 0, %v96
    %v98 = vrot.slane %v67, %v97
    %vm99 = vcmask 64512
    %v101 = vsel %vm99, %v86, 0
    %v104 = vsel %vm99, %v87, 0
    %v107 = vsel %vm99, %v88, 0
    %v110 = vsel %vm99, %v89, 0
    %v113 = vsel %vm99, %v90, 0
    %v116 = vsel %vm99, %v91, 0
    %v119 = vsel %vm99, %v92, 0
    %v122 = vsel %vm99, %v93, 0
    %124 = vmatprep.subr.mxu0 0.0
    %125 = vmatpush1.msra.mxu0 0.0
    %126 = vmatprep.subr.mxu0 0.0
    %127 = vmatpush1.msra.mxu0 0.0
    %128 = vmatprep.subr.mxu0 0.0
    %129 = vmatpush1.msra.mxu0 0.0
    %130 = vmatprep.subr.mxu0 0.0
    %131 = vmatpush1.msra.mxu0 0.0
    %132 = vmatprep.subr.mxu0 0.0
    %133 = vmatpush1.msra.mxu0 0.0
    %134 = vmatprep.subr.mxu0 0.0
    %135 = vmatpush1.msra.mxu0 0.0
    %136 = vmatprep.subr.mxu0 0.0
    %137 = vmatpush1.msra.mxu0 0.0
    %138 = vmatprep.subr.mxu0 0.0
    %139 = vmatpush1.msra.mxu0 0.0
    %140 = vmatprep.subr.mxu0 0.0
    %141 = vmatpush1.msra.mxu0 0.0
    %142 = vmatprep.subr.mxu0 0.0
    %143 = vmatpush1.msra.mxu0 0.0
    %144 = vmatprep.subr.mxu0 0.0
    %145 = vmatpush1.msra.mxu0 0.0
    %146 = vmatprep.subr.mxu0 0.0
    %147 = vmatpush1.msra.mxu0 0.0
    %148 = vmatprep.subr.mxu0 0.0
    %149 = vmatpush1.msra.mxu0 0.0
    %150 = vmatprep.subr.mxu0 0.0
    %151 = vmatpush1.msra.mxu0 0.0
    %152 = vmatprep.subr.mxu0 0.0
    %153 = vmatpush1.msra.mxu0 0.0
    %154 = vmatprep.subr.mxu0 0.0
    %155 = vmatpush1.msra.mxu0 %v66
    %156 = vmatprep.subr.mxu0 0.0
    %157 = vmatpush2.msra.mxu0 0.0
    %158 = vmatprep.subr.mxu0 0.0
    %159 = vmatpush2.msra.mxu0 0.0
    %160 = vmatprep.subr.mxu0 0.0
    %161 = vmatpush2.msra.mxu0 0.0
    %162 = vmatprep.subr.mxu0 0.0
    %163 = vmatpush2.msra.mxu0 0.0
    %164 = vmatprep.subr.mxu0 0.0
    %165 = vmatpush2.msra.mxu0 0.0
    %166 = vmatprep.subr.mxu0 0.0
    %167 = vmatpush2.msra.mxu0 0.0
    %168 = vmatprep.subr.mxu0 0.0
    %169 = vmatpush2.msra.mxu0 0.0
    %170 = vmatprep.subr.mxu0 0.0
    %171 = vmatpush2.msra.mxu0 0.0
    %172 = vmatprep.subr.mxu0 0.0
    %173 = vmatpush2.msra.mxu0 0.0
    %174 = vmatprep.subr.mxu0 0.0
    %175 = vmatpush2.msra.mxu0 0.0
    %176 = vmatprep.subr.mxu0 0.0
    %177 = vmatpush2.msra.mxu0 0.0
    %178 = vmatprep.subr.mxu0 0.0
    %179 = vmatpush2.msra.mxu0 0.0
    %180 = vmatprep.subr.mxu0 0.0
    %181 = vmatpush2.msra.mxu0 0.0
    %182 = vmatprep.subr.mxu0 0.0
    %183 = vmatpush2.msra.mxu0 0.0
    %184 = vmatprep.subr.mxu0 0.0
    %185 = vmatpush2.msra.mxu0 0.0
    %186 = vmatprep.subr.mxu0 0.0
    %187 = vmatpush2.msra.mxu0 0.0
    %188 = vmatprep.mubr.f32.mxu0 0.0
    %189 = vmatmul.mubr.f32.gmra.mxu0 %v101
    %v190 = vpop.f32.mrf.mxu0
    %v191 = vadd.f32 %v98, %v190
    %v192 = vpop.f32.mrf.mxu0
    %193 = vmatprep.mubr.f32.mxu0 0.0
    %194 = vmatmul.mubr.f32.gmra.mxu0 %v104
    %v195 = vpop.f32.mrf.mxu0
    %v196 = vadd.f32 %v98, %v195
    %v197 = vpop.f32.mrf.mxu0
    %198 = vmatprep.mubr.f32.mxu0 0.0
    %199 = vmatmul.mubr.f32.gmra.mxu0 %v107
    %v200 = vpop.f32.mrf.mxu0
    %v201 = vadd.f32 %v98, %v200
    %v202 = vpop.f32.mrf.mxu0
    %203 = vmatprep.mubr.f32.mxu0 0.0
    %204 = vmatmul.mubr.f32.gmra.mxu0 %v110
    %v205 = vpop.f32.mrf.mxu0
    %v206 = vadd.f32 %v98, %v205
    %v207 = vpop.f32.mrf.mxu0
    %208 = vmatprep.mubr.f32.mxu0 0.0
    %209 = vmatmul.mubr.f32.gmra.mxu0 %v113
    %v210 = vpop.f32.mrf.mxu0
    %v211 = vadd.f32 %v98, %v210
    %v212 = vpop.f32.mrf.mxu0
    %213 = vmatprep.mubr.f32.mxu0 0.0
    %214 = vmatmul.mubr.f32.gmra.mxu0 %v116
    %v215 = vpop.f32.mrf.mxu0
    %v216 = vadd.f32 %v98, %v215
    %v217 = vpop.f32.mrf.mxu0
    %218 = vmatprep.mubr.f32.mxu0 0.0
    %219 = vmatmul.mubr.f32.gmra.mxu0 %v119
    %v220 = vpop.f32.mrf.mxu0
    %v221 = vadd.f32 %v98, %v220
    %v222 = vpop.f32.mrf.mxu0
    %223 = vmatprep.mubr.f32.mxu0 0.0
    %224 = vmatmul.mubr.f32.gmra.mxu0 %v122
    %v225 = vpop.f32.mrf.mxu0
    %v226 = vadd.f32 %v98, %v225
    %v227 = vpop.f32.mrf.mxu0
    %228 = vdwg.mxu0
    %230 = vset.pattern.permute.xlu0 0
    %231 = vperm.xlu0 %230, %v94
    %v232 = vpop.permute.xlu0 %231
    %v234 = vlaneseq
    %v235 = vshrl.u32 %v234, 7
    %v236 = vsub.s32 0, %v235
    %v237 = vrot.slane %v68, %v236
    %v238 = vmul.f32 %v232, %v237
    %v239 = vlaneseq
    %v240 = vshrl.u32 %v239, 7
    %v241 = vsub.s32 0, %v240
    %v242 = vrot.slane %v69, %v241
    %v243 = vadd.f32 %v238, %v242
    %vm244 = vcmask 261120
    %245 = vst.msk [vmem:[#allocation2] sm:$0xff] %vm244, %v191
    %246 = vst.msk [vmem:[#allocation2 + $0x8] sm:$0xff] %vm244, %v196
    %247 = vst.msk [vmem:[#allocation2 + $0x10] sm:$0xff] %vm244, %v201
    %248 = vst.msk [vmem:[#allocation2 + $0x18] sm:$0xff] %vm244, %v206
    %249 = vst.msk [vmem:[#allocation2 + $0x20] sm:$0xff] %vm244, %v211
    %250 = vst.msk [vmem:[#allocation2 + $0x28] sm:$0xff] %vm244, %v216
    %251 = vst.msk [vmem:[#allocation2 + $0x30] sm:$0xff] %vm244, %v221
    %252 = vst.msk [vmem:[#allocation2 + $0x38] sm:$0xff] %vm244, %v226
    %vm253 = vcmask 1043456
    %v254 = vsel %vm253, %v243, 0.0
    %255 = vst.msk [vmem:[#allocation2 + $0x40] sm:$0xff] %vm244, %v254
    %256 = vst.msk [vmem:[#allocation2 + $0x48] sm:$0xff] %vm244, 0.0
    %257 = vst.msk [vmem:[#allocation2 + $0x50] sm:$0xff] %vm244, 0.0
    %258 = vst.msk [vmem:[#allocation2 + $0x58] sm:$0xff] %vm244, 0.0
    %259 = vst.msk [vmem:[#allocation2 + $0x60] sm:$0xff] %vm244, 0.0
    %260 = vst.msk [vmem:[#allocation2 + $0x68] sm:$0xff] %vm244, 0.0
    %261 = vst.msk [vmem:[#allocation2 + $0x70] sm:$0xff] %vm244, 0.0
    %262 = vst.msk [vmem:[#allocation2 + $0x78] sm:$0xff] %vm244, 0.0
    %s263 = scalar_lea.vmem %s0, 72
    %v264 = vld [vmem:[%s263] sm:$0xff]
    %v265 = vld [vmem:[%s263 + $0x8] sm:$0xff]
    %v266 = vld [vmem:[%s263 + $0x10] sm:$0xff]
    %v267 = vld [vmem:[%s263 + $0x18] sm:$0xff]
    %v268 = vld [vmem:[%s263 + $0x20] sm:$0xff]
    %v269 = vld [vmem:[%s263 + $0x28] sm:$0xff]
    %v270 = vld [vmem:[%s263 + $0x30] sm:$0xff]
    %v271 = vld [vmem:[%s263 + $0x38] sm:$0xff]
    %v272 = vld [vmem:[%s263 + $0x40] sm:$0xff]
    %v274 = vsel %vm99, %v264, 0
    %v277 = vsel %vm99, %v265, 0
    %v280 = vsel %vm99, %v266, 0
    %v283 = vsel %vm99, %v267, 0
    %v286 = vsel %vm99, %v268, 0
    %v289 = vsel %vm99, %v269, 0
    %v292 = vsel %vm99, %v270, 0
    %v295 = vsel %vm99, %v271, 0
    %297 = vmatprep.subr.mxu0 0.0
    %298 = vmatpush1.msra.mxu0 0.0
    %299 = vmatprep.subr.mxu0 0.0
    %300 = vmatpush1.msra.mxu0 0.0
    %301 = vmatprep.subr.mxu0 0.0
    %302 = vmatpush1.msra.mxu0 0.0
    %303 = vmatprep.subr.mxu0 0.0
    %304 = vmatpush1.msra.mxu0 0.0
    %305 = vmatprep.subr.mxu0 0.0
    %306 = vmatpush1.msra.mxu0 0.0
    %307 = vmatprep.subr.mxu0 0.0
    %308 = vmatpush1.msra.mxu0 0.0
    %309 = vmatprep.subr.mxu0 0.0
    %310 = vmatpush1.msra.mxu0 0.0
    %311 = vmatprep.subr.mxu0 0.0
    %312 = vmatpush1.msra.mxu0 0.0
    %313 = vmatprep.subr.mxu0 0.0
    %314 = vmatpush1.msra.mxu0 0.0
    %315 = vmatprep.subr.mxu0 0.0
    %316 = vmatpush1.msra.mxu0 0.0
    %317 = vmatprep.subr.mxu0 0.0
    %318 = vmatpush1.msra.mxu0 0.0
    %319 = vmatprep.subr.mxu0 0.0
    %320 = vmatpush1.msra.mxu0 0.0
    %321 = vmatprep.subr.mxu0 0.0
    %322 = vmatpush1.msra.mxu0 0.0
    %323 = vmatprep.subr.mxu0 0.0
    %324 = vmatpush1.msra.mxu0 0.0
    %325 = vmatprep.subr.mxu0 0.0
    %326 = vmatpush1.msra.mxu0 0.0
    %327 = vmatprep.subr.mxu0 0.0
    %328 = vmatpush1.msra.mxu0 %v66
    %329 = vmatprep.subr.mxu0 0.0
    %330 = vmatpush2.msra.mxu0 0.0
    %331 = vmatprep.subr.mxu0 0.0
    %332 = vmatpush2.msra.mxu0 0.0
    %333 = vmatprep.subr.mxu0 0.0
    %334 = vmatpush2.msra.mxu0 0.0
    %335 = vmatprep.subr.mxu0 0.0
    %336 = vmatpush2.msra.mxu0 0.0
    %337 = vmatprep.subr.mxu0 0.0
    %338 = vmatpush2.msra.mxu0 0.0
    %339 = vmatprep.subr.mxu0 0.0
    %340 = vmatpush2.msra.mxu0 0.0
    %341 = vmatprep.subr.mxu0 0.0
    %342 = vmatpush2.msra.mxu0 0.0
    %343 = vmatprep.subr.mxu0 0.0
    %344 = vmatpush2.msra.mxu0 0.0
    %345 = vmatprep.subr.mxu0 0.0
    %346 = vmatpush2.msra.mxu0 0.0
    %347 = vmatprep.subr.mxu0 0.0
    %348 = vmatpush2.msra.mxu0 0.0
    %349 = vmatprep.subr.mxu0 0.0
    %350 = vmatpush2.msra.mxu0 0.0
    %351 = vmatprep.subr.mxu0 0.0
    %352 = vmatpush2.msra.mxu0 0.0
    %353 = vmatprep.subr.mxu0 0.0
    %354 = vmatpush2.msra.mxu0 0.0
    %355 = vmatprep.subr.mxu0 0.0
    %356 = vmatpush2.msra.mxu0 0.0
    %357 = vmatprep.subr.mxu0 0.0
    %358 = vmatpush2.msra.mxu0 0.0
    %359 = vmatprep.subr.mxu0 0.0
    %360 = vmatpush2.msra.mxu0 0.0
    %361 = vmatprep.mubr.f32.mxu0 0.0
    %362 = vmatmul.mubr.f32.gmra.mxu0 %v274
    %v363 = vpop.f32.mrf.mxu0
    %v364 = vadd.f32 %v98, %v363
    %v365 = vpop.f32.mrf.mxu0
    %366 = vmatprep.mubr.f32.mxu0 0.0
    %367 = vmatmul.mubr.f32.gmra.mxu0 %v277
    %v368 = vpop.f32.mrf.mxu0
    %v369 = vadd.f32 %v98, %v368
    %v370 = vpop.f32.mrf.mxu0
    %371 = vmatprep.mubr.f32.mxu0 0.0
    %372 = vmatmul.mubr.f32.gmra.mxu0 %v280
    %v373 = vpop.f32.mrf.mxu0
    %v374 = vadd.f32 %v98, %v373
    %v375 = vpop.f32.mrf.mxu0
    %376 = vmatprep.mubr.f32.mxu0 0.0
    %377 = vmatmul.mubr.f32.gmra.mxu0 %v283
    %v378 = vpop.f32.mrf.mxu0
    %v379 = vadd.f32 %v98, %v378
    %v380 = vpop.f32.mrf.mxu0
    %381 = vmatprep.mubr.f32.mxu0 0.0
    %382 = vmatmul.mubr.f32.gmra.mxu0 %v286
    %v383 = vpop.f32.mrf.mxu0
    %v384 = vadd.f32 %v98, %v383
    %v385 = vpop.f32.mrf.mxu0
    %386 = vmatprep.mubr.f32.mxu0 0.0
    %387 = vmatmul.mubr.f32.gmra.mxu0 %v289
    %v388 = vpop.f32.mrf.mxu0
    %v389 = vadd.f32 %v98, %v388
    %v390 = vpop.f32.mrf.mxu0
    %391 = vmatprep.mubr.f32.mxu0 0.0
    %392 = vmatmul.mubr.f32.gmra.mxu0 %v292
    %v393 = vpop.f32.mrf.mxu0
    %v394 = vadd.f32 %v98, %v393
    %v395 = vpop.f32.mrf.mxu0
    %396 = vmatprep.mubr.f32.mxu0 0.0
    %397 = vmatmul.mubr.f32.gmra.mxu0 %v295
    %v398 = vpop.f32.mrf.mxu0
    %v399 = vadd.f32 %v98, %v398
    %v400 = vpop.f32.mrf.mxu0
    %401 = vdwg.mxu0
    %403 = vset.pattern.permute.xlu0 0
    %404 = vperm.xlu0 %403, %v272
    %v405 = vpop.permute.xlu0 %404
    %v407 = vmul.f32 %v405, %v237
    %v408 = vadd.f32 %v407, %v242
    %s409 = scalar_lea.vmem [#allocation2], 128
    %410 = vst.msk [vmem:[%s409] sm:$0xff] %vm244, %v364
    %411 = vst.msk [vmem:[%s409 + $0x8] sm:$0xff] %vm244, %v369
    %412 = vst.msk [vmem:[%s409 + $0x10] sm:$0xff] %vm244, %v374
    %413 = vst.msk [vmem:[%s409 + $0x18] sm:$0xff] %vm244, %v379
    %414 = vst.msk [vmem:[%s409 + $0x20] sm:$0xff] %vm244, %v384
    %415 = vst.msk [vmem:[%s409 + $0x28] sm:$0xff] %vm244, %v389
    %416 = vst.msk [vmem:[%s409 + $0x30] sm:$0xff] %vm244, %v394
    %417 = vst.msk [vmem:[%s409 + $0x38] sm:$0xff] %vm244, %v399
    %v418 = vsel %vm253, %v408, 0.0
    %419 = vst.msk [vmem:[%s409 + $0x40] sm:$0xff] %vm244, %v418
    %420 = vst.msk [vmem:[%s409 + $0x48] sm:$0xff] %vm244, 0.0
    %421 = vst.msk [vmem:[%s409 + $0x50] sm:$0xff] %vm244, 0.0
    %422 = vst.msk [vmem:[%s409 + $0x58] sm:$0xff] %vm244, 0.0
    %423 = vst.msk [vmem:[%s409 + $0x60] sm:$0xff] %vm244, 0.0
    %424 = vst.msk [vmem:[%s409 + $0x68] sm:$0xff] %vm244, 0.0
    %425 = vst.msk [vmem:[%s409 + $0x70] sm:$0xff] %vm244, 0.0
    %426 = vst.msk [vmem:[%s409 + $0x78] sm:$0xff] %vm244, 0.0
    %v427 = vld [vmem:[%s2] sm:$0xff]
    %v428 = vld [vmem:[%s2 + $0x8] sm:$0xff]
    %v429 = vld [vmem:[%s2 + $0x10] sm:$0xff]
    %v430 = vld [vmem:[%s2 + $0x18] sm:$0xff]
    %v431 = vld [vmem:[%s2 + $0x20] sm:$0xff]
    %v432 = vld [vmem:[%s2 + $0x28] sm:$0xff]
    %v433 = vld [vmem:[%s2 + $0x30] sm:$0xff]
    %v434 = vld [vmem:[%s2 + $0x38] sm:$0xff]
    %v435 = vld [vmem:[%s3 + $0x10] sm:$0x1]
    %v436 = vld [vmem:[%s3 + $0x11] sm:$0x1]
    %v437 = vlaneseq
    %v438 = vshrl.u32 %v437, 7
    %v439 = vsub.s32 0, %v438
    %v440 = vrot.slane %v436, %v439
    %v441 = vmul.f32 %v35, %v440
    %v442 = vmul.f32 %v37, %v440
    %v443 = vmul.f32 %v39, %v440
    %v444 = vmul.f32 %v41, %v440
    %v445 = vmul.f32 %v43, %v440
    %v446 = vmul.f32 %v45, %v440
    %v447 = vmul.f32 %v47, %v440
    %v448 = vmul.f32 %v49, %v440
    %v449 = vmul.f32 %v51, %v440
    %v450 = vmul.f32 %v53, %v440
    %v451 = vmul.f32 %v55, %v440
    %v452 = vmul.f32 %v57, %v440
    %v453 = vmul.f32 %v59, %v440
    %v454 = vmul.f32 %v61, %v440
    %v455 = vmul.f32 %v63, %v440
    %v456 = vmul.f32 %v65, %v440
    %v457 = vlaneseq
    %v458 = vshrl.u32 %v457, 7
    %v459 = vsub.s32 0, %v458
    %v460 = vrot.slane %v435, %v459
    %v461 = vadd.f32 %v460, %v441
    %v462 = vadd.f32 %v460, %v442
    %v463 = vadd.f32 %v460, %v443
    %v464 = vadd.f32 %v460, %v444
    %v465 = vadd.f32 %v460, %v445
    %v466 = vadd.f32 %v460, %v446
    %v467 = vadd.f32 %v460, %v447
    %v468 = vadd.f32 %v460, %v448
    %v469 = vadd.f32 %v460, %v449
    %v470 = vadd.f32 %v460, %v450
    %v471 = vadd.f32 %v460, %v451
    %v472 = vadd.f32 %v460, %v452
    %v473 = vadd.f32 %v460, %v453
    %v474 = vadd.f32 %v460, %v454
    %v475 = vadd.f32 %v460, %v455
    %v476 = vadd.f32 %v460, %v456
    %v477 = vld [vmem:[#allocation2] sm:$0xff]
    %v478 = vld [vmem:[#allocation2 + $0x8] sm:$0xff]
    %v479 = vld [vmem:[#allocation2 + $0x10] sm:$0xff]
    %v480 = vld [vmem:[#allocation2 + $0x18] sm:$0xff]
    %v481 = vld [vmem:[#allocation2 + $0x20] sm:$0xff]
    %v482 = vld [vmem:[#allocation2 + $0x28] sm:$0xff]
    %v483 = vld [vmem:[#allocation2 + $0x30] sm:$0xff]
    %v484 = vld [vmem:[#allocation2 + $0x38] sm:$0xff]
    %v485 = vld [vmem:[#allocation2 + $0x40] sm:$0xff]
    %v486 = vld [vmem:[#allocation2 + $0x48] sm:$0xff]
    %v487 = vld [vmem:[#allocation2 + $0x50] sm:$0xff]
    %v488 = vld [vmem:[#allocation2 + $0x58] sm:$0xff]
    %v489 = vld [vmem:[#allocation2 + $0x60] sm:$0xff]
    %v490 = vld [vmem:[#allocation2 + $0x68] sm:$0xff]
    %v491 = vld [vmem:[#allocation2 + $0x70] sm:$0xff]
    %v492 = vld [vmem:[#allocation2 + $0x78] sm:$0xff]
    %493 = vmatprep.subr.mxu0 0.0
    %494 = vmatpush1.msra.mxu0 %v492
    %495 = vmatprep.subr.mxu0 0.0
    %496 = vmatpush1.msra.mxu0 %v491
    %497 = vmatprep.subr.mxu0 0.0
    %498 = vmatpush1.msra.mxu0 %v490
    %499 = vmatprep.subr.mxu0 0.0
    %500 = vmatpush1.msra.mxu0 %v489
    %501 = vmatprep.subr.mxu0 0.0
    %502 = vmatpush1.msra.mxu0 %v488
    %503 = vmatprep.subr.mxu0 0.0
    %504 = vmatpush1.msra.mxu0 %v487
    %505 = vmatprep.subr.mxu0 0.0
    %506 = vmatpush1.msra.mxu0 %v486
    %507 = vmatprep.subr.mxu0 0.0
    %508 = vmatpush1.msra.mxu0 %v485
    %509 = vmatprep.subr.mxu0 0.0
    %510 = vmatpush1.msra.mxu0 %v484
    %511 = vmatprep.subr.mxu0 0.0
    %512 = vmatpush1.msra.mxu0 %v483
    %513 = vmatprep.subr.mxu0 0.0
    %514 = vmatpush1.msra.mxu0 %v482
    %515 = vmatprep.subr.mxu0 0.0
    %516 = vmatpush1.msra.mxu0 %v481
    %517 = vmatprep.subr.mxu0 0.0
    %518 = vmatpush1.msra.mxu0 %v480
    %519 = vmatprep.subr.mxu0 0.0
    %520 = vmatpush1.msra.mxu0 %v479
    %521 = vmatprep.subr.mxu0 0.0
    %522 = vmatpush1.msra.mxu0 %v478
    %523 = vmatprep.subr.mxu0 0.0
    %524 = vmatpush1.msra.mxu0 %v477
    %525 = vmatprep.subr.mxu0 0.0
    %526 = vmatpush2.msra.mxu0 0.0
    %527 = vmatprep.subr.mxu0 0.0
    %528 = vmatpush2.msra.mxu0 0.0
    %529 = vmatprep.subr.mxu0 0.0
    %530 = vmatpush2.msra.mxu0 0.0
    %531 = vmatprep.subr.mxu0 0.0
    %532 = vmatpush2.msra.mxu0 0.0
    %533 = vmatprep.subr.mxu0 0.0
    %534 = vmatpush2.msra.mxu0 0.0
    %535 = vmatprep.subr.mxu0 0.0
    %536 = vmatpush2.msra.mxu0 0.0
    %537 = vmatprep.subr.mxu0 0.0
    %538 = vmatpush2.msra.mxu0 0.0
    %539 = vmatprep.subr.mxu0 0.0
    %540 = vmatpush2.msra.mxu0 0.0
    %541 = vmatprep.subr.mxu0 0.0
    %542 = vmatpush2.msra.mxu0 0.0
    %543 = vmatprep.subr.mxu0 0.0
    %544 = vmatpush2.msra.mxu0 0.0
    %545 = vmatprep.subr.mxu0 0.0
    %546 = vmatpush2.msra.mxu0 0.0
    %547 = vmatprep.subr.mxu0 0.0
    %548 = vmatpush2.msra.mxu0 0.0
    %549 = vmatprep.subr.mxu0 0.0
    %550 = vmatpush2.msra.mxu0 0.0
    %551 = vmatprep.subr.mxu0 0.0
    %552 = vmatpush2.msra.mxu0 0.0
    %553 = vmatprep.subr.mxu0 0.0
    %554 = vmatpush2.msra.mxu0 0.0
    %555 = vmatprep.subr.mxu0 0.0
    %556 = vmatpush2.msra.mxu0 0.0
    %557 = vmatprep.mubr.f32.mxu0 0.0
    %558 = vmatmul.mubr.f32.gmra.mxu0 %v18
    %v559 = vpop.f32.mrf.mxu0
    %v560 = vadd.f32 0.0, %v559
    %v561 = vpop.f32.mrf.mxu0
    %562 = vmatprep.mubr.f32.mxu0 0.0
    %563 = vmatmul.mubr.f32.gmra.mxu0 %v19
    %v564 = vpop.f32.mrf.mxu0
    %v565 = vadd.f32 0.0, %v564
    %v566 = vpop.f32.mrf.mxu0
    %567 = vmatprep.mubr.f32.mxu0 0.0
    %568 = vmatmul.mubr.f32.gmra.mxu0 %v20
    %v569 = vpop.f32.mrf.mxu0
    %v570 = vadd.f32 0.0, %v569
    %v571 = vpop.f32.mrf.mxu0
    %572 = vmatprep.mubr.f32.mxu0 0.0
    %573 = vmatmul.mubr.f32.gmra.mxu0 %v21
    %v574 = vpop.f32.mrf.mxu0
    %v575 = vadd.f32 0.0, %v574
    %v576 = vpop.f32.mrf.mxu0
    %577 = vmatprep.mubr.f32.mxu0 0.0
    %578 = vmatmul.mubr.f32.gmra.mxu0 %v22
    %v579 = vpop.f32.mrf.mxu0
    %v580 = vadd.f32 0.0, %v579
    %v581 = vpop.f32.mrf.mxu0
    %582 = vmatprep.mubr.f32.mxu0 0.0
    %583 = vmatmul.mubr.f32.gmra.mxu0 %v23
    %v584 = vpop.f32.mrf.mxu0
    %v585 = vadd.f32 0.0, %v584
    %v586 = vpop.f32.mrf.mxu0
    %587 = vmatprep.mubr.f32.mxu0 0.0
    %588 = vmatmul.mubr.f32.gmra.mxu0 %v24
    %v589 = vpop.f32.mrf.mxu0
    %v590 = vadd.f32 0.0, %v589
    %v591 = vpop.f32.mrf.mxu0
    %592 = vmatprep.mubr.f32.mxu0 0.0
    %593 = vmatmul.mubr.f32.gmra.mxu0 %v25
    %v594 = vpop.f32.mrf.mxu0
    %v595 = vadd.f32 0.0, %v594
    %v596 = vpop.f32.mrf.mxu0
    %597 = vmatprep.mubr.f32.mxu0 0.0
    %598 = vmatmul.mubr.f32.gmra.mxu0 %v26
    %v599 = vpop.f32.mrf.mxu0
    %v600 = vadd.f32 0.0, %v599
    %v601 = vpop.f32.mrf.mxu0
    %602 = vmatprep.mubr.f32.mxu0 0.0
    %603 = vmatmul.mubr.f32.gmra.mxu0 %v27
    %v604 = vpop.f32.mrf.mxu0
    %v605 = vadd.f32 0.0, %v604
    %v606 = vpop.f32.mrf.mxu0
    %607 = vmatprep.mubr.f32.mxu0 0.0
    %608 = vmatmul.mubr.f32.gmra.mxu0 %v28
    %v609 = vpop.f32.mrf.mxu0
    %v610 = vadd.f32 0.0, %v609
    %v611 = vpop.f32.mrf.mxu0
    %612 = vmatprep.mubr.f32.mxu0 0.0
    %613 = vmatmul.mubr.f32.gmra.mxu0 %v29
    %v614 = vpop.f32.mrf.mxu0
    %v615 = vadd.f32 0.0, %v614
    %v616 = vpop.f32.mrf.mxu0
    %617 = vmatprep.mubr.f32.mxu0 0.0
    %618 = vmatmul.mubr.f32.gmra.mxu0 %v30
    %v619 = vpop.f32.mrf.mxu0
    %v620 = vadd.f32 0.0, %v619
    %v621 = vpop.f32.mrf.mxu0
    %622 = vmatprep.mubr.f32.mxu0 0.0
    %623 = vmatmul.mubr.f32.gmra.mxu0 %v31
    %v624 = vpop.f32.mrf.mxu0
    %v625 = vadd.f32 0.0, %v624
    %v626 = vpop.f32.mrf.mxu0
    %627 = vmatprep.mubr.f32.mxu0 0.0
    %628 = vmatmul.mubr.f32.gmra.mxu0 %v32
    %v629 = vpop.f32.mrf.mxu0
    %v630 = vadd.f32 0.0, %v629
    %v631 = vpop.f32.mrf.mxu0
    %632 = vmatprep.mubr.f32.mxu0 0.0
    %633 = vmatmul.mubr.f32.gmra.mxu0 %v33
    %v634 = vpop.f32.mrf.mxu0
    %v635 = vadd.f32 0.0, %v634
    %v636 = vpop.f32.mrf.mxu0
    %637 = vdwg.mxu0
    %654 = vrot.lane.b32.xlu0 %v560, 32
    %v655 = vpop.permute.xlu0 %654
    %656 = vrot.lane.b32.xlu0 %v565, 32
    %v657 = vpop.permute.xlu0 %656
    %658 = vrot.lane.b32.xlu0 %v570, 32
    %v659 = vpop.permute.xlu0 %658
    %660 = vrot.lane.b32.xlu0 %v575, 32
    %v661 = vpop.permute.xlu0 %660
    %662 = vrot.lane.b32.xlu0 %v580, 32
    %v663 = vpop.permute.xlu0 %662
    %664 = vrot.lane.b32.xlu0 %v585, 32
    %v665 = vpop.permute.xlu0 %664
    %666 = vrot.lane.b32.xlu0 %v590, 32
    %v667 = vpop.permute.xlu0 %666
    %668 = vrot.lane.b32.xlu0 %v595, 32
    %v669 = vpop.permute.xlu0 %668
    %670 = vrot.lane.b32.xlu0 %v600, 32
    %v671 = vpop.permute.xlu0 %670
    %672 = vrot.lane.b32.xlu0 %v605, 32
    %v673 = vpop.permute.xlu0 %672
    %674 = vrot.lane.b32.xlu0 %v610, 32
    %v675 = vpop.permute.xlu0 %674
    %676 = vrot.lane.b32.xlu0 %v615, 32
    %v677 = vpop.permute.xlu0 %676
    %678 = vrot.lane.b32.xlu0 %v620, 32
    %v679 = vpop.permute.xlu0 %678
    %680 = vrot.lane.b32.xlu0 %v625, 32
    %v681 = vpop.permute.xlu0 %680
    %682 = vrot.lane.b32.xlu0 %v630, 32
    %v683 = vpop.permute.xlu0 %682
    %684 = vrot.lane.b32.xlu0 %v635, 32
    %v685 = vpop.permute.xlu0 %684
    %v702 = vsel %vm244, %v477, %v655
    %v703 = vsel %vm244, %v478, %v657
    %v704 = vsel %vm244, %v479, %v659
    %v705 = vsel %vm244, %v480, %v661
    %v706 = vsel %vm244, %v481, %v663
    %v707 = vsel %vm244, %v482, %v665
    %v708 = vsel %vm244, %v483, %v667
    %v709 = vsel %vm244, %v484, %v669
    %v710 = vsel %vm244, %v485, %v671
    %v711 = vsel %vm244, %v486, %v673
    %v712 = vsel %vm244, %v487, %v675
    %v713 = vsel %vm244, %v488, %v677
    %v714 = vsel %vm244, %v489, %v679
    %v715 = vsel %vm244, %v490, %v681
    %v716 = vsel %vm244, %v491, %v683
    %v717 = vsel %vm244, %v492, %v685
    %vm718 = vcmask 523264
    %v720 = vsel %vm718, %v702, 0
    %v723 = vsel %vm718, %v703, 0
    %v726 = vsel %vm718, %v704, 0
    %v729 = vsel %vm718, %v705, 0
    %v732 = vsel %vm718, %v706, 0
    %v735 = vsel %vm718, %v707, 0
    %v738 = vsel %vm718, %v708, 0
    %v741 = vsel %vm718, %v709, 0
    %v744 = vsel %vm718, %v710, 0
    %v747 = vsel %vm718, %v711, 0
    %v750 = vsel %vm718, %v712, 0
    %v753 = vsel %vm718, %v713, 0
    %v756 = vsel %vm718, %v714, 0
    %v759 = vsel %vm718, %v715, 0
    %v762 = vsel %vm718, %v716, 0
    %v765 = vsel %vm718, %v717, 0
    %767 = vmatprep.subr.mxu0 0.0
    %768 = vmatpush1.msra.mxu0 0.0
    %769 = vmatprep.subr.mxu0 0.0
    %770 = vmatpush1.msra.mxu0 0.0
    %771 = vmatprep.subr.mxu0 0.0
    %772 = vmatpush1.msra.mxu0 0.0
    %773 = vmatprep.subr.mxu0 0.0
    %774 = vmatpush1.msra.mxu0 0.0
    %775 = vmatprep.subr.mxu0 0.0
    %776 = vmatpush1.msra.mxu0 0.0
    %777 = vmatprep.subr.mxu0 0.0
    %778 = vmatpush1.msra.mxu0 0.0
    %779 = vmatprep.subr.mxu0 0.0
    %780 = vmatpush1.msra.mxu0 0.0
    %781 = vmatprep.subr.mxu0 0.0
    %782 = vmatpush1.msra.mxu0 0.0
    %783 = vmatprep.subr.mxu0 0.0
    %784 = vmatpush1.msra.mxu0 %v434
    %785 = vmatprep.subr.mxu0 0.0
    %786 = vmatpush1.msra.mxu0 %v433
    %787 = vmatprep.subr.mxu0 0.0
    %788 = vmatpush1.msra.mxu0 %v432
    %789 = vmatprep.subr.mxu0 0.0
    %790 = vmatpush1.msra.mxu0 %v431
    %791 = vmatprep.subr.mxu0 0.0
    %792 = vmatpush1.msra.mxu0 %v430
    %793 = vmatprep.subr.mxu0 0.0
    %794 = vmatpush1.msra.mxu0 %v429
    %795 = vmatprep.subr.mxu0 0.0
    %796 = vmatpush1.msra.mxu0 %v428
    %797 = vmatprep.subr.mxu0 0.0
    %798 = vmatpush1.msra.mxu0 %v427
    %799 = vmatprep.subr.mxu0 0.0
    %800 = vmatpush2.msra.mxu0 0.0
    %801 = vmatprep.subr.mxu0 0.0
    %802 = vmatpush2.msra.mxu0 0.0
    %803 = vmatprep.subr.mxu0 0.0
    %804 = vmatpush2.msra.mxu0 0.0
    %805 = vmatprep.subr.mxu0 0.0
    %806 = vmatpush2.msra.mxu0 0.0
    %807 = vmatprep.subr.mxu0 0.0
    %808 = vmatpush2.msra.mxu0 0.0
    %809 = vmatprep.subr.mxu0 0.0
    %810 = vmatpush2.msra.mxu0 0.0
    %811 = vmatprep.subr.mxu0 0.0
    %812 = vmatpush2.msra.mxu0 0.0
    %813 = vmatprep.subr.mxu0 0.0
    %814 = vmatpush2.msra.mxu0 0.0
    %815 = vmatprep.subr.mxu0 0.0
    %816 = vmatpush2.msra.mxu0 0.0
    %817 = vmatprep.subr.mxu0 0.0
    %818 = vmatpush2.msra.mxu0 0.0
    %819 = vmatprep.subr.mxu0 0.0
    %820 = vmatpush2.msra.mxu0 0.0
    %821 = vmatprep.subr.mxu0 0.0
    %822 = vmatpush2.msra.mxu0 0.0
    %823 = vmatprep.subr.mxu0 0.0
    %824 = vmatpush2.msra.mxu0 0.0
    %825 = vmatprep.subr.mxu0 0.0
    %826 = vmatpush2.msra.mxu0 0.0
    %827 = vmatprep.subr.mxu0 0.0
    %828 = vmatpush2.msra.mxu0 0.0
    %829 = vmatprep.subr.mxu0 0.0
    %830 = vmatpush2.msra.mxu0 0.0
    %831 = vmatprep.mubr.f32.mxu0 0.0
    %832 = vmatmul.mubr.f32.gmra.mxu0 %v720
    %v833 = vpop.f32.mrf.mxu0
    %v834 = vadd.f32 %v461, %v833
    %v835 = vpop.f32.mrf.mxu0
    %836 = vmatprep.mubr.f32.mxu0 0.0
    %837 = vmatmul.mubr.f32.gmra.mxu0 %v723
    %v838 = vpop.f32.mrf.mxu0
    %v839 = vadd.f32 %v462, %v838
    %v840 = vpop.f32.mrf.mxu0
    %841 = vmatprep.mubr.f32.mxu0 0.0
    %842 = vmatmul.mubr.f32.gmra.mxu0 %v726
    %v843 = vpop.f32.mrf.mxu0
    %v844 = vadd.f32 %v463, %v843
    %v845 = vpop.f32.mrf.mxu0
    %846 = vmatprep.mubr.f32.mxu0 0.0
    %847 = vmatmul.mubr.f32.gmra.mxu0 %v729
    %v848 = vpop.f32.mrf.mxu0
    %v849 = vadd.f32 %v464, %v848
    %v850 = vpop.f32.mrf.mxu0
    %851 = vmatprep.mubr.f32.mxu0 0.0
    %852 = vmatmul.mubr.f32.gmra.mxu0 %v732
    %v853 = vpop.f32.mrf.mxu0
    %v854 = vadd.f32 %v465, %v853
    %v855 = vpop.f32.mrf.mxu0
    %856 = vmatprep.mubr.f32.mxu0 0.0
    %857 = vmatmul.mubr.f32.gmra.mxu0 %v735
    %v858 = vpop.f32.mrf.mxu0
    %v859 = vadd.f32 %v466, %v858
    %v860 = vpop.f32.mrf.mxu0
    %861 = vmatprep.mubr.f32.mxu0 0.0
    %862 = vmatmul.mubr.f32.gmra.mxu0 %v738
    %v863 = vpop.f32.mrf.mxu0
    %v864 = vadd.f32 %v467, %v863
    %v865 = vpop.f32.mrf.mxu0
    %866 = vmatprep.mubr.f32.mxu0 0.0
    %867 = vmatmul.mubr.f32.gmra.mxu0 %v741
    %v868 = vpop.f32.mrf.mxu0
    %v869 = vadd.f32 %v468, %v868
    %v870 = vpop.f32.mrf.mxu0
    %871 = vmatprep.mubr.f32.mxu0 0.0
    %872 = vmatmul.mubr.f32.gmra.mxu0 %v744
    %v873 = vpop.f32.mrf.mxu0
    %v874 = vadd.f32 %v469, %v873
    %v875 = vpop.f32.mrf.mxu0
    %876 = vmatprep.mubr.f32.mxu0 0.0
    %877 = vmatmul.mubr.f32.gmra.mxu0 %v747
    %v878 = vpop.f32.mrf.mxu0
    %v879 = vadd.f32 %v470, %v878
    %v880 = vpop.f32.mrf.mxu0
    %881 = vmatprep.mubr.f32.mxu0 0.0
    %882 = vmatmul.mubr.f32.gmra.mxu0 %v750
    %v883 = vpop.f32.mrf.mxu0
    %v884 = vadd.f32 %v471, %v883
    %v885 = vpop.f32.mrf.mxu0
    %886 = vmatprep.mubr.f32.mxu0 0.0
    %887 = vmatmul.mubr.f32.gmra.mxu0 %v753
    %v888 = vpop.f32.mrf.mxu0
    %v889 = vadd.f32 %v472, %v888
    %v890 = vpop.f32.mrf.mxu0
    %891 = vmatprep.mubr.f32.mxu0 0.0
    %892 = vmatmul.mubr.f32.gmra.mxu0 %v756
    %v893 = vpop.f32.mrf.mxu0
    %v894 = vadd.f32 %v473, %v893
    %v895 = vpop.f32.mrf.mxu0
    %896 = vmatprep.mubr.f32.mxu0 0.0
    %897 = vmatmul.mubr.f32.gmra.mxu0 %v759
    %v898 = vpop.f32.mrf.mxu0
    %v899 = vadd.f32 %v474, %v898
    %v900 = vpop.f32.mrf.mxu0
    %901 = vmatprep.mubr.f32.mxu0 0.0
    %902 = vmatmul.mubr.f32.gmra.mxu0 %v762
    %v903 = vpop.f32.mrf.mxu0
    %v904 = vadd.f32 %v475, %v903
    %v905 = vpop.f32.mrf.mxu0
    %906 = vmatprep.mubr.f32.mxu0 0.0
    %907 = vmatmul.mubr.f32.gmra.mxu0 %v765
    %v908 = vpop.f32.mrf.mxu0
    %v909 = vadd.f32 %v476, %v908
    %v910 = vpop.f32.mrf.mxu0
    %911 = vdwg.mxu0
    %v912 = vmax.f32 %v834, 0.0
    %v913 = vmax.f32 %v839, 0.0
    %v914 = vmax.f32 %v844, 0.0
    %v915 = vmax.f32 %v849, 0.0
    %v916 = vmax.f32 %v854, 0.0
    %v917 = vmax.f32 %v859, 0.0
    %v918 = vmax.f32 %v864, 0.0
    %v919 = vmax.f32 %v869, 0.0
    %v920 = vmax.f32 %v874, 0.0
    %v921 = vmax.f32 %v879, 0.0
    %v922 = vmax.f32 %v884, 0.0
    %v923 = vmax.f32 %v889, 0.0
    %v924 = vmax.f32 %v894, 0.0
    %v925 = vmax.f32 %v899, 0.0
    %v926 = vmax.f32 %v904, 0.0
    %v927 = vmax.f32 %v909, 0.0
    %928 = vst.msk [vmem:[#allocation2] sm:$0xff] %vm244, %v912
    %929 = vst.msk [vmem:[#allocation2 + $0x8] sm:$0xff] %vm244, %v913
    %930 = vst.msk [vmem:[#allocation2 + $0x10] sm:$0xff] %vm244, %v914
    %931 = vst.msk [vmem:[#allocation2 + $0x18] sm:$0xff] %vm244, %v915
    %932 = vst.msk [vmem:[#allocation2 + $0x20] sm:$0xff] %vm244, %v916
    %933 = vst.msk [vmem:[#allocation2 + $0x28] sm:$0xff] %vm244, %v917
    %934 = vst.msk [vmem:[#allocation2 + $0x30] sm:$0xff] %vm244, %v918
    %935 = vst.msk [vmem:[#allocation2 + $0x38] sm:$0xff] %vm244, %v919
    %936 = vst.msk [vmem:[#allocation2 + $0x40] sm:$0xff] %vm244, %v920
    %937 = vst.msk [vmem:[#allocation2 + $0x48] sm:$0xff] %vm244, %v921
    %938 = vst.msk [vmem:[#allocation2 + $0x50] sm:$0xff] %vm244, %v922
    %939 = vst.msk [vmem:[#allocation2 + $0x58] sm:$0xff] %vm244, %v923
    %940 = vst.msk [vmem:[#allocation2 + $0x60] sm:$0xff] %vm244, %v924
    %941 = vst.msk [vmem:[#allocation2 + $0x68] sm:$0xff] %vm244, %v925
    %942 = vst.msk [vmem:[#allocation2 + $0x70] sm:$0xff] %vm244, %v926
    %943 = vst.msk [vmem:[#allocation2 + $0x78] sm:$0xff] %vm244, %v927
    %v944 = vld [vmem:[%s409] sm:$0xff]
    %v945 = vld [vmem:[%s409 + $0x8] sm:$0xff]
    %v946 = vld [vmem:[%s409 + $0x10] sm:$0xff]
    %v947 = vld [vmem:[%s409 + $0x18] sm:$0xff]
    %v948 = vld [vmem:[%s409 + $0x20] sm:$0xff]
    %v949 = vld [vmem:[%s409 + $0x28] sm:$0xff]
    %v950 = vld [vmem:[%s409 + $0x30] sm:$0xff]
    %v951 = vld [vmem:[%s409 + $0x38] sm:$0xff]
    %v952 = vld [vmem:[%s409 + $0x40] sm:$0xff]
    %v953 = vld [vmem:[%s409 + $0x48] sm:$0xff]
    %v954 = vld [vmem:[%s409 + $0x50] sm:$0xff]
    %v955 = vld [vmem:[%s409 + $0x58] sm:$0xff]
    %v956 = vld [vmem:[%s409 + $0x60] sm:$0xff]
    %v957 = vld [vmem:[%s409 + $0x68] sm:$0xff]
    %v958 = vld [vmem:[%s409 + $0x70] sm:$0xff]
    %v959 = vld [vmem:[%s409 + $0x78] sm:$0xff]
    %960 = vmatprep.subr.mxu0 0.0
    %961 = vmatpush1.msra.mxu0 %v959
    %962 = vmatprep.subr.mxu0 0.0
    %963 = vmatpush1.msra.mxu0 %v958
    %964 = vmatprep.subr.mxu0 0.0
    %965 = vmatpush1.msra.mxu0 %v957
    %966 = vmatprep.subr.mxu0 0.0
    %967 = vmatpush1.msra.mxu0 %v956
    %968 = vmatprep.subr.mxu0 0.0
    %969 = vmatpush1.msra.mxu0 %v955
    %970 = vmatprep.subr.mxu0 0.0
    %971 = vmatpush1.msra.mxu0 %v954
    %972 = vmatprep.subr.mxu0 0.0
    %973 = vmatpush1.msra.mxu0 %v953
    %974 = vmatprep.subr.mxu0 0.0
    %975 = vmatpush1.msra.mxu0 %v952
    %976 = vmatprep.subr.mxu0 0.0
    %977 = vmatpush1.msra.mxu0 %v951
    %978 = vmatprep.subr.mxu0 0.0
    %979 = vmatpush1.msra.mxu0 %v950
    %980 = vmatprep.subr.mxu0 0.0
    %981 = vmatpush1.msra.mxu0 %v949
    %982 = vmatprep.subr.mxu0 0.0
    %983 = vmatpush1.msra.mxu0 %v948
    %984 = vmatprep.subr.mxu0 0.0
    %985 = vmatpush1.msra.mxu0 %v947
    %986 = vmatprep.subr.mxu0 0.0
    %987 = vmatpush1.msra.mxu0 %v946
    %988 = vmatprep.subr.mxu0 0.0
    %989 = vmatpush1.msra.mxu0 %v945
    %990 = vmatprep.subr.mxu0 0.0
    %991 = vmatpush1.msra.mxu0 %v944
    %992 = vmatprep.subr.mxu0 0.0
    %993 = vmatpush2.msra.mxu0 0.0
    %994 = vmatprep.subr.mxu0 0.0
    %995 = vmatpush2.msra.mxu0 0.0
    %996 = vmatprep.subr.mxu0 0.0
    %997 = vmatpush2.msra.mxu0 0.0
    %998 = vmatprep.subr.mxu0 0.0
    %999 = vmatpush2.msra.mxu0 0.0
    %1000 = vmatprep.subr.mxu0 0.0
    %1001 = vmatpush2.msra.mxu0 0.0
    %1002 = vmatprep.subr.mxu0 0.0
    %1003 = vmatpush2.msra.mxu0 0.0
    %1004 = vmatprep.subr.mxu0 0.0
    %1005 = vmatpush2.msra.mxu0 0.0
    %1006 = vmatprep.subr.mxu0 0.0
    %1007 = vmatpush2.msra.mxu0 0.0
    %1008 = vmatprep.subr.mxu0 0.0
    %1009 = vmatpush2.msra.mxu0 0.0
    %1010 = vmatprep.subr.mxu0 0.0
    %1011 = vmatpush2.msra.mxu0 0.0
    %1012 = vmatprep.subr.mxu0 0.0
    %1013 = vmatpush2.msra.mxu0 0.0
    %1014 = vmatprep.subr.mxu0 0.0
    %1015 = vmatpush2.msra.mxu0 0.0
    %1016 = vmatprep.subr.mxu0 0.0
    %1017 = vmatpush2.msra.mxu0 0.0
    %1018 = vmatprep.subr.mxu0 0.0
    %1019 = vmatpush2.msra.mxu0 0.0
    %1020 = vmatprep.subr.mxu0 0.0
    %1021 = vmatpush2.msra.mxu0 0.0
    %1022 = vmatprep.subr.mxu0 0.0
    %1023 = vmatpush2.msra.mxu0 0.0
    %1024 = vmatprep.mubr.f32.mxu0 0.0
    %1025 = vmatmul.mubr.f32.gmra.mxu0 %v18
    %v1026 = vpop.f32.mrf.mxu0
    %v1027 = vadd.f32 0.0, %v1026
    %v1028 = vpop.f32.mrf.mxu0
    %1029 = vmatprep.mubr.f32.mxu0 0.0
    %1030 = vmatmul.mubr.f32.gmra.mxu0 %v19
    %v1031 = vpop.f32.mrf.mxu0
    %v1032 = vadd.f32 0.0, %v1031
    %v1033 = vpop.f32.mrf.mxu0
    %1034 = vmatprep.mubr.f32.mxu0 0.0
    %1035 = vmatmul.mubr.f32.gmra.mxu0 %v20
    %v1036 = vpop.f32.mrf.mxu0
    %v1037 = vadd.f32 0.0, %v1036
    %v1038 = vpop.f32.mrf.mxu0
    %1039 = vmatprep.mubr.f32.mxu0 0.0
    %1040 = vmatmul.mubr.f32.gmra.mxu0 %v21
    %v1041 = vpop.f32.mrf.mxu0
    %v1042 = vadd.f32 0.0, %v1041
    %v1043 = vpop.f32.mrf.mxu0
    %1044 = vmatprep.mubr.f32.mxu0 0.0
    %1045 = vmatmul.mubr.f32.gmra.mxu0 %v22
    %v1046 = vpop.f32.mrf.mxu0
    %v1047 = vadd.f32 0.0, %v1046
    %v1048 = vpop.f32.mrf.mxu0
    %1049 = vmatprep.mubr.f32.mxu0 0.0
    %1050 = vmatmul.mubr.f32.gmra.mxu0 %v23
    %v1051 = vpop.f32.mrf.mxu0
    %v1052 = vadd.f32 0.0, %v1051
    %v1053 = vpop.f32.mrf.mxu0
    %1054 = vmatprep.mubr.f32.mxu0 0.0
    %1055 = vmatmul.mubr.f32.gmra.mxu0 %v24
    %v1056 = vpop.f32.mrf.mxu0
    %v1057 = vadd.f32 0.0, %v1056
    %v1058 = vpop.f32.mrf.mxu0
    %1059 = vmatprep.mubr.f32.mxu0 0.0
    %1060 = vmatmul.mubr.f32.gmra.mxu0 %v25
    %v1061 = vpop.f32.mrf.mxu0
    %v1062 = vadd.f32 0.0, %v1061
    %v1063 = vpop.f32.mrf.mxu0
    %1064 = vmatprep.mubr.f32.mxu0 0.0
    %1065 = vmatmul.mubr.f32.gmra.mxu0 %v26
    %v1066 = vpop.f32.mrf.mxu0
    %v1067 = vadd.f32 0.0, %v1066
    %v1068 = vpop.f32.mrf.mxu0
    %1069 = vmatprep.mubr.f32.mxu0 0.0
    %1070 = vmatmul.mubr.f32.gmra.mxu0 %v27
    %v1071 = vpop.f32.mrf.mxu0
    %v1072 = vadd.f32 0.0, %v1071
    %v1073 = vpop.f32.mrf.mxu0
    %1074 = vmatprep.mubr.f32.mxu0 0.0
    %1075 = vmatmul.mubr.f32.gmra.mxu0 %v28
    %v1076 = vpop.f32.mrf.mxu0
    %v1077 = vadd.f32 0.0, %v1076
    %v1078 = vpop.f32.mrf.mxu0
    %1079 = vmatprep.mubr.f32.mxu0 0.0
    %1080 = vmatmul.mubr.f32.gmra.mxu0 %v29
    %v1081 = vpop.f32.mrf.mxu0
    %v1082 = vadd.f32 0.0, %v1081
    %v1083 = vpop.f32.mrf.mxu0
    %1084 = vmatprep.mubr.f32.mxu0 0.0
    %1085 = vmatmul.mubr.f32.gmra.mxu0 %v30
    %v1086 = vpop.f32.mrf.mxu0
    %v1087 = vadd.f32 0.0, %v1086
    %v1088 = vpop.f32.mrf.mxu0
    %1089 = vmatprep.mubr.f32.mxu0 0.0
    %1090 = vmatmul.mubr.f32.gmra.mxu0 %v31
    %v1091 = vpop.f32.mrf.mxu0
    %v1092 = vadd.f32 0.0, %v1091
    %v1093 = vpop.f32.mrf.mxu0
    %1094 = vmatprep.mubr.f32.mxu0 0.0
    %1095 = vmatmul.mubr.f32.gmra.mxu0 %v32
    %v1096 = vpop.f32.mrf.mxu0
    %v1097 = vadd.f32 0.0, %v1096
    %v1098 = vpop.f32.mrf.mxu0
    %1099 = vmatprep.mubr.f32.mxu0 0.0
    %1100 = vmatmul.mubr.f32.gmra.mxu0 %v33
    %v1101 = vpop.f32.mrf.mxu0
    %v1102 = vadd.f32 0.0, %v1101
    %v1103 = vpop.f32.mrf.mxu0
    %1104 = vdwg.mxu0
    %1121 = vrot.lane.b32.xlu0 %v1027, 32
    %v1122 = vpop.permute.xlu0 %1121
    %1123 = vrot.lane.b32.xlu0 %v1032, 32
    %v1124 = vpop.permute.xlu0 %1123
    %1125 = vrot.lane.b32.xlu0 %v1037, 32
    %v1126 = vpop.permute.xlu0 %1125
    %1127 = vrot.lane.b32.xlu0 %v1042, 32
    %v1128 = vpop.permute.xlu0 %1127
    %1129 = vrot.lane.b32.xlu0 %v1047, 32
    %v1130 = vpop.permute.xlu0 %1129
    %1131 = vrot.lane.b32.xlu0 %v1052, 32
    %v1132 = vpop.permute.xlu0 %1131
    %1133 = vrot.lane.b32.xlu0 %v1057, 32
    %v1134 = vpop.permute.xlu0 %1133
    %1135 = vrot.lane.b32.xlu0 %v1062, 32
    %v1136 = vpop.permute.xlu0 %1135
    %1137 = vrot.lane.b32.xlu0 %v1067, 32
    %v1138 = vpop.permute.xlu0 %1137
    %1139 = vrot.lane.b32.xlu0 %v1072, 32
    %v1140 = vpop.permute.xlu0 %1139
    %1141 = vrot.lane.b32.xlu0 %v1077, 32
    %v1142 = vpop.permute.xlu0 %1141
    %1143 = vrot.lane.b32.xlu0 %v1082, 32
    %v1144 = vpop.permute.xlu0 %1143
    %1145 = vrot.lane.b32.xlu0 %v1087, 32
    %v1146 = vpop.permute.xlu0 %1145
    %1147 = vrot.lane.b32.xlu0 %v1092, 32
    %v1148 = vpop.permute.xlu0 %1147
    %1149 = vrot.lane.b32.xlu0 %v1097, 32
    %v1150 = vpop.permute.xlu0 %1149
    %1151 = vrot.lane.b32.xlu0 %v1102, 32
    %v1152 = vpop.permute.xlu0 %1151
    %v1169 = vsel %vm244, %v944, %v1122
    %v1170 = vsel %vm244, %v945, %v1124
    %v1171 = vsel %vm244, %v946, %v1126
    %v1172 = vsel %vm244, %v947, %v1128
    %v1173 = vsel %vm244, %v948, %v1130
    %v1174 = vsel %vm244, %v949, %v1132
    %v1175 = vsel %vm244, %v950, %v1134
    %v1176 = vsel %vm244, %v951, %v1136
    %v1177 = vsel %vm244, %v952, %v1138
    %v1178 = vsel %vm244, %v953, %v1140
    %v1179 = vsel %vm244, %v954, %v1142
    %v1180 = vsel %vm244, %v955, %v1144
    %v1181 = vsel %vm244, %v956, %v1146
    %v1182 = vsel %vm244, %v957, %v1148
    %v1183 = vsel %vm244, %v958, %v1150
    %v1184 = vsel %vm244, %v959, %v1152
    %v1186 = vsel %vm718, %v1169, 0
    %v1189 = vsel %vm718, %v1170, 0
    %v1192 = vsel %vm718, %v1171, 0
    %v1195 = vsel %vm718, %v1172, 0
    %v1198 = vsel %vm718, %v1173, 0
    %v1201 = vsel %vm718, %v1174, 0
    %v1204 = vsel %vm718, %v1175, 0
    %v1207 = vsel %vm718, %v1176, 0
    %v1210 = vsel %vm718, %v1177, 0
    %v1213 = vsel %vm718, %v1178, 0
    %v1216 = vsel %vm718, %v1179, 0
    %v1219 = vsel %vm718, %v1180, 0
    %v1222 = vsel %vm718, %v1181, 0
    %v1225 = vsel %vm718, %v1182, 0
    %v1228 = vsel %vm718, %v1183, 0
    %v1231 = vsel %vm718, %v1184, 0
    %1233 = vmatprep.subr.mxu0 0.0
    %1234 = vmatpush1.msra.mxu0 0.0
    %1235 = vmatprep.subr.mxu0 0.0
    %1236 = vmatpush1.msra.mxu0 0.0
    %1237 = vmatprep.subr.mxu0 0.0
    %1238 = vmatpush1.msra.mxu0 0.0
    %1239 = vmatprep.subr.mxu0 0.0
    %1240 = vmatpush1.msra.mxu0 0.0
    %1241 = vmatprep.subr.mxu0 0.0
    %1242 = vmatpush1.msra.mxu0 0.0
    %1243 = vmatprep.subr.mxu0 0.0
    %1244 = vmatpush1.msra.mxu0 0.0
    %1245 = vmatprep.subr.mxu0 0.0
    %1246 = vmatpush1.msra.mxu0 0.0
    %1247 = vmatprep.subr.mxu0 0.0
    %1248 = vmatpush1.msra.mxu0 0.0
    %1249 = vmatprep.subr.mxu0 0.0
    %1250 = vmatpush1.msra.mxu0 %v434
    %1251 = vmatprep.subr.mxu0 0.0
    %1252 = vmatpush1.msra.mxu0 %v433
    %1253 = vmatprep.subr.mxu0 0.0
    %1254 = vmatpush1.msra.mxu0 %v432
    %1255 = vmatprep.subr.mxu0 0.0
    %1256 = vmatpush1.msra.mxu0 %v431
    %1257 = vmatprep.subr.mxu0 0.0
    %1258 = vmatpush1.msra.mxu0 %v430
    %1259 = vmatprep.subr.mxu0 0.0
    %1260 = vmatpush1.msra.mxu0 %v429
    %1261 = vmatprep.subr.mxu0 0.0
    %1262 = vmatpush1.msra.mxu0 %v428
    %1263 = vmatprep.subr.mxu0 0.0
    %1264 = vmatpush1.msra.mxu0 %v427
    %1265 = vmatprep.subr.mxu0 0.0
    %1266 = vmatpush2.msra.mxu0 0.0
    %1267 = vmatprep.subr.mxu0 0.0
    %1268 = vmatpush2.msra.mxu0 0.0
    %1269 = vmatprep.subr.mxu0 0.0
    %1270 = vmatpush2.msra.mxu0 0.0
    %1271 = vmatprep.subr.mxu0 0.0
    %1272 = vmatpush2.msra.mxu0 0.0
    %1273 = vmatprep.subr.mxu0 0.0
    %1274 = vmatpush2.msra.mxu0 0.0
    %1275 = vmatprep.subr.mxu0 0.0
    %1276 = vmatpush2.msra.mxu0 0.0
    %1277 = vmatprep.subr.mxu0 0.0
    %1278 = vmatpush2.msra.mxu0 0.0
    %1279 = vmatprep.subr.mxu0 0.0
    %1280 = vmatpush2.msra.mxu0 0.0
    %1281 = vmatprep.subr.mxu0 0.0
    %1282 = vmatpush2.msra.mxu0 0.0
    %1283 = vmatprep.subr.mxu0 0.0
    %1284 = vmatpush2.msra.mxu0 0.0
    %1285 = vmatprep.subr.mxu0 0.0
    %1286 = vmatpush2.msra.mxu0 0.0
    %1287 = vmatprep.subr.mxu0 0.0
    %1288 = vmatpush2.msra.mxu0 0.0
    %1289 = vmatprep.subr.mxu0 0.0
    %1290 = vmatpush2.msra.mxu0 0.0
    %1291 = vmatprep.subr.mxu0 0.0
    %1292 = vmatpush2.msra.mxu0 0.0
    %1293 = vmatprep.subr.mxu0 0.0
    %1294 = vmatpush2.msra.mxu0 0.0
    %1295 = vmatprep.subr.mxu0 0.0
    %1296 = vmatpush2.msra.mxu0 0.0
    %1297 = vmatprep.mubr.f32.mxu0 0.0
    %1298 = vmatmul.mubr.f32.gmra.mxu0 %v1186
    %v1299 = vpop.f32.mrf.mxu0
    %v1300 = vadd.f32 %v461, %v1299
    %v1301 = vpop.f32.mrf.mxu0
    %1302 = vmatprep.mubr.f32.mxu0 0.0
    %1303 = vmatmul.mubr.f32.gmra.mxu0 %v1189
    %v1304 = vpop.f32.mrf.mxu0
    %v1305 = vadd.f32 %v462, %v1304
    %v1306 = vpop.f32.mrf.mxu0
    %1307 = vmatprep.mubr.f32.mxu0 0.0
    %1308 = vmatmul.mubr.f32.gmra.mxu0 %v1192
    %v1309 = vpop.f32.mrf.mxu0
    %v1310 = vadd.f32 %v463, %v1309
    %v1311 = vpop.f32.mrf.mxu0
    %1312 = vmatprep.mubr.f32.mxu0 0.0
    %1313 = vmatmul.mubr.f32.gmra.mxu0 %v1195
    %v1314 = vpop.f32.mrf.mxu0
    %v1315 = vadd.f32 %v464, %v1314
    %v1316 = vpop.f32.mrf.mxu0
    %1317 = vmatprep.mubr.f32.mxu0 0.0
    %1318 = vmatmul.mubr.f32.gmra.mxu0 %v1198
    %v1319 = vpop.f32.mrf.mxu0
    %v1320 = vadd.f32 %v465, %v1319
    %v1321 = vpop.f32.mrf.mxu0
    %1322 = vmatprep.mubr.f32.mxu0 0.0
    %1323 = vmatmul.mubr.f32.gmra.mxu0 %v1201
    %v1324 = vpop.f32.mrf.mxu0
    %v1325 = vadd.f32 %v466, %v1324
    %v1326 = vpop.f32.mrf.mxu0
    %1327 = vmatprep.mubr.f32.mxu0 0.0
    %1328 = vmatmul.mubr.f32.gmra.mxu0 %v1204
    %v1329 = vpop.f32.mrf.mxu0
    %v1330 = vadd.f32 %v467, %v1329
    %v1331 = vpop.f32.mrf.mxu0
    %1332 = vmatprep.mubr.f32.mxu0 0.0
    %1333 = vmatmul.mubr.f32.gmra.mxu0 %v1207
    %v1334 = vpop.f32.mrf.mxu0
    %v1335 = vadd.f32 %v468, %v1334
    %v1336 = vpop.f32.mrf.mxu0
    %1337 = vmatprep.mubr.f32.mxu0 0.0
    %1338 = vmatmul.mubr.f32.gmra.mxu0 %v1210
    %v1339 = vpop.f32.mrf.mxu0
    %v1340 = vadd.f32 %v469, %v1339
    %v1341 = vpop.f32.mrf.mxu0
    %1342 = vmatprep.mubr.f32.mxu0 0.0
    %1343 = vmatmul.mubr.f32.gmra.mxu0 %v1213
    %v1344 = vpop.f32.mrf.mxu0
    %v1345 = vadd.f32 %v470, %v1344
    %v1346 = vpop.f32.mrf.mxu0
    %1347 = vmatprep.mubr.f32.mxu0 0.0
    %1348 = vmatmul.mubr.f32.gmra.mxu0 %v1216
    %v1349 = vpop.f32.mrf.mxu0
    %v1350 = vadd.f32 %v471, %v1349
    %v1351 = vpop.f32.mrf.mxu0
    %1352 = vmatprep.mubr.f32.mxu0 0.0
    %1353 = vmatmul.mubr.f32.gmra.mxu0 %v1219
    %v1354 = vpop.f32.mrf.mxu0
    %v1355 = vadd.f32 %v472, %v1354
    %v1356 = vpop.f32.mrf.mxu0
    %1357 = vmatprep.mubr.f32.mxu0 0.0
    %1358 = vmatmul.mubr.f32.gmra.mxu0 %v1222
    %v1359 = vpop.f32.mrf.mxu0
    %v1360 = vadd.f32 %v473, %v1359
    %v1361 = vpop.f32.mrf.mxu0
    %1362 = vmatprep.mubr.f32.mxu0 0.0
    %1363 = vmatmul.mubr.f32.gmra.mxu0 %v1225
    %v1364 = vpop.f32.mrf.mxu0
    %v1365 = vadd.f32 %v474, %v1364
    %v1366 = vpop.f32.mrf.mxu0
    %1367 = vmatprep.mubr.f32.mxu0 0.0
    %1368 = vmatmul.mubr.f32.gmra.mxu0 %v1228
    %v1369 = vpop.f32.mrf.mxu0
    %v1370 = vadd.f32 %v475, %v1369
    %v1371 = vpop.f32.mrf.mxu0
    %1372 = vmatprep.mubr.f32.mxu0 0.0
    %1373 = vmatmul.mubr.f32.gmra.mxu0 %v1231
    %v1374 = vpop.f32.mrf.mxu0
    %v1375 = vadd.f32 %v476, %v1374
    %v1376 = vpop.f32.mrf.mxu0
    %1377 = vdwg.mxu0
    %v1378 = vmax.f32 %v1300, 0.0
    %v1379 = vmax.f32 %v1305, 0.0
    %v1380 = vmax.f32 %v1310, 0.0
    %v1381 = vmax.f32 %v1315, 0.0
    %v1382 = vmax.f32 %v1320, 0.0
    %v1383 = vmax.f32 %v1325, 0.0
    %v1384 = vmax.f32 %v1330, 0.0
    %v1385 = vmax.f32 %v1335, 0.0
    %v1386 = vmax.f32 %v1340, 0.0
    %v1387 = vmax.f32 %v1345, 0.0
    %v1388 = vmax.f32 %v1350, 0.0
    %v1389 = vmax.f32 %v1355, 0.0
    %v1390 = vmax.f32 %v1360, 0.0
    %v1391 = vmax.f32 %v1365, 0.0
    %v1392 = vmax.f32 %v1370, 0.0
    %v1393 = vmax.f32 %v1375, 0.0
    %1394 = vst.msk [vmem:[%s409] sm:$0xff] %vm244, %v1378
    %1395 = vst.msk [vmem:[%s409 + $0x8] sm:$0xff] %vm244, %v1379
    %1396 = vst.msk [vmem:[%s409 + $0x10] sm:$0xff] %vm244, %v1380
    %1397 = vst.msk [vmem:[%s409 + $0x18] sm:$0xff] %vm244, %v1381
    %1398 = vst.msk [vmem:[%s409 + $0x20] sm:$0xff] %vm244, %v1382
    %1399 = vst.msk [vmem:[%s409 + $0x28] sm:$0xff] %vm244, %v1383
    %1400 = vst.msk [vmem:[%s409 + $0x30] sm:$0xff] %vm244, %v1384
    %1401 = vst.msk [vmem:[%s409 + $0x38] sm:$0xff] %vm244, %v1385
    %1402 = vst.msk [vmem:[%s409 + $0x40] sm:$0xff] %vm244, %v1386
    %1403 = vst.msk [vmem:[%s409 + $0x48] sm:$0xff] %vm244, %v1387
    %1404 = vst.msk [vmem:[%s409 + $0x50] sm:$0xff] %vm244, %v1388
    %1405 = vst.msk [vmem:[%s409 + $0x58] sm:$0xff] %vm244, %v1389
    %1406 = vst.msk [vmem:[%s409 + $0x60] sm:$0xff] %vm244, %v1390
    %1407 = vst.msk [vmem:[%s409 + $0x68] sm:$0xff] %vm244, %v1391
    %1408 = vst.msk [vmem:[%s409 + $0x70] sm:$0xff] %vm244, %v1392
    %1409 = vst.msk [vmem:[%s409 + $0x78] sm:$0xff] %vm244, %v1393
    %s1410 = scalar_lea.vmem %s2, 64
    %v1411 = vld [vmem:[%s1410] sm:$0xff]
    %v1412 = vld [vmem:[%s1410 + $0x8] sm:$0xff]
    %v1413 = vld [vmem:[%s1410 + $0x10] sm:$0xff]
    %v1414 = vld [vmem:[%s1410 + $0x18] sm:$0xff]
    %v1415 = vld [vmem:[%s1410 + $0x20] sm:$0xff]
    %v1416 = vld [vmem:[%s1410 + $0x28] sm:$0xff]
    %v1417 = vld [vmem:[%s1410 + $0x30] sm:$0xff]
    %v1418 = vld [vmem:[%s1410 + $0x38] sm:$0xff]
    %v1419 = vld [vmem:[%s3 + $0x12] sm:$0x1]
    %v1420 = vld [vmem:[%s3 + $0x13] sm:$0x1]
    %v1421 = vlaneseq
    %v1422 = vshrl.u32 %v1421, 7
    %v1423 = vsub.s32 0, %v1422
    %v1424 = vrot.slane %v1420, %v1423
    %v1425 = vmul.f32 %v35, %v1424
    %v1426 = vmul.f32 %v37, %v1424
    %v1427 = vmul.f32 %v39, %v1424
    %v1428 = vmul.f32 %v41, %v1424
    %v1429 = vmul.f32 %v43, %v1424
    %v1430 = vmul.f32 %v45, %v1424
    %v1431 = vmul.f32 %v47, %v1424
    %v1432 = vmul.f32 %v49, %v1424
    %v1433 = vmul.f32 %v51, %v1424
    %v1434 = vmul.f32 %v53, %v1424
    %v1435 = vmul.f32 %v55, %v1424
    %v1436 = vmul.f32 %v57, %v1424
    %v1437 = vmul.f32 %v59, %v1424
    %v1438 = vmul.f32 %v61, %v1424
    %v1439 = vmul.f32 %v63, %v1424
    %v1440 = vmul.f32 %v65, %v1424
    %v1441 = vlaneseq
    %v1442 = vshrl.u32 %v1441, 7
    %v1443 = vsub.s32 0, %v1442
    %v1444 = vrot.slane %v1419, %v1443
    %v1445 = vadd.f32 %v1444, %v1425
    %v1446 = vadd.f32 %v1444, %v1426
    %v1447 = vadd.f32 %v1444, %v1427
    %v1448 = vadd.f32 %v1444, %v1428
    %v1449 = vadd.f32 %v1444, %v1429
    %v1450 = vadd.f32 %v1444, %v1430
    %v1451 = vadd.f32 %v1444, %v1431
    %v1452 = vadd.f32 %v1444, %v1432
    %v1453 = vadd.f32 %v1444, %v1433
    %v1454 = vadd.f32 %v1444, %v1434
    %v1455 = vadd.f32 %v1444, %v1435
    %v1456 = vadd.f32 %v1444, %v1436
    %v1457 = vadd.f32 %v1444, %v1437
    %v1458 = vadd.f32 %v1444, %v1438
    %v1459 = vadd.f32 %v1444, %v1439
    %v1460 = vadd.f32 %v1444, %v1440
    %v1461 = vld [vmem:[#allocation2] sm:$0xff]
    %v1462 = vld [vmem:[#allocation2 + $0x8] sm:$0xff]
    %v1463 = vld [vmem:[#allocation2 + $0x10] sm:$0xff]
    %v1464 = vld [vmem:[#allocation2 + $0x18] sm:$0xff]
    %v1465 = vld [vmem:[#allocation2 + $0x20] sm:$0xff]
    %v1466 = vld [vmem:[#allocation2 + $0x28] sm:$0xff]
    %v1467 = vld [vmem:[#allocation2 + $0x30] sm:$0xff]
    %v1468 = vld [vmem:[#allocation2 + $0x38] sm:$0xff]
    %v1469 = vld [vmem:[#allocation2 + $0x40] sm:$0xff]
    %v1470 = vld [vmem:[#allocation2 + $0x48] sm:$0xff]
    %v1471 = vld [vmem:[#allocation2 + $0x50] sm:$0xff]
    %v1472 = vld [vmem:[#allocation2 + $0x58] sm:$0xff]
    %v1473 = vld [vmem:[#allocation2 + $0x60] sm:$0xff]
    %v1474 = vld [vmem:[#allocation2 + $0x68] sm:$0xff]
    %v1475 = vld [vmem:[#allocation2 + $0x70] sm:$0xff]
    %v1476 = vld [vmem:[#allocation2 + $0x78] sm:$0xff]
    %1477 = vmatprep.subr.mxu0 0.0
    %1478 = vmatpush1.msra.mxu0 %v1476
    %1479 = vmatprep.subr.mxu0 0.0
    %1480 = vmatpush1.msra.mxu0 %v1475
    %1481 = vmatprep.subr.mxu0 0.0
    %1482 = vmatpush1.msra.mxu0 %v1474
    %1483 = vmatprep.subr.mxu0 0.0
    %1484 = vmatpush1.msra.mxu0 %v1473
    %1485 = vmatprep.subr.mxu0 0.0
    %1486 = vmatpush1.msra.mxu0 %v1472
    %1487 = vmatprep.subr.mxu0 0.0
    %1488 = vmatpush1.msra.mxu0 %v1471
    %1489 = vmatprep.subr.mxu0 0.0
    %1490 = vmatpush1.msra.mxu0 %v1470
    %1491 = vmatprep.subr.mxu0 0.0
    %1492 = vmatpush1.msra.mxu0 %v1469
    %1493 = vmatprep.subr.mxu0 0.0
    %1494 = vmatpush1.msra.mxu0 %v1468
    %1495 = vmatprep.subr.mxu0 0.0
    %1496 = vmatpush1.msra.mxu0 %v1467
    %1497 = vmatprep.subr.mxu0 0.0
    %1498 = vmatpush1.msra.mxu0 %v1466
    %1499 = vmatprep.subr.mxu0 0.0
    %1500 = vmatpush1.msra.mxu0 %v1465
    %1501 = vmatprep.subr.mxu0 0.0
    %1502 = vmatpush1.msra.mxu0 %v1464
    %1503 = vmatprep.subr.mxu0 0.0
    %1504 = vmatpush1.msra.mxu0 %v1463
    %1505 = vmatprep.subr.mxu0 0.0
    %1506 = vmatpush1.msra.mxu0 %v1462
    %1507 = vmatprep.subr.mxu0 0.0
    %1508 = vmatpush1.msra.mxu0 %v1461
    %1509 = vmatprep.subr.mxu0 0.0
    %1510 = vmatpush2.msra.mxu0 0.0
    %1511 = vmatprep.subr.mxu0 0.0
    %1512 = vmatpush2.msra.mxu0 0.0
    %1513 = vmatprep.subr.mxu0 0.0
    %1514 = vmatpush2.msra.mxu0 0.0
    %1515 = vmatprep.subr.mxu0 0.0
    %1516 = vmatpush2.msra.mxu0 0.0
    %1517 = vmatprep.subr.mxu0 0.0
    %1518 = vmatpush2.msra.mxu0 0.0
    %1519 = vmatprep.subr.mxu0 0.0
    %1520 = vmatpush2.msra.mxu0 0.0
    %1521 = vmatprep.subr.mxu0 0.0
    %1522 = vmatpush2.msra.mxu0 0.0
    %1523 = vmatprep.subr.mxu0 0.0
    %1524 = vmatpush2.msra.mxu0 0.0
    %1525 = vmatprep.subr.mxu0 0.0
    %1526 = vmatpush2.msra.mxu0 0.0
    %1527 = vmatprep.subr.mxu0 0.0
    %1528 = vmatpush2.msra.mxu0 0.0
    %1529 = vmatprep.subr.mxu0 0.0
    %1530 = vmatpush2.msra.mxu0 0.0
    %1531 = vmatprep.subr.mxu0 0.0
    %1532 = vmatpush2.msra.mxu0 0.0
    %1533 = vmatprep.subr.mxu0 0.0
    %1534 = vmatpush2.msra.mxu0 0.0
    %1535 = vmatprep.subr.mxu0 0.0
    %1536 = vmatpush2.msra.mxu0 0.0
    %1537 = vmatprep.subr.mxu0 0.0
    %1538 = vmatpush2.msra.mxu0 0.0
    %1539 = vmatprep.subr.mxu0 0.0
    %1540 = vmatpush2.msra.mxu0 0.0
    %1541 = vmatprep.mubr.f32.mxu0 0.0
    %1542 = vmatmul.mubr.f32.gmra.mxu0 %v18
    %v1543 = vpop.f32.mrf.mxu0
    %v1544 = vadd.f32 0.0, %v1543
    %v1545 = vpop.f32.mrf.mxu0
    %1546 = vmatprep.mubr.f32.mxu0 0.0
    %1547 = vmatmul.mubr.f32.gmra.mxu0 %v19
    %v1548 = vpop.f32.mrf.mxu0
    %v1549 = vadd.f32 0.0, %v1548
    %v1550 = vpop.f32.mrf.mxu0
    %1551 = vmatprep.mubr.f32.mxu0 0.0
    %1552 = vmatmul.mubr.f32.gmra.mxu0 %v20
    %v1553 = vpop.f32.mrf.mxu0
    %v1554 = vadd.f32 0.0, %v1553
    %v1555 = vpop.f32.mrf.mxu0
    %1556 = vmatprep.mubr.f32.mxu0 0.0
    %1557 = vmatmul.mubr.f32.gmra.mxu0 %v21
    %v1558 = vpop.f32.mrf.mxu0
    %v1559 = vadd.f32 0.0, %v1558
    %v1560 = vpop.f32.mrf.mxu0
    %1561 = vmatprep.mubr.f32.mxu0 0.0
    %1562 = vmatmul.mubr.f32.gmra.mxu0 %v22
    %v1563 = vpop.f32.mrf.mxu0
    %v1564 = vadd.f32 0.0, %v1563
    %v1565 = vpop.f32.mrf.mxu0
    %1566 = vmatprep.mubr.f32.mxu0 0.0
    %1567 = vmatmul.mubr.f32.gmra.mxu0 %v23
    %v1568 = vpop.f32.mrf.mxu0
    %v1569 = vadd.f32 0.0, %v1568
    %v1570 = vpop.f32.mrf.mxu0
    %1571 = vmatprep.mubr.f32.mxu0 0.0
    %1572 = vmatmul.mubr.f32.gmra.mxu0 %v24
    %v1573 = vpop.f32.mrf.mxu0
    %v1574 = vadd.f32 0.0, %v1573
    %v1575 = vpop.f32.mrf.mxu0
    %1576 = vmatprep.mubr.f32.mxu0 0.0
    %1577 = vmatmul.mubr.f32.gmra.mxu0 %v25
    %v1578 = vpop.f32.mrf.mxu0
    %v1579 = vadd.f32 0.0, %v1578
    %v1580 = vpop.f32.mrf.mxu0
    %1581 = vmatprep.mubr.f32.mxu0 0.0
    %1582 = vmatmul.mubr.f32.gmra.mxu0 %v26
    %v1583 = vpop.f32.mrf.mxu0
    %v1584 = vadd.f32 0.0, %v1583
    %v1585 = vpop.f32.mrf.mxu0
    %1586 = vmatprep.mubr.f32.mxu0 0.0
    %1587 = vmatmul.mubr.f32.gmra.mxu0 %v27
    %v1588 = vpop.f32.mrf.mxu0
    %v1589 = vadd.f32 0.0, %v1588
    %v1590 = vpop.f32.mrf.mxu0
    %1591 = vmatprep.mubr.f32.mxu0 0.0
    %1592 = vmatmul.mubr.f32.gmra.mxu0 %v28
    %v1593 = vpop.f32.mrf.mxu0
    %v1594 = vadd.f32 0.0, %v1593
    %v1595 = vpop.f32.mrf.mxu0
    %1596 = vmatprep.mubr.f32.mxu0 0.0
    %1597 = vmatmul.mubr.f32.gmra.mxu0 %v29
    %v1598 = vpop.f32.mrf.mxu0
    %v1599 = vadd.f32 0.0, %v1598
    %v1600 = vpop.f32.mrf.mxu0
    %1601 = vmatprep.mubr.f32.mxu0 0.0
    %1602 = vmatmul.mubr.f32.gmra.mxu0 %v30
    %v1603 = vpop.f32.mrf.mxu0
    %v1604 = vadd.f32 0.0, %v1603
    %v1605 = vpop.f32.mrf.mxu0
    %1606 = vmatprep.mubr.f32.mxu0 0.0
    %1607 = vmatmul.mubr.f32.gmra.mxu0 %v31
    %v1608 = vpop.f32.mrf.mxu0
    %v1609 = vadd.f32 0.0, %v1608
    %v1610 = vpop.f32.mrf.mxu0
    %1611 = vmatprep.mubr.f32.mxu0 0.0
    %1612 = vmatmul.mubr.f32.gmra.mxu0 %v32
    %v1613 = vpop.f32.mrf.mxu0
    %v1614 = vadd.f32 0.0, %v1613
    %v1615 = vpop.f32.mrf.mxu0
    %1616 = vmatprep.mubr.f32.mxu0 0.0
    %1617 = vmatmul.mubr.f32.gmra.mxu0 %v33
    %v1618 = vpop.f32.mrf.mxu0
    %v1619 = vadd.f32 0.0, %v1618
    %v1620 = vpop.f32.mrf.mxu0
    %1621 = vdwg.mxu0
    %1638 = vrot.lane.b32.xlu0 %v1544, 32
    %v1639 = vpop.permute.xlu0 %1638
    %1640 = vrot.lane.b32.xlu0 %v1549, 32
    %v1641 = vpop.permute.xlu0 %1640
    %1642 = vrot.lane.b32.xlu0 %v1554, 32
    %v1643 = vpop.permute.xlu0 %1642
    %1644 = vrot.lane.b32.xlu0 %v1559, 32
    %v1645 = vpop.permute.xlu0 %1644
    %1646 = vrot.lane.b32.xlu0 %v1564, 32
    %v1647 = vpop.permute.xlu0 %1646
    %1648 = vrot.lane.b32.xlu0 %v1569, 32
    %v1649 = vpop.permute.xlu0 %1648
    %1650 = vrot.lane.b32.xlu0 %v1574, 32
    %v1651 = vpop.permute.xlu0 %1650
    %1652 = vrot.lane.b32.xlu0 %v1579, 32
    %v1653 = vpop.permute.xlu0 %1652
    %1654 = vrot.lane.b32.xlu0 %v1584, 32
    %v1655 = vpop.permute.xlu0 %1654
    %1656 = vrot.lane.b32.xlu0 %v1589, 32
    %v1657 = vpop.permute.xlu0 %1656
    %1658 = vrot.lane.b32.xlu0 %v1594, 32
    %v1659 = vpop.permute.xlu0 %1658
    %1660 = vrot.lane.b32.xlu0 %v1599, 32
    %v1661 = vpop.permute.xlu0 %1660
    %1662 = vrot.lane.b32.xlu0 %v1604, 32
    %v1663 = vpop.permute.xlu0 %1662
    %1664 = vrot.lane.b32.xlu0 %v1609, 32
    %v1665 = vpop.permute.xlu0 %1664
    %1666 = vrot.lane.b32.xlu0 %v1614, 32
    %v1667 = vpop.permute.xlu0 %1666
    %1668 = vrot.lane.b32.xlu0 %v1619, 32
    %v1669 = vpop.permute.xlu0 %1668
    %v1686 = vsel %vm244, %v1461, %v1639
    %v1687 = vsel %vm244, %v1462, %v1641
    %v1688 = vsel %vm244, %v1463, %v1643
    %v1689 = vsel %vm244, %v1464, %v1645
    %v1690 = vsel %vm244, %v1465, %v1647
    %v1691 = vsel %vm244, %v1466, %v1649
    %v1692 = vsel %vm244, %v1467, %v1651
    %v1693 = vsel %vm244, %v1468, %v1653
    %v1694 = vsel %vm244, %v1469, %v1655
    %v1695 = vsel %vm244, %v1470, %v1657
    %v1696 = vsel %vm244, %v1471, %v1659
    %v1697 = vsel %vm244, %v1472, %v1661
    %v1698 = vsel %vm244, %v1473, %v1663
    %v1699 = vsel %vm244, %v1474, %v1665
    %v1700 = vsel %vm244, %v1475, %v1667
    %v1701 = vsel %vm244, %v1476, %v1669
    %v1703 = vsel %vm718, %v1686, 0
    %v1706 = vsel %vm718, %v1687, 0
    %v1709 = vsel %vm718, %v1688, 0
    %v1712 = vsel %vm718, %v1689, 0
    %v1715 = vsel %vm718, %v1690, 0
    %v1718 = vsel %vm718, %v1691, 0
    %v1721 = vsel %vm718, %v1692, 0
    %v1724 = vsel %vm718, %v1693, 0
    %v1727 = vsel %vm718, %v1694, 0
    %v1730 = vsel %vm718, %v1695, 0
    %v1733 = vsel %vm718, %v1696, 0
    %v1736 = vsel %vm718, %v1697, 0
    %v1739 = vsel %vm718, %v1698, 0
    %v1742 = vsel %vm718, %v1699, 0
    %v1745 = vsel %vm718, %v1700, 0
    %v1748 = vsel %vm718, %v1701, 0
    %1750 = vmatprep.subr.mxu0 0.0
    %1751 = vmatpush1.msra.mxu0 0.0
    %1752 = vmatprep.subr.mxu0 0.0
    %1753 = vmatpush1.msra.mxu0 0.0
    %1754 = vmatprep.subr.mxu0 0.0
    %1755 = vmatpush1.msra.mxu0 0.0
    %1756 = vmatprep.subr.mxu0 0.0
    %1757 = vmatpush1.msra.mxu0 0.0
    %1758 = vmatprep.subr.mxu0 0.0
    %1759 = vmatpush1.msra.mxu0 0.0
    %1760 = vmatprep.subr.mxu0 0.0
    %1761 = vmatpush1.msra.mxu0 0.0
    %1762 = vmatprep.subr.mxu0 0.0
    %1763 = vmatpush1.msra.mxu0 0.0
    %1764 = vmatprep.subr.mxu0 0.0
    %1765 = vmatpush1.msra.mxu0 0.0
    %1766 = vmatprep.subr.mxu0 0.0
    %1767 = vmatpush1.msra.mxu0 %v1418
    %1768 = vmatprep.subr.mxu0 0.0
    %1769 = vmatpush1.msra.mxu0 %v1417
    %1770 = vmatprep.subr.mxu0 0.0
    %1771 = vmatpush1.msra.mxu0 %v1416
    %1772 = vmatprep.subr.mxu0 0.0
    %1773 = vmatpush1.msra.mxu0 %v1415
    %1774 = vmatprep.subr.mxu0 0.0
    %1775 = vmatpush1.msra.mxu0 %v1414
    %1776 = vmatprep.subr.mxu0 0.0
    %1777 = vmatpush1.msra.mxu0 %v1413
    %1778 = vmatprep.subr.mxu0 0.0
    %1779 = vmatpush1.msra.mxu0 %v1412
    %1780 = vmatprep.subr.mxu0 0.0
    %1781 = vmatpush1.msra.mxu0 %v1411
    %1782 = vmatprep.subr.mxu0 0.0
    %1783 = vmatpush2.msra.mxu0 0.0
    %1784 = vmatprep.subr.mxu0 0.0
    %1785 = vmatpush2.msra.mxu0 0.0
    %1786 = vmatprep.subr.mxu0 0.0
    %1787 = vmatpush2.msra.mxu0 0.0
    %1788 = vmatprep.subr.mxu0 0.0
    %1789 = vmatpush2.msra.mxu0 0.0
    %1790 = vmatprep.subr.mxu0 0.0
    %1791 = vmatpush2.msra.mxu0 0.0
    %1792 = vmatprep.subr.mxu0 0.0
    %1793 = vmatpush2.msra.mxu0 0.0
    %1794 = vmatprep.subr.mxu0 0.0
    %1795 = vmatpush2.msra.mxu0 0.0
    %1796 = vmatprep.subr.mxu0 0.0
    %1797 = vmatpush2.msra.mxu0 0.0
    %1798 = vmatprep.subr.mxu0 0.0
    %1799 = vmatpush2.msra.mxu0 0.0
    %1800 = vmatprep.subr.mxu0 0.0
    %1801 = vmatpush2.msra.mxu0 0.0
    %1802 = vmatprep.subr.mxu0 0.0
    %1803 = vmatpush2.msra.mxu0 0.0
    %1804 = vmatprep.subr.mxu0 0.0
    %1805 = vmatpush2.msra.mxu0 0.0
    %1806 = vmatprep.subr.mxu0 0.0
    %1807 = vmatpush2.msra.mxu0 0.0
    %1808 = vmatprep.subr.mxu0 0.0
    %1809 = vmatpush2.msra.mxu0 0.0
    %1810 = vmatprep.subr.mxu0 0.0
    %1811 = vmatpush2.msra.mxu0 0.0
    %1812 = vmatprep.subr.mxu0 0.0
    %1813 = vmatpush2.msra.mxu0 0.0
    %1814 = vmatprep.mubr.f32.mxu0 0.0
    %1815 = vmatmul.mubr.f32.gmra.mxu0 %v1703
    %v1816 = vpop.f32.mrf.mxu0
    %v1817 = vadd.f32 %v1445, %v1816
    %v1818 = vpop.f32.mrf.mxu0
    %1819 = vmatprep.mubr.f32.mxu0 0.0
    %1820 = vmatmul.mubr.f32.gmra.mxu0 %v1706
    %v1821 = vpop.f32.mrf.mxu0
    %v1822 = vadd.f32 %v1446, %v1821
    %v1823 = vpop.f32.mrf.mxu0
    %1824 = vmatprep.mubr.f32.mxu0 0.0
    %1825 = vmatmul.mubr.f32.gmra.mxu0 %v1709
    %v1826 = vpop.f32.mrf.mxu0
    %v1827 = vadd.f32 %v1447, %v1826
    %v1828 = vpop.f32.mrf.mxu0
    %1829 = vmatprep.mubr.f32.mxu0 0.0
    %1830 = vmatmul.mubr.f32.gmra.mxu0 %v1712
    %v1831 = vpop.f32.mrf.mxu0
    %v1832 = vadd.f32 %v1448, %v1831
    %v1833 = vpop.f32.mrf.mxu0
    %1834 = vmatprep.mubr.f32.mxu0 0.0
    %1835 = vmatmul.mubr.f32.gmra.mxu0 %v1715
    %v1836 = vpop.f32.mrf.mxu0
    %v1837 = vadd.f32 %v1449, %v1836
    %v1838 = vpop.f32.mrf.mxu0
    %1839 = vmatprep.mubr.f32.mxu0 0.0
    %1840 = vmatmul.mubr.f32.gmra.mxu0 %v1718
    %v1841 = vpop.f32.mrf.mxu0
    %v1842 = vadd.f32 %v1450, %v1841
    %v1843 = vpop.f32.mrf.mxu0
    %1844 = vmatprep.mubr.f32.mxu0 0.0
    %1845 = vmatmul.mubr.f32.gmra.mxu0 %v1721
    %v1846 = vpop.f32.mrf.mxu0
    %v1847 = vadd.f32 %v1451, %v1846
    %v1848 = vpop.f32.mrf.mxu0
    %1849 = vmatprep.mubr.f32.mxu0 0.0
    %1850 = vmatmul.mubr.f32.gmra.mxu0 %v1724
    %v1851 = vpop.f32.mrf.mxu0
    %v1852 = vadd.f32 %v1452, %v1851
    %v1853 = vpop.f32.mrf.mxu0
    %1854 = vmatprep.mubr.f32.mxu0 0.0
    %1855 = vmatmul.mubr.f32.gmra.mxu0 %v1727
    %v1856 = vpop.f32.mrf.mxu0
    %v1857 = vadd.f32 %v1453, %v1856
    %v1858 = vpop.f32.mrf.mxu0
    %1859 = vmatprep.mubr.f32.mxu0 0.0
    %1860 = vmatmul.mubr.f32.gmra.mxu0 %v1730
    %v1861 = vpop.f32.mrf.mxu0
    %v1862 = vadd.f32 %v1454, %v1861
    %v1863 = vpop.f32.mrf.mxu0
    %1864 = vmatprep.mubr.f32.mxu0 0.0
    %1865 = vmatmul.mubr.f32.gmra.mxu0 %v1733
    %v1866 = vpop.f32.mrf.mxu0
    %v1867 = vadd.f32 %v1455, %v1866
    %v1868 = vpop.f32.mrf.mxu0
    %1869 = vmatprep.mubr.f32.mxu0 0.0
    %1870 = vmatmul.mubr.f32.gmra.mxu0 %v1736
    %v1871 = vpop.f32.mrf.mxu0
    %v1872 = vadd.f32 %v1456, %v1871
    %v1873 = vpop.f32.mrf.mxu0
    %1874 = vmatprep.mubr.f32.mxu0 0.0
    %1875 = vmatmul.mubr.f32.gmra.mxu0 %v1739
    %v1876 = vpop.f32.mrf.mxu0
    %v1877 = vadd.f32 %v1457, %v1876
    %v1878 = vpop.f32.mrf.mxu0
    %1879 = vmatprep.mubr.f32.mxu0 0.0
    %1880 = vmatmul.mubr.f32.gmra.mxu0 %v1742
    %v1881 = vpop.f32.mrf.mxu0
    %v1882 = vadd.f32 %v1458, %v1881
    %v1883 = vpop.f32.mrf.mxu0
    %1884 = vmatprep.mubr.f32.mxu0 0.0
    %1885 = vmatmul.mubr.f32.gmra.mxu0 %v1745
    %v1886 = vpop.f32.mrf.mxu0
    %v1887 = vadd.f32 %v1459, %v1886
    %v1888 = vpop.f32.mrf.mxu0
    %1889 = vmatprep.mubr.f32.mxu0 0.0
    %1890 = vmatmul.mubr.f32.gmra.mxu0 %v1748
    %v1891 = vpop.f32.mrf.mxu0
    %v1892 = vadd.f32 %v1460, %v1891
    %v1893 = vpop.f32.mrf.mxu0
    %1894 = vdwg.mxu0
    %v1895 = vmax.f32 %v1817, 0.0
    %v1896 = vmax.f32 %v1822, 0.0
    %v1897 = vmax.f32 %v1827, 0.0
    %v1898 = vmax.f32 %v1832, 0.0
    %v1899 = vmax.f32 %v1837, 0.0
    %v1900 = vmax.f32 %v1842, 0.0
    %v1901 = vmax.f32 %v1847, 0.0
    %v1902 = vmax.f32 %v1852, 0.0
    %v1903 = vmax.f32 %v1857, 0.0
    %v1904 = vmax.f32 %v1862, 0.0
    %v1905 = vmax.f32 %v1867, 0.0
    %v1906 = vmax.f32 %v1872, 0.0
    %v1907 = vmax.f32 %v1877, 0.0
    %v1908 = vmax.f32 %v1882, 0.0
    %v1909 = vmax.f32 %v1887, 0.0
    %v1910 = vmax.f32 %v1892, 0.0
    %1911 = vst.msk [vmem:[#allocation2] sm:$0xff] %vm244, %v1895
    %1912 = vst.msk [vmem:[#allocation2 + $0x8] sm:$0xff] %vm244, %v1896
    %1913 = vst.msk [vmem:[#allocation2 + $0x10] sm:$0xff] %vm244, %v1897
    %1914 = vst.msk [vmem:[#allocation2 + $0x18] sm:$0xff] %vm244, %v1898
    %1915 = vst.msk [vmem:[#allocation2 + $0x20] sm:$0xff] %vm244, %v1899
    %1916 = vst.msk [vmem:[#allocation2 + $0x28] sm:$0xff] %vm244, %v1900
    %1917 = vst.msk [vmem:[#allocation2 + $0x30] sm:$0xff] %vm244, %v1901
    %1918 = vst.msk [vmem:[#allocation2 + $0x38] sm:$0xff] %vm244, %v1902
    %1919 = vst.msk [vmem:[#allocation2 + $0x40] sm:$0xff] %vm244, %v1903
    %1920 = vst.msk [vmem:[#allocation2 + $0x48] sm:$0xff] %vm244, %v1904
    %1921 = vst.msk [vmem:[#allocation2 + $0x50] sm:$0xff] %vm244, %v1905
    %1922 = vst.msk [vmem:[#allocation2 + $0x58] sm:$0xff] %vm244, %v1906
    %1923 = vst.msk [vmem:[#allocation2 + $0x60] sm:$0xff] %vm244, %v1907
    %1924 = vst.msk [vmem:[#allocation2 + $0x68] sm:$0xff] %vm244, %v1908
    %1925 = vst.msk [vmem:[#allocation2 + $0x70] sm:$0xff] %vm244, %v1909
    %1926 = vst.msk [vmem:[#allocation2 + $0x78] sm:$0xff] %vm244, %v1910
    %v1927 = vld [vmem:[%s409] sm:$0xff]
    %v1928 = vld [vmem:[%s409 + $0x8] sm:$0xff]
    %v1929 = vld [vmem:[%s409 + $0x10] sm:$0xff]
    %v1930 = vld [vmem:[%s409 + $0x18] sm:$0xff]
    %v1931 = vld [vmem:[%s409 + $0x20] sm:$0xff]
    %v1932 = vld [vmem:[%s409 + $0x28] sm:$0xff]
    %v1933 = vld [vmem:[%s409 + $0x30] sm:$0xff]
    %v1934 = vld [vmem:[%s409 + $0x38] sm:$0xff]
    %v1935 = vld [vmem:[%s409 + $0x40] sm:$0xff]
    %v1936 = vld [vmem:[%s409 + $0x48] sm:$0xff]
    %v1937 = vld [vmem:[%s409 + $0x50] sm:$0xff]
    %v1938 = vld [vmem:[%s409 + $0x58] sm:$0xff]
    %v1939 = vld [vmem:[%s409 + $0x60] sm:$0xff]
    %v1940 = vld [vmem:[%s409 + $0x68] sm:$0xff]
    %v1941 = vld [vmem:[%s409 + $0x70] sm:$0xff]
    %v1942 = vld [vmem:[%s409 + $0x78] sm:$0xff]
    %1943 = vmatprep.subr.mxu0 0.0
    %1944 = vmatpush1.msra.mxu0 %v1942
    %1945 = vmatprep.subr.mxu0 0.0
    %1946 = vmatpush1.msra.mxu0 %v1941
    %1947 = vmatprep.subr.mxu0 0.0
    %1948 = vmatpush1.msra.mxu0 %v1940
    %1949 = vmatprep.subr.mxu0 0.0
    %1950 = vmatpush1.msra.mxu0 %v1939
    %1951 = vmatprep.subr.mxu0 0.0
    %1952 = vmatpush1.msra.mxu0 %v1938
    %1953 = vmatprep.subr.mxu0 0.0
    %1954 = vmatpush1.msra.mxu0 %v1937
    %1955 = vmatprep.subr.mxu0 0.0
    %1956 = vmatpush1.msra.mxu0 %v1936
    %1957 = vmatprep.subr.mxu0 0.0
    %1958 = vmatpush1.msra.mxu0 %v1935
    %1959 = vmatprep.subr.mxu0 0.0
    %1960 = vmatpush1.msra.mxu0 %v1934
    %1961 = vmatprep.subr.mxu0 0.0
    %1962 = vmatpush1.msra.mxu0 %v1933
    %1963 = vmatprep.subr.mxu0 0.0
    %1964 = vmatpush1.msra.mxu0 %v1932
    %1965 = vmatprep.subr.mxu0 0.0
    %1966 = vmatpush1.msra.mxu0 %v1931
    %1967 = vmatprep.subr.mxu0 0.0
    %1968 = vmatpush1.msra.mxu0 %v1930
    %1969 = vmatprep.subr.mxu0 0.0
    %1970 = vmatpush1.msra.mxu0 %v1929
    %1971 = vmatprep.subr.mxu0 0.0
    %1972 = vmatpush1.msra.mxu0 %v1928
    %1973 = vmatprep.subr.mxu0 0.0
    %1974 = vmatpush1.msra.mxu0 %v1927
    %1975 = vmatprep.subr.mxu0 0.0
    %1976 = vmatpush2.msra.mxu0 0.0
    %1977 = vmatprep.subr.mxu0 0.0
    %1978 = vmatpush2.msra.mxu0 0.0
    %1979 = vmatprep.subr.mxu0 0.0
    %1980 = vmatpush2.msra.mxu0 0.0
    %1981 = vmatprep.subr.mxu0 0.0
    %1982 = vmatpush2.msra.mxu0 0.0
    %1983 = vmatprep.subr.mxu0 0.0
    %1984 = vmatpush2.msra.mxu0 0.0
    %1985 = vmatprep.subr.mxu0 0.0
    %1986 = vmatpush2.msra.mxu0 0.0
    %1987 = vmatprep.subr.mxu0 0.0
    %1988 = vmatpush2.msra.mxu0 0.0
    %1989 = vmatprep.subr.mxu0 0.0
    %1990 = vmatpush2.msra.mxu0 0.0
    %1991 = vmatprep.subr.mxu0 0.0
    %1992 = vmatpush2.msra.mxu0 0.0
    %1993 = vmatprep.subr.mxu0 0.0
    %1994 = vmatpush2.msra.mxu0 0.0
    %1995 = vmatprep.subr.mxu0 0.0
    %1996 = vmatpush2.msra.mxu0 0.0
    %1997 = vmatprep.subr.mxu0 0.0
    %1998 = vmatpush2.msra.mxu0 0.0
    %1999 = vmatprep.subr.mxu0 0.0
    %2000 = vmatpush2.msra.mxu0 0.0
    %2001 = vmatprep.subr.mxu0 0.0
    %2002 = vmatpush2.msra.mxu0 0.0
    %2003 = vmatprep.subr.mxu0 0.0
    %2004 = vmatpush2.msra.mxu0 0.0
    %2005 = vmatprep.subr.mxu0 0.0
    %2006 = vmatpush2.msra.mxu0 0.0
    %2007 = vmatprep.mubr.f32.mxu0 0.0
    %2008 = vmatmul.mubr.f32.gmra.mxu0 %v18
    %v2009 = vpop.f32.mrf.mxu0
    %v2010 = vadd.f32 0.0, %v2009
    %v2011 = vpop.f32.mrf.mxu0
    %2012 = vmatprep.mubr.f32.mxu0 0.0
    %2013 = vmatmul.mubr.f32.gmra.mxu0 %v19
    %v2014 = vpop.f32.mrf.mxu0
    %v2015 = vadd.f32 0.0, %v2014
    %v2016 = vpop.f32.mrf.mxu0
    %2017 = vmatprep.mubr.f32.mxu0 0.0
    %2018 = vmatmul.mubr.f32.gmra.mxu0 %v20
    %v2019 = vpop.f32.mrf.mxu0
    %v2020 = vadd.f32 0.0, %v2019
    %v2021 = vpop.f32.mrf.mxu0
    %2022 = vmatprep.mubr.f32.mxu0 0.0
    %2023 = vmatmul.mubr.f32.gmra.mxu0 %v21
    %v2024 = vpop.f32.mrf.mxu0
    %v2025 = vadd.f32 0.0, %v2024
    %v2026 = vpop.f32.mrf.mxu0
    %2027 = vmatprep.mubr.f32.mxu0 0.0
    %2028 = vmatmul.mubr.f32.gmra.mxu0 %v22
    %v2029 = vpop.f32.mrf.mxu0
    %v2030 = vadd.f32 0.0, %v2029
    %v2031 = vpop.f32.mrf.mxu0
    %2032 = vmatprep.mubr.f32.mxu0 0.0
    %2033 = vmatmul.mubr.f32.gmra.mxu0 %v23
    %v2034 = vpop.f32.mrf.mxu0
    %v2035 = vadd.f32 0.0, %v2034
    %v2036 = vpop.f32.mrf.mxu0
    %2037 = vmatprep.mubr.f32.mxu0 0.0
    %2038 = vmatmul.mubr.f32.gmra.mxu0 %v24
    %v2039 = vpop.f32.mrf.mxu0
    %v2040 = vadd.f32 0.0, %v2039
    %v2041 = vpop.f32.mrf.mxu0
    %2042 = vmatprep.mubr.f32.mxu0 0.0
    %2043 = vmatmul.mubr.f32.gmra.mxu0 %v25
    %v2044 = vpop.f32.mrf.mxu0
    %v2045 = vadd.f32 0.0, %v2044
    %v2046 = vpop.f32.mrf.mxu0
    %2047 = vmatprep.mubr.f32.mxu0 0.0
    %2048 = vmatmul.mubr.f32.gmra.mxu0 %v26
    %v2049 = vpop.f32.mrf.mxu0
    %v2050 = vadd.f32 0.0, %v2049
    %v2051 = vpop.f32.mrf.mxu0
    %2052 = vmatprep.mubr.f32.mxu0 0.0
    %2053 = vmatmul.mubr.f32.gmra.mxu0 %v27
    %v2054 = vpop.f32.mrf.mxu0
    %v2055 = vadd.f32 0.0, %v2054
    %v2056 = vpop.f32.mrf.mxu0
    %2057 = vmatprep.mubr.f32.mxu0 0.0
    %2058 = vmatmul.mubr.f32.gmra.mxu0 %v28
    %v2059 = vpop.f32.mrf.mxu0
    %v2060 = vadd.f32 0.0, %v2059
    %v2061 = vpop.f32.mrf.mxu0
    %2062 = vmatprep.mubr.f32.mxu0 0.0
    %2063 = vmatmul.mubr.f32.gmra.mxu0 %v29
    %v2064 = vpop.f32.mrf.mxu0
    %v2065 = vadd.f32 0.0, %v2064
    %v2066 = vpop.f32.mrf.mxu0
    %2067 = vmatprep.mubr.f32.mxu0 0.0
    %2068 = vmatmul.mubr.f32.gmra.mxu0 %v30
    %v2069 = vpop.f32.mrf.mxu0
    %v2070 = vadd.f32 0.0, %v2069
    %v2071 = vpop.f32.mrf.mxu0
    %2072 = vmatprep.mubr.f32.mxu0 0.0
    %2073 = vmatmul.mubr.f32.gmra.mxu0 %v31
    %v2074 = vpop.f32.mrf.mxu0
    %v2075 = vadd.f32 0.0, %v2074
    %v2076 = vpop.f32.mrf.mxu0
    %2077 = vmatprep.mubr.f32.mxu0 0.0
    %2078 = vmatmul.mubr.f32.gmra.mxu0 %v32
    %v2079 = vpop.f32.mrf.mxu0
    %v2080 = vadd.f32 0.0, %v2079
    %v2081 = vpop.f32.mrf.mxu0
    %2082 = vmatprep.mubr.f32.mxu0 0.0
    %2083 = vmatmul.mubr.f32.gmra.mxu0 %v33
    %v2084 = vpop.f32.mrf.mxu0
    %v2085 = vadd.f32 0.0, %v2084
    %v2086 = vpop.f32.mrf.mxu0
    %2087 = vdwg.mxu0
    %2104 = vrot.lane.b32.xlu0 %v2010, 32
    %v2105 = vpop.permute.xlu0 %2104
    %2106 = vrot.lane.b32.xlu0 %v2015, 32
    %v2107 = vpop.permute.xlu0 %2106
    %2108 = vrot.lane.b32.xlu0 %v2020, 32
    %v2109 = vpop.permute.xlu0 %2108
    %2110 = vrot.lane.b32.xlu0 %v2025, 32
    %v2111 = vpop.permute.xlu0 %2110
    %2112 = vrot.lane.b32.xlu0 %v2030, 32
    %v2113 = vpop.permute.xlu0 %2112
    %2114 = vrot.lane.b32.xlu0 %v2035, 32
    %v2115 = vpop.permute.xlu0 %2114
    %2116 = vrot.lane.b32.xlu0 %v2040, 32
    %v2117 = vpop.permute.xlu0 %2116
    %2118 = vrot.lane.b32.xlu0 %v2045, 32
    %v2119 = vpop.permute.xlu0 %2118
    %2120 = vrot.lane.b32.xlu0 %v2050, 32
    %v2121 = vpop.permute.xlu0 %2120
    %2122 = vrot.lane.b32.xlu0 %v2055, 32
    %v2123 = vpop.permute.xlu0 %2122
    %2124 = vrot.lane.b32.xlu0 %v2060, 32
    %v2125 = vpop.permute.xlu0 %2124
    %2126 = vrot.lane.b32.xlu0 %v2065, 32
    %v2127 = vpop.permute.xlu0 %2126
    %2128 = vrot.lane.b32.xlu0 %v2070, 32
    %v2129 = vpop.permute.xlu0 %2128
    %2130 = vrot.lane.b32.xlu0 %v2075, 32
    %v2131 = vpop.permute.xlu0 %2130
    %2132 = vrot.lane.b32.xlu0 %v2080, 32
    %v2133 = vpop.permute.xlu0 %2132
    %2134 = vrot.lane.b32.xlu0 %v2085, 32
    %v2135 = vpop.permute.xlu0 %2134
    %v2152 = vsel %vm244, %v1927, %v2105
    %v2153 = vsel %vm244, %v1928, %v2107
    %v2154 = vsel %vm244, %v1929, %v2109
    %v2155 = vsel %vm244, %v1930, %v2111
    %v2156 = vsel %vm244, %v1931, %v2113
    %v2157 = vsel %vm244, %v1932, %v2115
    %v2158 = vsel %vm244, %v1933, %v2117
    %v2159 = vsel %vm244, %v1934, %v2119
    %v2160 = vsel %vm244, %v1935, %v2121
    %v2161 = vsel %vm244, %v1936, %v2123
    %v2162 = vsel %vm244, %v1937, %v2125
    %v2163 = vsel %vm244, %v1938, %v2127
    %v2164 = vsel %vm244, %v1939, %v2129
    %v2165 = vsel %vm244, %v1940, %v2131
    %v2166 = vsel %vm244, %v1941, %v2133
    %v2167 = vsel %vm244, %v1942, %v2135
    %v2169 = vsel %vm718, %v2152, 0
    %v2172 = vsel %vm718, %v2153, 0
    %v2175 = vsel %vm718, %v2154, 0
    %v2178 = vsel %vm718, %v2155, 0
    %v2181 = vsel %vm718, %v2156, 0
    %v2184 = vsel %vm718, %v2157, 0
    %v2187 = vsel %vm718, %v2158, 0
    %v2190 = vsel %vm718, %v2159, 0
    %v2193 = vsel %vm718, %v2160, 0
    %v2196 = vsel %vm718, %v2161, 0
    %v2199 = vsel %vm718, %v2162, 0
    %v2202 = vsel %vm718, %v2163, 0
    %v2205 = vsel %vm718, %v2164, 0
    %v2208 = vsel %vm718, %v2165, 0
    %v2211 = vsel %vm718, %v2166, 0
    %v2214 = vsel %vm718, %v2167, 0
    %2216 = vmatprep.subr.mxu0 0.0
    %2217 = vmatpush1.msra.mxu0 0.0
    %2218 = vmatprep.subr.mxu0 0.0
    %2219 = vmatpush1.msra.mxu0 0.0
    %2220 = vmatprep.subr.mxu0 0.0
    %2221 = vmatpush1.msra.mxu0 0.0
    %2222 = vmatprep.subr.mxu0 0.0
    %2223 = vmatpush1.msra.mxu0 0.0
    %2224 = vmatprep.subr.mxu0 0.0
    %2225 = vmatpush1.msra.mxu0 0.0
    %2226 = vmatprep.subr.mxu0 0.0
    %2227 = vmatpush1.msra.mxu0 0.0
    %2228 = vmatprep.subr.mxu0 0.0
    %2229 = vmatpush1.msra.mxu0 0.0
    %2230 = vmatprep.subr.mxu0 0.0
    %2231 = vmatpush1.msra.mxu0 0.0
    %2232 = vmatprep.subr.mxu0 0.0
    %2233 = vmatpush1.msra.mxu0 %v1418
    %2234 = vmatprep.subr.mxu0 0.0
    %2235 = vmatpush1.msra.mxu0 %v1417
    %2236 = vmatprep.subr.mxu0 0.0
    %2237 = vmatpush1.msra.mxu0 %v1416
    %2238 = vmatprep.subr.mxu0 0.0
    %2239 = vmatpush1.msra.mxu0 %v1415
    %2240 = vmatprep.subr.mxu0 0.0
    %2241 = vmatpush1.msra.mxu0 %v1414
    %2242 = vmatprep.subr.mxu0 0.0
    %2243 = vmatpush1.msra.mxu0 %v1413
    %2244 = vmatprep.subr.mxu0 0.0
    %2245 = vmatpush1.msra.mxu0 %v1412
    %2246 = vmatprep.subr.mxu0 0.0
    %2247 = vmatpush1.msra.mxu0 %v1411
    %2248 = vmatprep.subr.mxu0 0.0
    %2249 = vmatpush2.msra.mxu0 0.0
    %2250 = vmatprep.subr.mxu0 0.0
    %2251 = vmatpush2.msra.mxu0 0.0
    %2252 = vmatprep.subr.mxu0 0.0
    %2253 = vmatpush2.msra.mxu0 0.0
    %2254 = vmatprep.subr.mxu0 0.0
    %2255 = vmatpush2.msra.mxu0 0.0
    %2256 = vmatprep.subr.mxu0 0.0
    %2257 = vmatpush2.msra.mxu0 0.0
    %2258 = vmatprep.subr.mxu0 0.0
    %2259 = vmatpush2.msra.mxu0 0.0
    %2260 = vmatprep.subr.mxu0 0.0
    %2261 = vmatpush2.msra.mxu0 0.0
    %2262 = vmatprep.subr.mxu0 0.0
    %2263 = vmatpush2.msra.mxu0 0.0
    %2264 = vmatprep.subr.mxu0 0.0
    %2265 = vmatpush2.msra.mxu0 0.0
    %2266 = vmatprep.subr.mxu0 0.0
    %2267 = vmatpush2.msra.mxu0 0.0
    %2268 = vmatprep.subr.mxu0 0.0
    %2269 = vmatpush2.msra.mxu0 0.0
    %2270 = vmatprep.subr.mxu0 0.0
    %2271 = vmatpush2.msra.mxu0 0.0
    %2272 = vmatprep.subr.mxu0 0.0
    %2273 = vmatpush2.msra.mxu0 0.0
    %2274 = vmatprep.subr.mxu0 0.0
    %2275 = vmatpush2.msra.mxu0 0.0
    %2276 = vmatprep.subr.mxu0 0.0
    %2277 = vmatpush2.msra.mxu0 0.0
    %2278 = vmatprep.subr.mxu0 0.0
    %2279 = vmatpush2.msra.mxu0 0.0
    %2280 = vmatprep.mubr.f32.mxu0 0.0
    %2281 = vmatmul.mubr.f32.gmra.mxu0 %v2169
    %v2282 = vpop.f32.mrf.mxu0
    %v2283 = vadd.f32 %v1445, %v2282
    %v2284 = vpop.f32.mrf.mxu0
    %2285 = vmatprep.mubr.f32.mxu0 0.0
    %2286 = vmatmul.mubr.f32.gmra.mxu0 %v2172
    %v2287 = vpop.f32.mrf.mxu0
    %v2288 = vadd.f32 %v1446, %v2287
    %v2289 = vpop.f32.mrf.mxu0
    %2290 = vmatprep.mubr.f32.mxu0 0.0
    %2291 = vmatmul.mubr.f32.gmra.mxu0 %v2175
    %v2292 = vpop.f32.mrf.mxu0
    %v2293 = vadd.f32 %v1447, %v2292
    %v2294 = vpop.f32.mrf.mxu0
    %2295 = vmatprep.mubr.f32.mxu0 0.0
    %2296 = vmatmul.mubr.f32.gmra.mxu0 %v2178
    %v2297 = vpop.f32.mrf.mxu0
    %v2298 = vadd.f32 %v1448, %v2297
    %v2299 = vpop.f32.mrf.mxu0
    %2300 = vmatprep.mubr.f32.mxu0 0.0
    %2301 = vmatmul.mubr.f32.gmra.mxu0 %v2181
    %v2302 = vpop.f32.mrf.mxu0
    %v2303 = vadd.f32 %v1449, %v2302
    %v2304 = vpop.f32.mrf.mxu0
    %2305 = vmatprep.mubr.f32.mxu0 0.0
    %2306 = vmatmul.mubr.f32.gmra.mxu0 %v2184
    %v2307 = vpop.f32.mrf.mxu0
    %v2308 = vadd.f32 %v1450, %v2307
    %v2309 = vpop.f32.mrf.mxu0
    %2310 = vmatprep.mubr.f32.mxu0 0.0
    %2311 = vmatmul.mubr.f32.gmra.mxu0 %v2187
    %v2312 = vpop.f32.mrf.mxu0
    %v2313 = vadd.f32 %v1451, %v2312
    %v2314 = vpop.f32.mrf.mxu0
    %2315 = vmatprep.mubr.f32.mxu0 0.0
    %2316 = vmatmul.mubr.f32.gmra.mxu0 %v2190
    %v2317 = vpop.f32.mrf.mxu0
    %v2318 = vadd.f32 %v1452, %v2317
    %v2319 = vpop.f32.mrf.mxu0
    %2320 = vmatprep.mubr.f32.mxu0 0.0
    %2321 = vmatmul.mubr.f32.gmra.mxu0 %v2193
    %v2322 = vpop.f32.mrf.mxu0
    %v2323 = vadd.f32 %v1453, %v2322
    %v2324 = vpop.f32.mrf.mxu0
    %2325 = vmatprep.mubr.f32.mxu0 0.0
    %2326 = vmatmul.mubr.f32.gmra.mxu0 %v2196
    %v2327 = vpop.f32.mrf.mxu0
    %v2328 = vadd.f32 %v1454, %v2327
    %v2329 = vpop.f32.mrf.mxu0
    %2330 = vmatprep.mubr.f32.mxu0 0.0
    %2331 = vmatmul.mubr.f32.gmra.mxu0 %v2199
    %v2332 = vpop.f32.mrf.mxu0
    %v2333 = vadd.f32 %v1455, %v2332
    %v2334 = vpop.f32.mrf.mxu0
    %2335 = vmatprep.mubr.f32.mxu0 0.0
    %2336 = vmatmul.mubr.f32.gmra.mxu0 %v2202
    %v2337 = vpop.f32.mrf.mxu0
    %v2338 = vadd.f32 %v1456, %v2337
    %v2339 = vpop.f32.mrf.mxu0
    %2340 = vmatprep.mubr.f32.mxu0 0.0
    %2341 = vmatmul.mubr.f32.gmra.mxu0 %v2205
    %v2342 = vpop.f32.mrf.mxu0
    %v2343 = vadd.f32 %v1457, %v2342
    %v2344 = vpop.f32.mrf.mxu0
    %2345 = vmatprep.mubr.f32.mxu0 0.0
    %2346 = vmatmul.mubr.f32.gmra.mxu0 %v2208
    %v2347 = vpop.f32.mrf.mxu0
    %v2348 = vadd.f32 %v1458, %v2347
    %v2349 = vpop.f32.mrf.mxu0
    %2350 = vmatprep.mubr.f32.mxu0 0.0
    %2351 = vmatmul.mubr.f32.gmra.mxu0 %v2211
    %v2352 = vpop.f32.mrf.mxu0
    %v2353 = vadd.f32 %v1459, %v2352
    %v2354 = vpop.f32.mrf.mxu0
    %2355 = vmatprep.mubr.f32.mxu0 0.0
    %2356 = vmatmul.mubr.f32.gmra.mxu0 %v2214
    %v2357 = vpop.f32.mrf.mxu0
    %v2358 = vadd.f32 %v1460, %v2357
    %v2359 = vpop.f32.mrf.mxu0
    %2360 = vdwg.mxu0
    %v2361 = vmax.f32 %v2283, 0.0
    %v2362 = vmax.f32 %v2288, 0.0
    %v2363 = vmax.f32 %v2293, 0.0
    %v2364 = vmax.f32 %v2298, 0.0
    %v2365 = vmax.f32 %v2303, 0.0
    %v2366 = vmax.f32 %v2308, 0.0
    %v2367 = vmax.f32 %v2313, 0.0
    %v2368 = vmax.f32 %v2318, 0.0
    %v2369 = vmax.f32 %v2323, 0.0
    %v2370 = vmax.f32 %v2328, 0.0
    %v2371 = vmax.f32 %v2333, 0.0
    %v2372 = vmax.f32 %v2338, 0.0
    %v2373 = vmax.f32 %v2343, 0.0
    %v2374 = vmax.f32 %v2348, 0.0
    %v2375 = vmax.f32 %v2353, 0.0
    %v2376 = vmax.f32 %v2358, 0.0
    %2377 = vst.msk [vmem:[%s409] sm:$0xff] %vm244, %v2361
    %2378 = vst.msk [vmem:[%s409 + $0x8] sm:$0xff] %vm244, %v2362
    %2379 = vst.msk [vmem:[%s409 + $0x10] sm:$0xff] %vm244, %v2363
    %2380 = vst.msk [vmem:[%s409 + $0x18] sm:$0xff] %vm244, %v2364
    %2381 = vst.msk [vmem:[%s409 + $0x20] sm:$0xff] %vm244, %v2365
    %2382 = vst.msk [vmem:[%s409 + $0x28] sm:$0xff] %vm244, %v2366
    %2383 = vst.msk [vmem:[%s409 + $0x30] sm:$0xff] %vm244, %v2367
    %2384 = vst.msk [vmem:[%s409 + $0x38] sm:$0xff] %vm244, %v2368
    %2385 = vst.msk [vmem:[%s409 + $0x40] sm:$0xff] %vm244, %v2369
    %2386 = vst.msk [vmem:[%s409 + $0x48] sm:$0xff] %vm244, %v2370
    %2387 = vst.msk [vmem:[%s409 + $0x50] sm:$0xff] %vm244, %v2371
    %2388 = vst.msk [vmem:[%s409 + $0x58] sm:$0xff] %vm244, %v2372
    %2389 = vst.msk [vmem:[%s409 + $0x60] sm:$0xff] %vm244, %v2373
    %2390 = vst.msk [vmem:[%s409 + $0x68] sm:$0xff] %vm244, %v2374
    %2391 = vst.msk [vmem:[%s409 + $0x70] sm:$0xff] %vm244, %v2375
    %2392 = vst.msk [vmem:[%s409 + $0x78] sm:$0xff] %vm244, %v2376
    %s2393 = scalar_lea.vmem %s2, 128
    %v2394 = vld [vmem:[%s2393] sm:$0xff]
    %v2395 = vld [vmem:[%s2393 + $0x8] sm:$0xff]
    %v2396 = vld [vmem:[%s2393 + $0x10] sm:$0xff]
    %v2397 = vld [vmem:[%s2393 + $0x18] sm:$0xff]
    %v2398 = vld [vmem:[%s2393 + $0x20] sm:$0xff]
    %v2399 = vld [vmem:[%s2393 + $0x28] sm:$0xff]
    %v2400 = vld [vmem:[%s2393 + $0x30] sm:$0xff]
    %v2401 = vld [vmem:[%s2393 + $0x38] sm:$0xff]
    %v2402 = vld [vmem:[%s3 + $0x14] sm:$0x1]
    %v2403 = vld [vmem:[%s3 + $0x15] sm:$0x1]
    %v2404 = vlaneseq
    %v2405 = vshrl.u32 %v2404, 7
    %v2406 = vsub.s32 0, %v2405
    %v2407 = vrot.slane %v2403, %v2406
    %v2408 = vmul.f32 %v35, %v2407
    %v2409 = vmul.f32 %v37, %v2407
    %v2410 = vmul.f32 %v39, %v2407
    %v2411 = vmul.f32 %v41, %v2407
    %v2412 = vmul.f32 %v43, %v2407
    %v2413 = vmul.f32 %v45, %v2407
    %v2414 = vmul.f32 %v47, %v2407
    %v2415 = vmul.f32 %v49, %v2407
    %v2416 = vmul.f32 %v51, %v2407
    %v2417 = vmul.f32 %v53, %v2407
    %v2418 = vmul.f32 %v55, %v2407
    %v2419 = vmul.f32 %v57, %v2407
    %v2420 = vmul.f32 %v59, %v2407
    %v2421 = vmul.f32 %v61, %v2407
    %v2422 = vmul.f32 %v63, %v2407
    %v2423 = vmul.f32 %v65, %v2407
    %v2424 = vlaneseq
    %v2425 = vshrl.u32 %v2424, 7
    %v2426 = vsub.s32 0, %v2425
    %v2427 = vrot.slane %v2402, %v2426
    %v2428 = vadd.f32 %v2427, %v2408
    %v2429 = vadd.f32 %v2427, %v2409
    %v2430 = vadd.f32 %v2427, %v2410
    %v2431 = vadd.f32 %v2427, %v2411
    %v2432 = vadd.f32 %v2427, %v2412
    %v2433 = vadd.f32 %v2427, %v2413
    %v2434 = vadd.f32 %v2427, %v2414
    %v2435 = vadd.f32 %v2427, %v2415
    %v2436 = vadd.f32 %v2427, %v2416
    %v2437 = vadd.f32 %v2427, %v2417
    %v2438 = vadd.f32 %v2427, %v2418
    %v2439 = vadd.f32 %v2427, %v2419
    %v2440 = vadd.f32 %v2427, %v2420
    %v2441 = vadd.f32 %v2427, %v2421
    %v2442 = vadd.f32 %v2427, %v2422
    %v2443 = vadd.f32 %v2427, %v2423
    %v2444 = vld [vmem:[#allocation2] sm:$0xff]
    %v2445 = vld [vmem:[#allocation2 + $0x8] sm:$0xff]
    %v2446 = vld [vmem:[#allocation2 + $0x10] sm:$0xff]
    %v2447 = vld [vmem:[#allocation2 + $0x18] sm:$0xff]
    %v2448 = vld [vmem:[#allocation2 + $0x20] sm:$0xff]
    %v2449 = vld [vmem:[#allocation2 + $0x28] sm:$0xff]
    %v2450 = vld [vmem:[#allocation2 + $0x30] sm:$0xff]
    %v2451 = vld [vmem:[#allocation2 + $0x38] sm:$0xff]
    %v2452 = vld [vmem:[#allocation2 + $0x40] sm:$0xff]
    %v2453 = vld [vmem:[#allocation2 + $0x48] sm:$0xff]
    %v2454 = vld [vmem:[#allocation2 + $0x50] sm:$0xff]
    %v2455 = vld [vmem:[#allocation2 + $0x58] sm:$0xff]
    %v2456 = vld [vmem:[#allocation2 + $0x60] sm:$0xff]
    %v2457 = vld [vmem:[#allocation2 + $0x68] sm:$0xff]
    %v2458 = vld [vmem:[#allocation2 + $0x70] sm:$0xff]
    %v2459 = vld [vmem:[#allocation2 + $0x78] sm:$0xff]
    %2460 = vmatprep.subr.mxu0 0.0
    %2461 = vmatpush1.msra.mxu0 %v2459
    %2462 = vmatprep.subr.mxu0 0.0
    %2463 = vmatpush1.msra.mxu0 %v2458
    %2464 = vmatprep.subr.mxu0 0.0
    %2465 = vmatpush1.msra.mxu0 %v2457
    %2466 = vmatprep.subr.mxu0 0.0
    %2467 = vmatpush1.msra.mxu0 %v2456
    %2468 = vmatprep.subr.mxu0 0.0
    %2469 = vmatpush1.msra.mxu0 %v2455
    %2470 = vmatprep.subr.mxu0 0.0
    %2471 = vmatpush1.msra.mxu0 %v2454
    %2472 = vmatprep.subr.mxu0 0.0
    %2473 = vmatpush1.msra.mxu0 %v2453
    %2474 = vmatprep.subr.mxu0 0.0
    %2475 = vmatpush1.msra.mxu0 %v2452
    %2476 = vmatprep.subr.mxu0 0.0
    %2477 = vmatpush1.msra.mxu0 %v2451
    %2478 = vmatprep.subr.mxu0 0.0
    %2479 = vmatpush1.msra.mxu0 %v2450
    %2480 = vmatprep.subr.mxu0 0.0
    %2481 = vmatpush1.msra.mxu0 %v2449
    %2482 = vmatprep.subr.mxu0 0.0
    %2483 = vmatpush1.msra.mxu0 %v2448
    %2484 = vmatprep.subr.mxu0 0.0
    %2485 = vmatpush1.msra.mxu0 %v2447
    %2486 = vmatprep.subr.mxu0 0.0
    %2487 = vmatpush1.msra.mxu0 %v2446
    %2488 = vmatprep.subr.mxu0 0.0
    %2489 = vmatpush1.msra.mxu0 %v2445
    %2490 = vmatprep.subr.mxu0 0.0
    %2491 = vmatpush1.msra.mxu0 %v2444
    %2492 = vmatprep.subr.mxu0 0.0
    %2493 = vmatpush2.msra.mxu0 0.0
    %2494 = vmatprep.subr.mxu0 0.0
    %2495 = vmatpush2.msra.mxu0 0.0
    %2496 = vmatprep.subr.mxu0 0.0
    %2497 = vmatpush2.msra.mxu0 0.0
    %2498 = vmatprep.subr.mxu0 0.0
    %2499 = vmatpush2.msra.mxu0 0.0
    %2500 = vmatprep.subr.mxu0 0.0
    %2501 = vmatpush2.msra.mxu0 0.0
    %2502 = vmatprep.subr.mxu0 0.0
    %2503 = vmatpush2.msra.mxu0 0.0
    %2504 = vmatprep.subr.mxu0 0.0
    %2505 = vmatpush2.msra.mxu0 0.0
    %2506 = vmatprep.subr.mxu0 0.0
    %2507 = vmatpush2.msra.mxu0 0.0
    %2508 = vmatprep.subr.mxu0 0.0
    %2509 = vmatpush2.msra.mxu0 0.0
    %2510 = vmatprep.subr.mxu0 0.0
    %2511 = vmatpush2.msra.mxu0 0.0
    %2512 = vmatprep.subr.mxu0 0.0
    %2513 = vmatpush2.msra.mxu0 0.0
    %2514 = vmatprep.subr.mxu0 0.0
    %2515 = vmatpush2.msra.mxu0 0.0
    %2516 = vmatprep.subr.mxu0 0.0
    %2517 = vmatpush2.msra.mxu0 0.0
    %2518 = vmatprep.subr.mxu0 0.0
    %2519 = vmatpush2.msra.mxu0 0.0
    %2520 = vmatprep.subr.mxu0 0.0
    %2521 = vmatpush2.msra.mxu0 0.0
    %2522 = vmatprep.subr.mxu0 0.0
    %2523 = vmatpush2.msra.mxu0 0.0
    %2524 = vmatprep.mubr.f32.mxu0 0.0
    %2525 = vmatmul.mubr.f32.gmra.mxu0 %v18
    %v2526 = vpop.f32.mrf.mxu0
    %v2527 = vadd.f32 0.0, %v2526
    %v2528 = vpop.f32.mrf.mxu0
    %2529 = vmatprep.mubr.f32.mxu0 0.0
    %2530 = vmatmul.mubr.f32.gmra.mxu0 %v19
    %v2531 = vpop.f32.mrf.mxu0
    %v2532 = vadd.f32 0.0, %v2531
    %v2533 = vpop.f32.mrf.mxu0
    %2534 = vmatprep.mubr.f32.mxu0 0.0
    %2535 = vmatmul.mubr.f32.gmra.mxu0 %v20
    %v2536 = vpop.f32.mrf.mxu0
    %v2537 = vadd.f32 0.0, %v2536
    %v2538 = vpop.f32.mrf.mxu0
    %2539 = vmatprep.mubr.f32.mxu0 0.0
    %2540 = vmatmul.mubr.f32.gmra.mxu0 %v21
    %v2541 = vpop.f32.mrf.mxu0
    %v2542 = vadd.f32 0.0, %v2541
    %v2543 = vpop.f32.mrf.mxu0
    %2544 = vmatprep.mubr.f32.mxu0 0.0
    %2545 = vmatmul.mubr.f32.gmra.mxu0 %v22
    %v2546 = vpop.f32.mrf.mxu0
    %v2547 = vadd.f32 0.0, %v2546
    %v2548 = vpop.f32.mrf.mxu0
    %2549 = vmatprep.mubr.f32.mxu0 0.0
    %2550 = vmatmul.mubr.f32.gmra.mxu0 %v23
    %v2551 = vpop.f32.mrf.mxu0
    %v2552 = vadd.f32 0.0, %v2551
    %v2553 = vpop.f32.mrf.mxu0
    %2554 = vmatprep.mubr.f32.mxu0 0.0
    %2555 = vmatmul.mubr.f32.gmra.mxu0 %v24
    %v2556 = vpop.f32.mrf.mxu0
    %v2557 = vadd.f32 0.0, %v2556
    %v2558 = vpop.f32.mrf.mxu0
    %2559 = vmatprep.mubr.f32.mxu0 0.0
    %2560 = vmatmul.mubr.f32.gmra.mxu0 %v25
    %v2561 = vpop.f32.mrf.mxu0
    %v2562 = vadd.f32 0.0, %v2561
    %v2563 = vpop.f32.mrf.mxu0
    %2564 = vmatprep.mubr.f32.mxu0 0.0
    %2565 = vmatmul.mubr.f32.gmra.mxu0 %v26
    %v2566 = vpop.f32.mrf.mxu0
    %v2567 = vadd.f32 0.0, %v2566
    %v2568 = vpop.f32.mrf.mxu0
    %2569 = vmatprep.mubr.f32.mxu0 0.0
    %2570 = vmatmul.mubr.f32.gmra.mxu0 %v27
    %v2571 = vpop.f32.mrf.mxu0
    %v2572 = vadd.f32 0.0, %v2571
    %v2573 = vpop.f32.mrf.mxu0
    %2574 = vmatprep.mubr.f32.mxu0 0.0
    %2575 = vmatmul.mubr.f32.gmra.mxu0 %v28
    %v2576 = vpop.f32.mrf.mxu0
    %v2577 = vadd.f32 0.0, %v2576
    %v2578 = vpop.f32.mrf.mxu0
    %2579 = vmatprep.mubr.f32.mxu0 0.0
    %2580 = vmatmul.mubr.f32.gmra.mxu0 %v29
    %v2581 = vpop.f32.mrf.mxu0
    %v2582 = vadd.f32 0.0, %v2581
    %v2583 = vpop.f32.mrf.mxu0
    %2584 = vmatprep.mubr.f32.mxu0 0.0
    %2585 = vmatmul.mubr.f32.gmra.mxu0 %v30
    %v2586 = vpop.f32.mrf.mxu0
    %v2587 = vadd.f32 0.0, %v2586
    %v2588 = vpop.f32.mrf.mxu0
    %2589 = vmatprep.mubr.f32.mxu0 0.0
    %2590 = vmatmul.mubr.f32.gmra.mxu0 %v31
    %v2591 = vpop.f32.mrf.mxu0
    %v2592 = vadd.f32 0.0, %v2591
    %v2593 = vpop.f32.mrf.mxu0
    %2594 = vmatprep.mubr.f32.mxu0 0.0
    %2595 = vmatmul.mubr.f32.gmra.mxu0 %v32
    %v2596 = vpop.f32.mrf.mxu0
    %v2597 = vadd.f32 0.0, %v2596
    %v2598 = vpop.f32.mrf.mxu0
    %2599 = vmatprep.mubr.f32.mxu0 0.0
    %2600 = vmatmul.mubr.f32.gmra.mxu0 %v33
    %v2601 = vpop.f32.mrf.mxu0
    %v2602 = vadd.f32 0.0, %v2601
    %v2603 = vpop.f32.mrf.mxu0
    %2604 = vdwg.mxu0
    %2621 = vrot.lane.b32.xlu0 %v2527, 32
    %v2622 = vpop.permute.xlu0 %2621
    %2623 = vrot.lane.b32.xlu0 %v2532, 32
    %v2624 = vpop.permute.xlu0 %2623
    %2625 = vrot.lane.b32.xlu0 %v2537, 32
    %v2626 = vpop.permute.xlu0 %2625
    %2627 = vrot.lane.b32.xlu0 %v2542, 32
    %v2628 = vpop.permute.xlu0 %2627
    %2629 = vrot.lane.b32.xlu0 %v2547, 32
    %v2630 = vpop.permute.xlu0 %2629
    %2631 = vrot.lane.b32.xlu0 %v2552, 32
    %v2632 = vpop.permute.xlu0 %2631
    %2633 = vrot.lane.b32.xlu0 %v2557, 32
    %v2634 = vpop.permute.xlu0 %2633
    %2635 = vrot.lane.b32.xlu0 %v2562, 32
    %v2636 = vpop.permute.xlu0 %2635
    %2637 = vrot.lane.b32.xlu0 %v2567, 32
    %v2638 = vpop.permute.xlu0 %2637
    %2639 = vrot.lane.b32.xlu0 %v2572, 32
    %v2640 = vpop.permute.xlu0 %2639
    %2641 = vrot.lane.b32.xlu0 %v2577, 32
    %v2642 = vpop.permute.xlu0 %2641
    %2643 = vrot.lane.b32.xlu0 %v2582, 32
    %v2644 = vpop.permute.xlu0 %2643
    %2645 = vrot.lane.b32.xlu0 %v2587, 32
    %v2646 = vpop.permute.xlu0 %2645
    %2647 = vrot.lane.b32.xlu0 %v2592, 32
    %v2648 = vpop.permute.xlu0 %2647
    %2649 = vrot.lane.b32.xlu0 %v2597, 32
    %v2650 = vpop.permute.xlu0 %2649
    %2651 = vrot.lane.b32.xlu0 %v2602, 32
    %v2652 = vpop.permute.xlu0 %2651
    %v2669 = vsel %vm244, %v2444, %v2622
    %v2670 = vsel %vm244, %v2445, %v2624
    %v2671 = vsel %vm244, %v2446, %v2626
    %v2672 = vsel %vm244, %v2447, %v2628
    %v2673 = vsel %vm244, %v2448, %v2630
    %v2674 = vsel %vm244, %v2449, %v2632
    %v2675 = vsel %vm244, %v2450, %v2634
    %v2676 = vsel %vm244, %v2451, %v2636
    %v2677 = vsel %vm244, %v2452, %v2638
    %v2678 = vsel %vm244, %v2453, %v2640
    %v2679 = vsel %vm244, %v2454, %v2642
    %v2680 = vsel %vm244, %v2455, %v2644
    %v2681 = vsel %vm244, %v2456, %v2646
    %v2682 = vsel %vm244, %v2457, %v2648
    %v2683 = vsel %vm244, %v2458, %v2650
    %v2684 = vsel %vm244, %v2459, %v2652
    %v2686 = vsel %vm718, %v2669, 0
    %v2689 = vsel %vm718, %v2670, 0
    %v2692 = vsel %vm718, %v2671, 0
    %v2695 = vsel %vm718, %v2672, 0
    %v2698 = vsel %vm718, %v2673, 0
    %v2701 = vsel %vm718, %v2674, 0
    %v2704 = vsel %vm718, %v2675, 0
    %v2707 = vsel %vm718, %v2676, 0
    %v2710 = vsel %vm718, %v2677, 0
    %v2713 = vsel %vm718, %v2678, 0
    %v2716 = vsel %vm718, %v2679, 0
    %v2719 = vsel %vm718, %v2680, 0
    %v2722 = vsel %vm718, %v2681, 0
    %v2725 = vsel %vm718, %v2682, 0
    %v2728 = vsel %vm718, %v2683, 0
    %v2731 = vsel %vm718, %v2684, 0
    %2733 = vmatprep.subr.mxu0 0.0
    %2734 = vmatpush1.msra.mxu0 0.0
    %2735 = vmatprep.subr.mxu0 0.0
    %2736 = vmatpush1.msra.mxu0 0.0
    %2737 = vmatprep.subr.mxu0 0.0
    %2738 = vmatpush1.msra.mxu0 0.0
    %2739 = vmatprep.subr.mxu0 0.0
    %2740 = vmatpush1.msra.mxu0 0.0
    %2741 = vmatprep.subr.mxu0 0.0
    %2742 = vmatpush1.msra.mxu0 0.0
    %2743 = vmatprep.subr.mxu0 0.0
    %2744 = vmatpush1.msra.mxu0 0.0
    %2745 = vmatprep.subr.mxu0 0.0
    %2746 = vmatpush1.msra.mxu0 0.0
    %2747 = vmatprep.subr.mxu0 0.0
    %2748 = vmatpush1.msra.mxu0 0.0
    %2749 = vmatprep.subr.mxu0 0.0
    %2750 = vmatpush1.msra.mxu0 %v2401
    %2751 = vmatprep.subr.mxu0 0.0
    %2752 = vmatpush1.msra.mxu0 %v2400
    %2753 = vmatprep.subr.mxu0 0.0
    %2754 = vmatpush1.msra.mxu0 %v2399
    %2755 = vmatprep.subr.mxu0 0.0
    %2756 = vmatpush1.msra.mxu0 %v2398
    %2757 = vmatprep.subr.mxu0 0.0
    %2758 = vmatpush1.msra.mxu0 %v2397
    %2759 = vmatprep.subr.mxu0 0.0
    %2760 = vmatpush1.msra.mxu0 %v2396
    %2761 = vmatprep.subr.mxu0 0.0
    %2762 = vmatpush1.msra.mxu0 %v2395
    %2763 = vmatprep.subr.mxu0 0.0
    %2764 = vmatpush1.msra.mxu0 %v2394
    %2765 = vmatprep.subr.mxu0 0.0
    %2766 = vmatpush2.msra.mxu0 0.0
    %2767 = vmatprep.subr.mxu0 0.0
    %2768 = vmatpush2.msra.mxu0 0.0
    %2769 = vmatprep.subr.mxu0 0.0
    %2770 = vmatpush2.msra.mxu0 0.0
    %2771 = vmatprep.subr.mxu0 0.0
    %2772 = vmatpush2.msra.mxu0 0.0
    %2773 = vmatprep.subr.mxu0 0.0
    %2774 = vmatpush2.msra.mxu0 0.0
    %2775 = vmatprep.subr.mxu0 0.0
    %2776 = vmatpush2.msra.mxu0 0.0
    %2777 = vmatprep.subr.mxu0 0.0
    %2778 = vmatpush2.msra.mxu0 0.0
    %2779 = vmatprep.subr.mxu0 0.0
    %2780 = vmatpush2.msra.mxu0 0.0
    %2781 = vmatprep.subr.mxu0 0.0
    %2782 = vmatpush2.msra.mxu0 0.0
    %2783 = vmatprep.subr.mxu0 0.0
    %2784 = vmatpush2.msra.mxu0 0.0
    %2785 = vmatprep.subr.mxu0 0.0
    %2786 = vmatpush2.msra.mxu0 0.0
    %2787 = vmatprep.subr.mxu0 0.0
    %2788 = vmatpush2.msra.mxu0 0.0
    %2789 = vmatprep.subr.mxu0 0.0
    %2790 = vmatpush2.msra.mxu0 0.0
    %2791 = vmatprep.subr.mxu0 0.0
    %2792 = vmatpush2.msra.mxu0 0.0
    %2793 = vmatprep.subr.mxu0 0.0
    %2794 = vmatpush2.msra.mxu0 0.0
    %2795 = vmatprep.subr.mxu0 0.0
    %2796 = vmatpush2.msra.mxu0 0.0
    %2797 = vmatprep.mubr.f32.mxu0 0.0
    %2798 = vmatmul.mubr.f32.gmra.mxu0 %v2686
    %v2799 = vpop.f32.mrf.mxu0
    %v2800 = vadd.f32 %v2428, %v2799
    %v2801 = vpop.f32.mrf.mxu0
    %2802 = vmatprep.mubr.f32.mxu0 0.0
    %2803 = vmatmul.mubr.f32.gmra.mxu0 %v2689
    %v2804 = vpop.f32.mrf.mxu0
    %v2805 = vadd.f32 %v2429, %v2804
    %v2806 = vpop.f32.mrf.mxu0
    %2807 = vmatprep.mubr.f32.mxu0 0.0
    %2808 = vmatmul.mubr.f32.gmra.mxu0 %v2692
    %v2809 = vpop.f32.mrf.mxu0
    %v2810 = vadd.f32 %v2430, %v2809
    %v2811 = vpop.f32.mrf.mxu0
    %2812 = vmatprep.mubr.f32.mxu0 0.0
    %2813 = vmatmul.mubr.f32.gmra.mxu0 %v2695
    %v2814 = vpop.f32.mrf.mxu0
    %v2815 = vadd.f32 %v2431, %v2814
    %v2816 = vpop.f32.mrf.mxu0
    %2817 = vmatprep.mubr.f32.mxu0 0.0
    %2818 = vmatmul.mubr.f32.gmra.mxu0 %v2698
    %v2819 = vpop.f32.mrf.mxu0
    %v2820 = vadd.f32 %v2432, %v2819
    %v2821 = vpop.f32.mrf.mxu0
    %2822 = vmatprep.mubr.f32.mxu0 0.0
    %2823 = vmatmul.mubr.f32.gmra.mxu0 %v2701
    %v2824 = vpop.f32.mrf.mxu0
    %v2825 = vadd.f32 %v2433, %v2824
    %v2826 = vpop.f32.mrf.mxu0
    %2827 = vmatprep.mubr.f32.mxu0 0.0
    %2828 = vmatmul.mubr.f32.gmra.mxu0 %v2704
    %v2829 = vpop.f32.mrf.mxu0
    %v2830 = vadd.f32 %v2434, %v2829
    %v2831 = vpop.f32.mrf.mxu0
    %2832 = vmatprep.mubr.f32.mxu0 0.0
    %2833 = vmatmul.mubr.f32.gmra.mxu0 %v2707
    %v2834 = vpop.f32.mrf.mxu0
    %v2835 = vadd.f32 %v2435, %v2834
    %v2836 = vpop.f32.mrf.mxu0
    %2837 = vmatprep.mubr.f32.mxu0 0.0
    %2838 = vmatmul.mubr.f32.gmra.mxu0 %v2710
    %v2839 = vpop.f32.mrf.mxu0
    %v2840 = vadd.f32 %v2436, %v2839
    %v2841 = vpop.f32.mrf.mxu0
    %2842 = vmatprep.mubr.f32.mxu0 0.0
    %2843 = vmatmul.mubr.f32.gmra.mxu0 %v2713
    %v2844 = vpop.f32.mrf.mxu0
    %v2845 = vadd.f32 %v2437, %v2844
    %v2846 = vpop.f32.mrf.mxu0
    %2847 = vmatprep.mubr.f32.mxu0 0.0
    %2848 = vmatmul.mubr.f32.gmra.mxu0 %v2716
    %v2849 = vpop.f32.mrf.mxu0
    %v2850 = vadd.f32 %v2438, %v2849
    %v2851 = vpop.f32.mrf.mxu0
    %2852 = vmatprep.mubr.f32.mxu0 0.0
    %2853 = vmatmul.mubr.f32.gmra.mxu0 %v2719
    %v2854 = vpop.f32.mrf.mxu0
    %v2855 = vadd.f32 %v2439, %v2854
    %v2856 = vpop.f32.mrf.mxu0
    %2857 = vmatprep.mubr.f32.mxu0 0.0
    %2858 = vmatmul.mubr.f32.gmra.mxu0 %v2722
    %v2859 = vpop.f32.mrf.mxu0
    %v2860 = vadd.f32 %v2440, %v2859
    %v2861 = vpop.f32.mrf.mxu0
    %2862 = vmatprep.mubr.f32.mxu0 0.0
    %2863 = vmatmul.mubr.f32.gmra.mxu0 %v2725
    %v2864 = vpop.f32.mrf.mxu0
    %v2865 = vadd.f32 %v2441, %v2864
    %v2866 = vpop.f32.mrf.mxu0
    %2867 = vmatprep.mubr.f32.mxu0 0.0
    %2868 = vmatmul.mubr.f32.gmra.mxu0 %v2728
    %v2869 = vpop.f32.mrf.mxu0
    %v2870 = vadd.f32 %v2442, %v2869
    %v2871 = vpop.f32.mrf.mxu0
    %2872 = vmatprep.mubr.f32.mxu0 0.0
    %2873 = vmatmul.mubr.f32.gmra.mxu0 %v2731
    %v2874 = vpop.f32.mrf.mxu0
    %v2875 = vadd.f32 %v2443, %v2874
    %v2876 = vpop.f32.mrf.mxu0
    %2877 = vdwg.mxu0
    %v2878 = vmax.f32 %v2800, 0.0
    %v2879 = vmax.f32 %v2805, 0.0
    %v2880 = vmax.f32 %v2810, 0.0
    %v2881 = vmax.f32 %v2815, 0.0
    %v2882 = vmax.f32 %v2820, 0.0
    %v2883 = vmax.f32 %v2825, 0.0
    %v2884 = vmax.f32 %v2830, 0.0
    %v2885 = vmax.f32 %v2835, 0.0
    %v2886 = vmax.f32 %v2840, 0.0
    %v2887 = vmax.f32 %v2845, 0.0
    %v2888 = vmax.f32 %v2850, 0.0
    %v2889 = vmax.f32 %v2855, 0.0
    %v2890 = vmax.f32 %v2860, 0.0
    %v2891 = vmax.f32 %v2865, 0.0
    %v2892 = vmax.f32 %v2870, 0.0
    %v2893 = vmax.f32 %v2875, 0.0
    %2894 = vst.msk [vmem:[#allocation2] sm:$0xff] %vm244, %v2878
    %2895 = vst.msk [vmem:[#allocation2 + $0x8] sm:$0xff] %vm244, %v2879
    %2896 = vst.msk [vmem:[#allocation2 + $0x10] sm:$0xff] %vm244, %v2880
    %2897 = vst.msk [vmem:[#allocation2 + $0x18] sm:$0xff] %vm244, %v2881
    %2898 = vst.msk [vmem:[#allocation2 + $0x20] sm:$0xff] %vm244, %v2882
    %2899 = vst.msk [vmem:[#allocation2 + $0x28] sm:$0xff] %vm244, %v2883
    %2900 = vst.msk [vmem:[#allocation2 + $0x30] sm:$0xff] %vm244, %v2884
    %2901 = vst.msk [vmem:[#allocation2 + $0x38] sm:$0xff] %vm244, %v2885
    %2902 = vst.msk [vmem:[#allocation2 + $0x40] sm:$0xff] %vm244, %v2886
    %2903 = vst.msk [vmem:[#allocation2 + $0x48] sm:$0xff] %vm244, %v2887
    %2904 = vst.msk [vmem:[#allocation2 + $0x50] sm:$0xff] %vm244, %v2888
    %2905 = vst.msk [vmem:[#allocation2 + $0x58] sm:$0xff] %vm244, %v2889
    %2906 = vst.msk [vmem:[#allocation2 + $0x60] sm:$0xff] %vm244, %v2890
    %2907 = vst.msk [vmem:[#allocation2 + $0x68] sm:$0xff] %vm244, %v2891
    %2908 = vst.msk [vmem:[#allocation2 + $0x70] sm:$0xff] %vm244, %v2892
    %2909 = vst.msk [vmem:[#allocation2 + $0x78] sm:$0xff] %vm244, %v2893
    %v2910 = vld [vmem:[%s409] sm:$0xff]
    %v2911 = vld [vmem:[%s409 + $0x8] sm:$0xff]
    %v2912 = vld [vmem:[%s409 + $0x10] sm:$0xff]
    %v2913 = vld [vmem:[%s409 + $0x18] sm:$0xff]
    %v2914 = vld [vmem:[%s409 + $0x20] sm:$0xff]
    %v2915 = vld [vmem:[%s409 + $0x28] sm:$0xff]
    %v2916 = vld [vmem:[%s409 + $0x30] sm:$0xff]
    %v2917 = vld [vmem:[%s409 + $0x38] sm:$0xff]
    %v2918 = vld [vmem:[%s409 + $0x40] sm:$0xff]
    %v2919 = vld [vmem:[%s409 + $0x48] sm:$0xff]
    %v2920 = vld [vmem:[%s409 + $0x50] sm:$0xff]
    %v2921 = vld [vmem:[%s409 + $0x58] sm:$0xff]
    %v2922 = vld [vmem:[%s409 + $0x60] sm:$0xff]
    %v2923 = vld [vmem:[%s409 + $0x68] sm:$0xff]
    %v2924 = vld [vmem:[%s409 + $0x70] sm:$0xff]
    %v2925 = vld [vmem:[%s409 + $0x78] sm:$0xff]
    %2926 = vmatprep.subr.mxu0 0.0
    %2927 = vmatpush1.msra.mxu0 %v2925
    %2928 = vmatprep.subr.mxu0 0.0
    %2929 = vmatpush1.msra.mxu0 %v2924
    %2930 = vmatprep.subr.mxu0 0.0
    %2931 = vmatpush1.msra.mxu0 %v2923
    %2932 = vmatprep.subr.mxu0 0.0
    %2933 = vmatpush1.msra.mxu0 %v2922
    %2934 = vmatprep.subr.mxu0 0.0
    %2935 = vmatpush1.msra.mxu0 %v2921
    %2936 = vmatprep.subr.mxu0 0.0
    %2937 = vmatpush1.msra.mxu0 %v2920
    %2938 = vmatprep.subr.mxu0 0.0
    %2939 = vmatpush1.msra.mxu0 %v2919
    %2940 = vmatprep.subr.mxu0 0.0
    %2941 = vmatpush1.msra.mxu0 %v2918
    %2942 = vmatprep.subr.mxu0 0.0
    %2943 = vmatpush1.msra.mxu0 %v2917
    %2944 = vmatprep.subr.mxu0 0.0
    %2945 = vmatpush1.msra.mxu0 %v2916
    %2946 = vmatprep.subr.mxu0 0.0
    %2947 = vmatpush1.msra.mxu0 %v2915
    %2948 = vmatprep.subr.mxu0 0.0
    %2949 = vmatpush1.msra.mxu0 %v2914
    %2950 = vmatprep.subr.mxu0 0.0
    %2951 = vmatpush1.msra.mxu0 %v2913
    %2952 = vmatprep.subr.mxu0 0.0
    %2953 = vmatpush1.msra.mxu0 %v2912
    %2954 = vmatprep.subr.mxu0 0.0
    %2955 = vmatpush1.msra.mxu0 %v2911
    %2956 = vmatprep.subr.mxu0 0.0
    %2957 = vmatpush1.msra.mxu0 %v2910
    %2958 = vmatprep.subr.mxu0 0.0
    %2959 = vmatpush2.msra.mxu0 0.0
    %2960 = vmatprep.subr.mxu0 0.0
    %2961 = vmatpush2.msra.mxu0 0.0
    %2962 = vmatprep.subr.mxu0 0.0
    %2963 = vmatpush2.msra.mxu0 0.0
    %2964 = vmatprep.subr.mxu0 0.0
    %2965 = vmatpush2.msra.mxu0 0.0
    %2966 = vmatprep.subr.mxu0 0.0
    %2967 = vmatpush2.msra.mxu0 0.0
    %2968 = vmatprep.subr.mxu0 0.0
    %2969 = vmatpush2.msra.mxu0 0.0
    %2970 = vmatprep.subr.mxu0 0.0
    %2971 = vmatpush2.msra.mxu0 0.0
    %2972 = vmatprep.subr.mxu0 0.0
    %2973 = vmatpush2.msra.mxu0 0.0
    %2974 = vmatprep.subr.mxu0 0.0
    %2975 = vmatpush2.msra.mxu0 0.0
    %2976 = vmatprep.subr.mxu0 0.0
    %2977 = vmatpush2.msra.mxu0 0.0
    %2978 = vmatprep.subr.mxu0 0.0
    %2979 = vmatpush2.msra.mxu0 0.0
    %2980 = vmatprep.subr.mxu0 0.0
    %2981 = vmatpush2.msra.mxu0 0.0
    %2982 = vmatprep.subr.mxu0 0.0
    %2983 = vmatpush2.msra.mxu0 0.0
    %2984 = vmatprep.subr.mxu0 0.0
    %2985 = vmatpush2.msra.mxu0 0.0
    %2986 = vmatprep.subr.mxu0 0.0
    %2987 = vmatpush2.msra.mxu0 0.0
    %2988 = vmatprep.subr.mxu0 0.0
    %2989 = vmatpush2.msra.mxu0 0.0
    %2990 = vmatprep.mubr.f32.mxu0 0.0
    %2991 = vmatmul.mubr.f32.gmra.mxu0 %v18
    %v2992 = vpop.f32.mrf.mxu0
    %v2993 = vadd.f32 0.0, %v2992
    %v2994 = vpop.f32.mrf.mxu0
    %2995 = vmatprep.mubr.f32.mxu0 0.0
    %2996 = vmatmul.mubr.f32.gmra.mxu0 %v19
    %v2997 = vpop.f32.mrf.mxu0
    %v2998 = vadd.f32 0.0, %v2997
    %v2999 = vpop.f32.mrf.mxu0
    %3000 = vmatprep.mubr.f32.mxu0 0.0
    %3001 = vmatmul.mubr.f32.gmra.mxu0 %v20
    %v3002 = vpop.f32.mrf.mxu0
    %v3003 = vadd.f32 0.0, %v3002
    %v3004 = vpop.f32.mrf.mxu0
    %3005 = vmatprep.mubr.f32.mxu0 0.0
    %3006 = vmatmul.mubr.f32.gmra.mxu0 %v21
    %v3007 = vpop.f32.mrf.mxu0
    %v3008 = vadd.f32 0.0, %v3007
    %v3009 = vpop.f32.mrf.mxu0
    %3010 = vmatprep.mubr.f32.mxu0 0.0
    %3011 = vmatmul.mubr.f32.gmra.mxu0 %v22
    %v3012 = vpop.f32.mrf.mxu0
    %v3013 = vadd.f32 0.0, %v3012
    %v3014 = vpop.f32.mrf.mxu0
    %3015 = vmatprep.mubr.f32.mxu0 0.0
    %3016 = vmatmul.mubr.f32.gmra.mxu0 %v23
    %v3017 = vpop.f32.mrf.mxu0
    %v3018 = vadd.f32 0.0, %v3017
    %v3019 = vpop.f32.mrf.mxu0
    %3020 = vmatprep.mubr.f32.mxu0 0.0
    %3021 = vmatmul.mubr.f32.gmra.mxu0 %v24
    %v3022 = vpop.f32.mrf.mxu0
    %v3023 = vadd.f32 0.0, %v3022
    %v3024 = vpop.f32.mrf.mxu0
    %3025 = vmatprep.mubr.f32.mxu0 0.0
    %3026 = vmatmul.mubr.f32.gmra.mxu0 %v25
    %v3027 = vpop.f32.mrf.mxu0
    %v3028 = vadd.f32 0.0, %v3027
    %v3029 = vpop.f32.mrf.mxu0
    %3030 = vmatprep.mubr.f32.mxu0 0.0
    %3031 = vmatmul.mubr.f32.gmra.mxu0 %v26
    %v3032 = vpop.f32.mrf.mxu0
    %v3033 = vadd.f32 0.0, %v3032
    %v3034 = vpop.f32.mrf.mxu0
    %3035 = vmatprep.mubr.f32.mxu0 0.0
    %3036 = vmatmul.mubr.f32.gmra.mxu0 %v27
    %v3037 = vpop.f32.mrf.mxu0
    %v3038 = vadd.f32 0.0, %v3037
    %v3039 = vpop.f32.mrf.mxu0
    %3040 = vmatprep.mubr.f32.mxu0 0.0
    %3041 = vmatmul.mubr.f32.gmra.mxu0 %v28
    %v3042 = vpop.f32.mrf.mxu0
    %v3043 = vadd.f32 0.0, %v3042
    %v3044 = vpop.f32.mrf.mxu0
    %3045 = vmatprep.mubr.f32.mxu0 0.0
    %3046 = vmatmul.mubr.f32.gmra.mxu0 %v29
    %v3047 = vpop.f32.mrf.mxu0
    %v3048 = vadd.f32 0.0, %v3047
    %v3049 = vpop.f32.mrf.mxu0
    %3050 = vmatprep.mubr.f32.mxu0 0.0
    %3051 = vmatmul.mubr.f32.gmra.mxu0 %v30
    %v3052 = vpop.f32.mrf.mxu0
    %v3053 = vadd.f32 0.0, %v3052
    %v3054 = vpop.f32.mrf.mxu0
    %3055 = vmatprep.mubr.f32.mxu0 0.0
    %3056 = vmatmul.mubr.f32.gmra.mxu0 %v31
    %v3057 = vpop.f32.mrf.mxu0
    %v3058 = vadd.f32 0.0, %v3057
    %v3059 = vpop.f32.mrf.mxu0
    %3060 = vmatprep.mubr.f32.mxu0 0.0
    %3061 = vmatmul.mubr.f32.gmra.mxu0 %v32
    %v3062 = vpop.f32.mrf.mxu0
    %v3063 = vadd.f32 0.0, %v3062
    %v3064 = vpop.f32.mrf.mxu0
    %3065 = vmatprep.mubr.f32.mxu0 0.0
    %3066 = vmatmul.mubr.f32.gmra.mxu0 %v33
    %v3067 = vpop.f32.mrf.mxu0
    %v3068 = vadd.f32 0.0, %v3067
    %v3069 = vpop.f32.mrf.mxu0
    %3070 = vdwg.mxu0
    %3087 = vrot.lane.b32.xlu0 %v2993, 32
    %v3088 = vpop.permute.xlu0 %3087
    %3089 = vrot.lane.b32.xlu0 %v2998, 32
    %v3090 = vpop.permute.xlu0 %3089
    %3091 = vrot.lane.b32.xlu0 %v3003, 32
    %v3092 = vpop.permute.xlu0 %3091
    %3093 = vrot.lane.b32.xlu0 %v3008, 32
    %v3094 = vpop.permute.xlu0 %3093
    %3095 = vrot.lane.b32.xlu0 %v3013, 32
    %v3096 = vpop.permute.xlu0 %3095
    %3097 = vrot.lane.b32.xlu0 %v3018, 32
    %v3098 = vpop.permute.xlu0 %3097
    %3099 = vrot.lane.b32.xlu0 %v3023, 32
    %v3100 = vpop.permute.xlu0 %3099
    %3101 = vrot.lane.b32.xlu0 %v3028, 32
    %v3102 = vpop.permute.xlu0 %3101
    %3103 = vrot.lane.b32.xlu0 %v3033, 32
    %v3104 = vpop.permute.xlu0 %3103
    %3105 = vrot.lane.b32.xlu0 %v3038, 32
    %v3106 = vpop.permute.xlu0 %3105
    %3107 = vrot.lane.b32.xlu0 %v3043, 32
    %v3108 = vpop.permute.xlu0 %3107
    %3109 = vrot.lane.b32.xlu0 %v3048, 32
    %v3110 = vpop.permute.xlu0 %3109
    %3111 = vrot.lane.b32.xlu0 %v3053, 32
    %v3112 = vpop.permute.xlu0 %3111
    %3113 = vrot.lane.b32.xlu0 %v3058, 32
    %v3114 = vpop.permute.xlu0 %3113
    %3115 = vrot.lane.b32.xlu0 %v3063, 32
    %v3116 = vpop.permute.xlu0 %3115
    %3117 = vrot.lane.b32.xlu0 %v3068, 32
    %v3118 = vpop.permute.xlu0 %3117
    %v3135 = vsel %vm244, %v2910, %v3088
    %v3136 = vsel %vm244, %v2911, %v3090
    %v3137 = vsel %vm244, %v2912, %v3092
    %v3138 = vsel %vm244, %v2913, %v3094
    %v3139 = vsel %vm244, %v2914, %v3096
    %v3140 = vsel %vm244, %v2915, %v3098
    %v3141 = vsel %vm244, %v2916, %v3100
    %v3142 = vsel %vm244, %v2917, %v3102
    %v3143 = vsel %vm244, %v2918, %v3104
    %v3144 = vsel %vm244, %v2919, %v3106
    %v3145 = vsel %vm244, %v2920, %v3108
    %v3146 = vsel %vm244, %v2921, %v3110
    %v3147 = vsel %vm244, %v2922, %v3112
    %v3148 = vsel %vm244, %v2923, %v3114
    %v3149 = vsel %vm244, %v2924, %v3116
    %v3150 = vsel %vm244, %v2925, %v3118
    %v3152 = vsel %vm718, %v3135, 0
    %v3155 = vsel %vm718, %v3136, 0
    %v3158 = vsel %vm718, %v3137, 0
    %v3161 = vsel %vm718, %v3138, 0
    %v3164 = vsel %vm718, %v3139, 0
    %v3167 = vsel %vm718, %v3140, 0
    %v3170 = vsel %vm718, %v3141, 0
    %v3173 = vsel %vm718, %v3142, 0
    %v3176 = vsel %vm718, %v3143, 0
    %v3179 = vsel %vm718, %v3144, 0
    %v3182 = vsel %vm718, %v3145, 0
    %v3185 = vsel %vm718, %v3146, 0
    %v3188 = vsel %vm718, %v3147, 0
    %v3191 = vsel %vm718, %v3148, 0
    %v3194 = vsel %vm718, %v3149, 0
    %v3197 = vsel %vm718, %v3150, 0
    %3199 = vmatprep.subr.mxu0 0.0
    %3200 = vmatpush1.msra.mxu0 0.0
    %3201 = vmatprep.subr.mxu0 0.0
    %3202 = vmatpush1.msra.mxu0 0.0
    %3203 = vmatprep.subr.mxu0 0.0
    %3204 = vmatpush1.msra.mxu0 0.0
    %3205 = vmatprep.subr.mxu0 0.0
    %3206 = vmatpush1.msra.mxu0 0.0
    %3207 = vmatprep.subr.mxu0 0.0
    %3208 = vmatpush1.msra.mxu0 0.0
    %3209 = vmatprep.subr.mxu0 0.0
    %3210 = vmatpush1.msra.mxu0 0.0
    %3211 = vmatprep.subr.mxu0 0.0
    %3212 = vmatpush1.msra.mxu0 0.0
    %3213 = vmatprep.subr.mxu0 0.0
    %3214 = vmatpush1.msra.mxu0 0.0
    %3215 = vmatprep.subr.mxu0 0.0
    %3216 = vmatpush1.msra.mxu0 %v2401
    %3217 = vmatprep.subr.mxu0 0.0
    %3218 = vmatpush1.msra.mxu0 %v2400
    %3219 = vmatprep.subr.mxu0 0.0
    %3220 = vmatpush1.msra.mxu0 %v2399
    %3221 = vmatprep.subr.mxu0 0.0
    %3222 = vmatpush1.msra.mxu0 %v2398
    %3223 = vmatprep.subr.mxu0 0.0
    %3224 = vmatpush1.msra.mxu0 %v2397
    %3225 = vmatprep.subr.mxu0 0.0
    %3226 = vmatpush1.msra.mxu0 %v2396
    %3227 = vmatprep.subr.mxu0 0.0
    %3228 = vmatpush1.msra.mxu0 %v2395
    %3229 = vmatprep.subr.mxu0 0.0
    %3230 = vmatpush1.msra.mxu0 %v2394
    %3231 = vmatprep.subr.mxu0 0.0
    %3232 = vmatpush2.msra.mxu0 0.0
    %3233 = vmatprep.subr.mxu0 0.0
    %3234 = vmatpush2.msra.mxu0 0.0
    %3235 = vmatprep.subr.mxu0 0.0
    %3236 = vmatpush2.msra.mxu0 0.0
    %3237 = vmatprep.subr.mxu0 0.0
    %3238 = vmatpush2.msra.mxu0 0.0
    %3239 = vmatprep.subr.mxu0 0.0
    %3240 = vmatpush2.msra.mxu0 0.0
    %3241 = vmatprep.subr.mxu0 0.0
    %3242 = vmatpush2.msra.mxu0 0.0
    %3243 = vmatprep.subr.mxu0 0.0
    %3244 = vmatpush2.msra.mxu0 0.0
    %3245 = vmatprep.subr.mxu0 0.0
    %3246 = vmatpush2.msra.mxu0 0.0
    %3247 = vmatprep.subr.mxu0 0.0
    %3248 = vmatpush2.msra.mxu0 0.0
    %3249 = vmatprep.subr.mxu0 0.0
    %3250 = vmatpush2.msra.mxu0 0.0
    %3251 = vmatprep.subr.mxu0 0.0
    %3252 = vmatpush2.msra.mxu0 0.0
    %3253 = vmatprep.subr.mxu0 0.0
    %3254 = vmatpush2.msra.mxu0 0.0
    %3255 = vmatprep.subr.mxu0 0.0
    %3256 = vmatpush2.msra.mxu0 0.0
    %3257 = vmatprep.subr.mxu0 0.0
    %3258 = vmatpush2.msra.mxu0 0.0
    %3259 = vmatprep.subr.mxu0 0.0
    %3260 = vmatpush2.msra.mxu0 0.0
    %3261 = vmatprep.subr.mxu0 0.0
    %3262 = vmatpush2.msra.mxu0 0.0
    %3263 = vmatprep.mubr.f32.mxu0 0.0
    %3264 = vmatmul.mubr.f32.gmra.mxu0 %v3152
    %v3265 = vpop.f32.mrf.mxu0
    %v3266 = vadd.f32 %v2428, %v3265
    %v3267 = vpop.f32.mrf.mxu0
    %3268 = vmatprep.mubr.f32.mxu0 0.0
    %3269 = vmatmul.mubr.f32.gmra.mxu0 %v3155
    %v3270 = vpop.f32.mrf.mxu0
    %v3271 = vadd.f32 %v2429, %v3270
    %v3272 = vpop.f32.mrf.mxu0
    %3273 = vmatprep.mubr.f32.mxu0 0.0
    %3274 = vmatmul.mubr.f32.gmra.mxu0 %v3158
    %v3275 = vpop.f32.mrf.mxu0
    %v3276 = vadd.f32 %v2430, %v3275
    %v3277 = vpop.f32.mrf.mxu0
    %3278 = vmatprep.mubr.f32.mxu0 0.0
    %3279 = vmatmul.mubr.f32.gmra.mxu0 %v3161
    %v3280 = vpop.f32.mrf.mxu0
    %v3281 = vadd.f32 %v2431, %v3280
    %v3282 = vpop.f32.mrf.mxu0
    %3283 = vmatprep.mubr.f32.mxu0 0.0
    %3284 = vmatmul.mubr.f32.gmra.mxu0 %v3164
    %v3285 = vpop.f32.mrf.mxu0
    %v3286 = vadd.f32 %v2432, %v3285
    %v3287 = vpop.f32.mrf.mxu0
    %3288 = vmatprep.mubr.f32.mxu0 0.0
    %3289 = vmatmul.mubr.f32.gmra.mxu0 %v3167
    %v3290 = vpop.f32.mrf.mxu0
    %v3291 = vadd.f32 %v2433, %v3290
    %v3292 = vpop.f32.mrf.mxu0
    %3293 = vmatprep.mubr.f32.mxu0 0.0
    %3294 = vmatmul.mubr.f32.gmra.mxu0 %v3170
    %v3295 = vpop.f32.mrf.mxu0
    %v3296 = vadd.f32 %v2434, %v3295
    %v3297 = vpop.f32.mrf.mxu0
    %3298 = vmatprep.mubr.f32.mxu0 0.0
    %3299 = vmatmul.mubr.f32.gmra.mxu0 %v3173
    %v3300 = vpop.f32.mrf.mxu0
    %v3301 = vadd.f32 %v2435, %v3300
    %v3302 = vpop.f32.mrf.mxu0
    %3303 = vmatprep.mubr.f32.mxu0 0.0
    %3304 = vmatmul.mubr.f32.gmra.mxu0 %v3176
    %v3305 = vpop.f32.mrf.mxu0
    %v3306 = vadd.f32 %v2436, %v3305
    %v3307 = vpop.f32.mrf.mxu0
    %3308 = vmatprep.mubr.f32.mxu0 0.0
    %3309 = vmatmul.mubr.f32.gmra.mxu0 %v3179
    %v3310 = vpop.f32.mrf.mxu0
    %v3311 = vadd.f32 %v2437, %v3310
    %v3312 = vpop.f32.mrf.mxu0
    %3313 = vmatprep.mubr.f32.mxu0 0.0
    %3314 = vmatmul.mubr.f32.gmra.mxu0 %v3182
    %v3315 = vpop.f32.mrf.mxu0
    %v3316 = vadd.f32 %v2438, %v3315
    %v3317 = vpop.f32.mrf.mxu0
    %3318 = vmatprep.mubr.f32.mxu0 0.0
    %3319 = vmatmul.mubr.f32.gmra.mxu0 %v3185
    %v3320 = vpop.f32.mrf.mxu0
    %v3321 = vadd.f32 %v2439, %v3320
    %v3322 = vpop.f32.mrf.mxu0
    %3323 = vmatprep.mubr.f32.mxu0 0.0
    %3324 = vmatmul.mubr.f32.gmra.mxu0 %v3188
    %v3325 = vpop.f32.mrf.mxu0
    %v3326 = vadd.f32 %v2440, %v3325
    %v3327 = vpop.f32.mrf.mxu0
    %3328 = vmatprep.mubr.f32.mxu0 0.0
    %3329 = vmatmul.mubr.f32.gmra.mxu0 %v3191
    %v3330 = vpop.f32.mrf.mxu0
    %v3331 = vadd.f32 %v2441, %v3330
    %v3332 = vpop.f32.mrf.mxu0
    %3333 = vmatprep.mubr.f32.mxu0 0.0
    %3334 = vmatmul.mubr.f32.gmra.mxu0 %v3194
    %v3335 = vpop.f32.mrf.mxu0
    %v3336 = vadd.f32 %v2442, %v3335
    %v3337 = vpop.f32.mrf.mxu0
    %3338 = vmatprep.mubr.f32.mxu0 0.0
    %3339 = vmatmul.mubr.f32.gmra.mxu0 %v3197
    %v3340 = vpop.f32.mrf.mxu0
    %v3341 = vadd.f32 %v2443, %v3340
    %v3342 = vpop.f32.mrf.mxu0
    %3343 = vdwg.mxu0
    %v3344 = vmax.f32 %v3266, 0.0
    %v3345 = vmax.f32 %v3271, 0.0
    %v3346 = vmax.f32 %v3276, 0.0
    %v3347 = vmax.f32 %v3281, 0.0
    %v3348 = vmax.f32 %v3286, 0.0
    %v3349 = vmax.f32 %v3291, 0.0
    %v3350 = vmax.f32 %v3296, 0.0
    %v3351 = vmax.f32 %v3301, 0.0
    %v3352 = vmax.f32 %v3306, 0.0
    %v3353 = vmax.f32 %v3311, 0.0
    %v3354 = vmax.f32 %v3316, 0.0
    %v3355 = vmax.f32 %v3321, 0.0
    %v3356 = vmax.f32 %v3326, 0.0
    %v3357 = vmax.f32 %v3331, 0.0
    %v3358 = vmax.f32 %v3336, 0.0
    %v3359 = vmax.f32 %v3341, 0.0
    %3360 = vst.msk [vmem:[%s409] sm:$0xff] %vm244, %v3344
    %3361 = vst.msk [vmem:[%s409 + $0x8] sm:$0xff] %vm244, %v3345
    %3362 = vst.msk [vmem:[%s409 + $0x10] sm:$0xff] %vm244, %v3346
    %3363 = vst.msk [vmem:[%s409 + $0x18] sm:$0xff] %vm244, %v3347
    %3364 = vst.msk [vmem:[%s409 + $0x20] sm:$0xff] %vm244, %v3348
    %3365 = vst.msk [vmem:[%s409 + $0x28] sm:$0xff] %vm244, %v3349
    %3366 = vst.msk [vmem:[%s409 + $0x30] sm:$0xff] %vm244, %v3350
    %3367 = vst.msk [vmem:[%s409 + $0x38] sm:$0xff] %vm244, %v3351
    %3368 = vst.msk [vmem:[%s409 + $0x40] sm:$0xff] %vm244, %v3352
    %3369 = vst.msk [vmem:[%s409 + $0x48] sm:$0xff] %vm244, %v3353
    %3370 = vst.msk [vmem:[%s409 + $0x50] sm:$0xff] %vm244, %v3354
    %3371 = vst.msk [vmem:[%s409 + $0x58] sm:$0xff] %vm244, %v3355
    %3372 = vst.msk [vmem:[%s409 + $0x60] sm:$0xff] %vm244, %v3356
    %3373 = vst.msk [vmem:[%s409 + $0x68] sm:$0xff] %vm244, %v3357
    %3374 = vst.msk [vmem:[%s409 + $0x70] sm:$0xff] %vm244, %v3358
    %3375 = vst.msk [vmem:[%s409 + $0x78] sm:$0xff] %vm244, %v3359
    %v3376 = vld [vmem:[%s0 + $0x40] sm:$0xff]
    %v3377 = vld [vmem:[#allocation2] sm:$0xff]
    %v3378 = vld [vmem:[#allocation2 + $0x8] sm:$0xff]
    %v3379 = vld [vmem:[#allocation2 + $0x10] sm:$0xff]
    %v3380 = vld [vmem:[#allocation2 + $0x18] sm:$0xff]
    %v3381 = vld [vmem:[#allocation2 + $0x20] sm:$0xff]
    %v3382 = vld [vmem:[#allocation2 + $0x28] sm:$0xff]
    %v3383 = vld [vmem:[#allocation2 + $0x30] sm:$0xff]
    %v3384 = vld [vmem:[#allocation2 + $0x38] sm:$0xff]
    %v3385 = vsel %vm244, %v3377, 0.0
    %v3386 = vsel %vm244, %v3378, 0.0
    %v3387 = vadd.f32 %v3385, %v3386
    %v3388 = vsel %vm244, %v3379, 0.0
    %v3389 = vadd.f32 %v3387, %v3388
    %v3390 = vsel %vm244, %v3380, 0.0
    %v3391 = vadd.f32 %v3389, %v3390
    %v3392 = vsel %vm244, %v3381, 0.0
    %v3393 = vadd.f32 %v3391, %v3392
    %v3394 = vsel %vm244, %v3382, 0.0
    %v3395 = vadd.f32 %v3393, %v3394
    %v3396 = vsel %vm244, %v3383, 0.0
    %v3397 = vadd.f32 %v3395, %v3396
    %v3398 = vsel %vm244, %v3384, 0.0
    %v3399 = vadd.f32 %v3397, %v3398
    %v3400 = vrot.slane %v3399, 4
    %v3401 = vadd.f32 %v3399, %v3400
    %v3402 = vrot.slane %v3401, 2
    %v3403 = vadd.f32 %v3401, %v3402
    %v3404 = vrot.slane %v3403, 1
    %v3405 = vadd.f32 %v3403, %v3404
    %v3406 = vrcp.pop 64.0
    %v3407 = vmul.f32 %v3405, %v3406
    %3409 = vset.pattern.permute.xlu0 0
    %3410 = vperm.xlu0 %3409, %v3376
    %v3411 = vpop.permute.xlu0 %3410
    %v3414 = vrot.slane %v70, 4
    %v3416 = vmul.f32 %v3411, %v3414
    %v3418 = vrot.slane %v71, 4
    %v3420 = vadd.f32 %v3416, %v3418
    %v3421 = vmax.f32 %v3420, 0.0
    %v3423 = vrot.slane %v3421, 4
    %3424 = vrot.lane.b32.xlu0 %v3423, 32
    %v3425 = vpop.permute.xlu0 %3424
    %v3427 = vsel %vm244, %v3407, %v3425
    %v3429 = vsel %vm718, %v3427, 0
    %3431 = vmatprep.subr.mxu0 0.0
    %3432 = vmatpush1.msra.mxu0 0.0
    %3433 = vmatprep.subr.mxu0 0.0
    %3434 = vmatpush1.msra.mxu0 0.0
    %3435 = vmatprep.subr.mxu0 0.0
    %3436 = vmatpush1.msra.mxu0 0.0
    %3437 = vmatprep.subr.mxu0 0.0
    %3438 = vmatpush1.msra.mxu0 0.0
    %3439 = vmatprep.subr.mxu0 0.0
    %3440 = vmatpush1.msra.mxu0 0.0
    %3441 = vmatprep.subr.mxu0 0.0
    %3442 = vmatpush1.msra.mxu0 0.0
    %3443 = vmatprep.subr.mxu0 0.0
    %3444 = vmatpush1.msra.mxu0 0.0
    %3445 = vmatprep.subr.mxu0 0.0
    %3446 = vmatpush1.msra.mxu0 0.0
    %3447 = vmatprep.subr.mxu0 0.0
    %3448 = vmatpush1.msra.mxu0 %v79
    %3449 = vmatprep.subr.mxu0 0.0
    %3450 = vmatpush1.msra.mxu0 %v78
    %3451 = vmatprep.subr.mxu0 0.0
    %3452 = vmatpush1.msra.mxu0 %v77
    %3453 = vmatprep.subr.mxu0 0.0
    %3454 = vmatpush1.msra.mxu0 %v76
    %3455 = vmatprep.subr.mxu0 0.0
    %3456 = vmatpush1.msra.mxu0 %v75
    %3457 = vmatprep.subr.mxu0 0.0
    %3458 = vmatpush1.msra.mxu0 %v74
    %3459 = vmatprep.subr.mxu0 0.0
    %3460 = vmatpush1.msra.mxu0 %v73
    %3461 = vmatprep.subr.mxu0 0.0
    %3462 = vmatpush1.msra.mxu0 %v72
    %3463 = vmatprep.subr.mxu0 0.0
    %3464 = vmatpush2.msra.mxu0 0.0
    %3465 = vmatprep.subr.mxu0 0.0
    %3466 = vmatpush2.msra.mxu0 0.0
    %3467 = vmatprep.subr.mxu0 0.0
    %3468 = vmatpush2.msra.mxu0 0.0
    %3469 = vmatprep.subr.mxu0 0.0
    %3470 = vmatpush2.msra.mxu0 0.0
    %3471 = vmatprep.subr.mxu0 0.0
    %3472 = vmatpush2.msra.mxu0 0.0
    %3473 = vmatprep.subr.mxu0 0.0
    %3474 = vmatpush2.msra.mxu0 0.0
    %3475 = vmatprep.subr.mxu0 0.0
    %3476 = vmatpush2.msra.mxu0 0.0
    %3477 = vmatprep.subr.mxu0 0.0
    %3478 = vmatpush2.msra.mxu0 0.0
    %3479 = vmatprep.subr.mxu0 0.0
    %3480 = vmatpush2.msra.mxu0 0.0
    %3481 = vmatprep.subr.mxu0 0.0
    %3482 = vmatpush2.msra.mxu0 0.0
    %3483 = vmatprep.subr.mxu0 0.0
    %3484 = vmatpush2.msra.mxu0 0.0
    %3485 = vmatprep.subr.mxu0 0.0
    %3486 = vmatpush2.msra.mxu0 0.0
    %3487 = vmatprep.subr.mxu0 0.0
    %3488 = vmatpush2.msra.mxu0 0.0
    %3489 = vmatprep.subr.mxu0 0.0
    %3490 = vmatpush2.msra.mxu0 0.0
    %3491 = vmatprep.subr.mxu0 0.0
    %3492 = vmatpush2.msra.mxu0 0.0
    %3493 = vmatprep.subr.mxu0 0.0
    %3494 = vmatpush2.msra.mxu0 0.0
    %3495 = vmatprep.mubr.f32.mxu0 0.0
    %3496 = vmatmul.mubr.f32.gmra.mxu0 %v3429
    %v3497 = vpop.f32.mrf.mxu0
    %v3498 = vadd.f32 %v80, %v3497
    %v3499 = vpop.f32.mrf.mxu0
    %3500 = vdwg.mxu0
    %v3501 = vmax.f32 %v3498, 0.0
    %v3502 = vld [vmem:[#allocation2 + $0x40] sm:$0xff]
    %v3503 = vlaneseq
    %v3504 = vshrl.u32 %v3503, 7
    %v3505 = vsub.s32 0, %v3504
    %v3506 = vrot.slane %v85, %v3505
    %v3508 = vsel %vm244, %v3502, 0
    %3510 = vmatprep.subr.mxu0 0.0
    %3511 = vmatpush1.msra.mxu0 0.0
    %3512 = vmatprep.subr.mxu0 0.0
    %3513 = vmatpush1.msra.mxu0 0.0
    %3514 = vmatprep.subr.mxu0 0.0
    %3515 = vmatpush1.msra.mxu0 0.0
    %3516 = vmatprep.subr.mxu0 0.0
    %3517 = vmatpush1.msra.mxu0 0.0
    %3518 = vmatprep.subr.mxu0 0.0
    %3519 = vmatpush1.msra.mxu0 0.0
    %3520 = vmatprep.subr.mxu0 0.0
    %3521 = vmatpush1.msra.mxu0 0.0
    %3522 = vmatprep.subr.mxu0 0.0
    %3523 = vmatpush1.msra.mxu0 0.0
    %3524 = vmatprep.subr.mxu0 0.0
    %3525 = vmatpush1.msra.mxu0 0.0
    %3526 = vmatprep.subr.mxu0 0.0
    %3527 = vmatpush1.msra.mxu0 0.0
    %3528 = vmatprep.subr.mxu0 0.0
    %3529 = vmatpush1.msra.mxu0 0.0
    %3530 = vmatprep.subr.mxu0 0.0
    %3531 = vmatpush1.msra.mxu0 0.0
    %3532 = vmatprep.subr.mxu0 0.0
    %3533 = vmatpush1.msra.mxu0 0.0
    %3534 = vmatprep.subr.mxu0 0.0
    %3535 = vmatpush1.msra.mxu0 %v84
    %3536 = vmatprep.subr.mxu0 0.0
    %3537 = vmatpush1.msra.mxu0 %v83
    %3538 = vmatprep.subr.mxu0 0.0
    %3539 = vmatpush1.msra.mxu0 %v82
    %3540 = vmatprep.subr.mxu0 0.0
    %3541 = vmatpush1.msra.mxu0 %v81
    %3542 = vmatprep.subr.mxu0 0.0
    %3543 = vmatpush2.msra.mxu0 0.0
    %3544 = vmatprep.subr.mxu0 0.0
    %3545 = vmatpush2.msra.mxu0 0.0
    %3546 = vmatprep.subr.mxu0 0.0
    %3547 = vmatpush2.msra.mxu0 0.0
    %3548 = vmatprep.subr.mxu0 0.0
    %3549 = vmatpush2.msra.mxu0 0.0
    %3550 = vmatprep.subr.mxu0 0.0
    %3551 = vmatpush2.msra.mxu0 0.0
    %3552 = vmatprep.subr.mxu0 0.0
    %3553 = vmatpush2.msra.mxu0 0.0
    %3554 = vmatprep.subr.mxu0 0.0
    %3555 = vmatpush2.msra.mxu0 0.0
    %3556 = vmatprep.subr.mxu0 0.0
    %3557 = vmatpush2.msra.mxu0 0.0
    %3558 = vmatprep.subr.mxu0 0.0
    %3559 = vmatpush2.msra.mxu0 0.0
    %3560 = vmatprep.subr.mxu0 0.0
    %3561 = vmatpush2.msra.mxu0 0.0
    %3562 = vmatprep.subr.mxu0 0.0
    %3563 = vmatpush2.msra.mxu0 0.0
    %3564 = vmatprep.subr.mxu0 0.0
    %3565 = vmatpush2.msra.mxu0 0.0
    %3566 = vmatprep.subr.mxu0 0.0
    %3567 = vmatpush2.msra.mxu0 0.0
    %3568 = vmatprep.subr.mxu0 0.0
    %3569 = vmatpush2.msra.mxu0 0.0
    %3570 = vmatprep.subr.mxu0 0.0
    %3571 = vmatpush2.msra.mxu0 0.0
    %3572 = vmatprep.subr.mxu0 0.0
    %3573 = vmatpush2.msra.mxu0 0.0
    %3574 = vmatprep.mubr.f32.mxu0 0.0
    %3575 = vmatmul.mubr.f32.gmra.mxu0 %v3508
    %v3576 = vpop.f32.mrf.mxu0
    %v3577 = vadd.f32 %v3506, %v3576
    %v3578 = vpop.f32.mrf.mxu0
    %3579 = vdwg.mxu0
    %v3580 = vmax.f32 %v3577, 0.0
    %3581 = vst.msk [vmem:[#allocation3] sm:$0xff] %vm244, %v3580
    %v3582 = vlaneseq
    %v3583 = vshrl.u32 %v3582, 7
    %v3584 = vsub.s32 0, %v3583
    %v3585 = vrot.slane %v3501, %v3584
    %3586 = vst.msk [vmem:[#allocation3 + $0x8] sm:$0xff] %vm244, %v3585
    %v3587 = vld [vmem:[%s263 + $0x40] sm:$0xff]
    %v3588 = vld [vmem:[%s409] sm:$0xff]
    %v3589 = vld [vmem:[%s409 + $0x8] sm:$0xff]
    %v3590 = vld [vmem:[%s409 + $0x10] sm:$0xff]
    %v3591 = vld [vmem:[%s409 + $0x18] sm:$0xff]
    %v3592 = vld [vmem:[%s409 + $0x20] sm:$0xff]
    %v3593 = vld [vmem:[%s409 + $0x28] sm:$0xff]
    %v3594 = vld [vmem:[%s409 + $0x30] sm:$0xff]
    %v3595 = vld [vmem:[%s409 + $0x38] sm:$0xff]
    %v3596 = vsel %vm244, %v3588, 0.0
    %v3597 = vsel %vm244, %v3589, 0.0
    %v3598 = vadd.f32 %v3596, %v3597
    %v3599 = vsel %vm244, %v3590, 0.0
    %v3600 = vadd.f32 %v3598, %v3599
    %v3601 = vsel %vm244, %v3591, 0.0
    %v3602 = vadd.f32 %v3600, %v3601
    %v3603 = vsel %vm244, %v3592, 0.0
    %v3604 = vadd.f32 %v3602, %v3603
    %v3605 = vsel %vm244, %v3593, 0.0
    %v3606 = vadd.f32 %v3604, %v3605
    %v3607 = vsel %vm244, %v3594, 0.0
    %v3608 = vadd.f32 %v3606, %v3607
    %v3609 = vsel %vm244, %v3595, 0.0
    %v3610 = vadd.f32 %v3608, %v3609
    %v3611 = vrot.slane %v3610, 4
    %v3612 = vadd.f32 %v3610, %v3611
    %v3613 = vrot.slane %v3612, 2
    %v3614 = vadd.f32 %v3612, %v3613
    %v3615 = vrot.slane %v3614, 1
    %v3616 = vadd.f32 %v3614, %v3615
    %v3617 = vmul.f32 %v3616, %v3406
    %3619 = vset.pattern.permute.xlu0 0
    %3620 = vperm.xlu0 %3619, %v3587
    %v3621 = vpop.permute.xlu0 %3620
    %v3623 = vmul.f32 %v3621, %v3414
    %v3624 = vadd.f32 %v3623, %v3418
    %v3625 = vmax.f32 %v3624, 0.0
    %v3627 = vrot.slane %v3625, 4
    %3628 = vrot.lane.b32.xlu0 %v3627, 32
    %v3629 = vpop.permute.xlu0 %3628
    %v3631 = vsel %vm244, %v3617, %v3629
    %v3633 = vsel %vm718, %v3631, 0
    %3635 = vmatprep.subr.mxu0 0.0
    %3636 = vmatpush1.msra.mxu0 0.0
    %3637 = vmatprep.subr.mxu0 0.0
    %3638 = vmatpush1.msra.mxu0 0.0
    %3639 = vmatprep.subr.mxu0 0.0
    %3640 = vmatpush1.msra.mxu0 0.0
    %3641 = vmatprep.subr.mxu0 0.0
    %3642 = vmatpush1.msra.mxu0 0.0
    %3643 = vmatprep.subr.mxu0 0.0
    %3644 = vmatpush1.msra.mxu0 0.0
    %3645 = vmatprep.subr.mxu0 0.0
    %3646 = vmatpush1.msra.mxu0 0.0
    %3647 = vmatprep.subr.mxu0 0.0
    %3648 = vmatpush1.msra.mxu0 0.0
    %3649 = vmatprep.subr.mxu0 0.0
    %3650 = vmatpush1.msra.mxu0 0.0
    %3651 = vmatprep.subr.mxu0 0.0
    %3652 = vmatpush1.msra.mxu0 %v79
    %3653 = vmatprep.subr.mxu0 0.0
    %3654 = vmatpush1.msra.mxu0 %v78
    %3655 = vmatprep.subr.mxu0 0.0
    %3656 = vmatpush1.msra.mxu0 %v77
    %3657 = vmatprep.subr.mxu0 0.0
    %3658 = vmatpush1.msra.mxu0 %v76
    %3659 = vmatprep.subr.mxu0 0.0
    %3660 = vmatpush1.msra.mxu0 %v75
    %3661 = vmatprep.subr.mxu0 0.0
    %3662 = vmatpush1.msra.mxu0 %v74
    %3663 = vmatprep.subr.mxu0 0.0
    %3664 = vmatpush1.msra.mxu0 %v73
    %3665 = vmatprep.subr.mxu0 0.0
    %3666 = vmatpush1.msra.mxu0 %v72
    %3667 = vmatprep.subr.mxu0 0.0
    %3668 = vmatpush2.msra.mxu0 0.0
    %3669 = vmatprep.subr.mxu0 0.0
    %3670 = vmatpush2.msra.mxu0 0.0
    %3671 = vmatprep.subr.mxu0 0.0
    %3672 = vmatpush2.msra.mxu0 0.0
    %3673 = vmatprep.subr.mxu0 0.0
    %3674 = vmatpush2.msra.mxu0 0.0
    %3675 = vmatprep.subr.mxu0 0.0
    %3676 = vmatpush2.msra.mxu0 0.0
    %3677 = vmatprep.subr.mxu0 0.0
    %3678 = vmatpush2.msra.mxu0 0.0
    %3679 = vmatprep.subr.mxu0 0.0
    %3680 = vmatpush2.msra.mxu0 0.0
    %3681 = vmatprep.subr.mxu0 0.0
    %3682 = vmatpush2.msra.mxu0 0.0
    %3683 = vmatprep.subr.mxu0 0.0
    %3684 = vmatpush2.msra.mxu0 0.0
    %3685 = vmatprep.subr.mxu0 0.0
    %3686 = vmatpush2.msra.mxu0 0.0
    %3687 = vmatprep.subr.mxu0 0.0
    %3688 = vmatpush2.msra.mxu0 0.0
    %3689 = vmatprep.subr.mxu0 0.0
    %3690 = vmatpush2.msra.mxu0 0.0
    %3691 = vmatprep.subr.mxu0 0.0
    %3692 = vmatpush2.msra.mxu0 0.0
    %3693 = vmatprep.subr.mxu0 0.0
    %3694 = vmatpush2.msra.mxu0 0.0
    %3695 = vmatprep.subr.mxu0 0.0
    %3696 = vmatpush2.msra.mxu0 0.0
    %3697 = vmatprep.subr.mxu0 0.0
    %3698 = vmatpush2.msra.mxu0 0.0
    %3699 = vmatprep.mubr.f32.mxu0 0.0
    %3700 = vmatmul.mubr.f32.gmra.mxu0 %v3633
    %v3701 = vpop.f32.mrf.mxu0
    %v3702 = vadd.f32 %v80, %v3701
    %v3703 = vpop.f32.mrf.mxu0
    %3704 = vdwg.mxu0
    %v3705 = vmax.f32 %v3702, 0.0
    %v3706 = vld [vmem:[%s409 + $0x40] sm:$0xff]
    %v3708 = vsel %vm244, %v3706, 0
    %3710 = vmatprep.subr.mxu0 0.0
    %3711 = vmatpush1.msra.mxu0 0.0
    %3712 = vmatprep.subr.mxu0 0.0
    %3713 = vmatpush1.msra.mxu0 0.0
    %3714 = vmatprep.subr.mxu0 0.0
    %3715 = vmatpush1.msra.mxu0 0.0
    %3716 = vmatprep.subr.mxu0 0.0
    %3717 = vmatpush1.msra.mxu0 0.0
    %3718 = vmatprep.subr.mxu0 0.0
    %3719 = vmatpush1.msra.mxu0 0.0
    %3720 = vmatprep.subr.mxu0 0.0
    %3721 = vmatpush1.msra.mxu0 0.0
    %3722 = vmatprep.subr.mxu0 0.0
    %3723 = vmatpush1.msra.mxu0 0.0
    %3724 = vmatprep.subr.mxu0 0.0
    %3725 = vmatpush1.msra.mxu0 0.0
    %3726 = vmatprep.subr.mxu0 0.0
    %3727 = vmatpush1.msra.mxu0 0.0
    %3728 = vmatprep.subr.mxu0 0.0
    %3729 = vmatpush1.msra.mxu0 0.0
    %3730 = vmatprep.subr.mxu0 0.0
    %3731 = vmatpush1.msra.mxu0 0.0
    %3732 = vmatprep.subr.mxu0 0.0
    %3733 = vmatpush1.msra.mxu0 0.0
    %3734 = vmatprep.subr.mxu0 0.0
    %3735 = vmatpush1.msra.mxu0 %v84
    %3736 = vmatprep.subr.mxu0 0.0
    %3737 = vmatpush1.msra.mxu0 %v83
    %3738 = vmatprep.subr.mxu0 0.0
    %3739 = vmatpush1.msra.mxu0 %v82
    %3740 = vmatprep.subr.mxu0 0.0
    %3741 = vmatpush1.msra.mxu0 %v81
    %3742 = vmatprep.subr.mxu0 0.0
    %3743 = vmatpush2.msra.mxu0 0.0
    %3744 = vmatprep.subr.mxu0 0.0
    %3745 = vmatpush2.msra.mxu0 0.0
    %3746 = vmatprep.subr.mxu0 0.0
    %3747 = vmatpush2.msra.mxu0 0.0
    %3748 = vmatprep.subr.mxu0 0.0
    %3749 = vmatpush2.msra.mxu0 0.0
    %3750 = vmatprep.subr.mxu0 0.0
    %3751 = vmatpush2.msra.mxu0 0.0
    %3752 = vmatprep.subr.mxu0 0.0
    %3753 = vmatpush2.msra.mxu0 0.0
    %3754 = vmatprep.subr.mxu0 0.0
    %3755 = vmatpush2.msra.mxu0 0.0
    %3756 = vmatprep.subr.mxu0 0.0
    %3757 = vmatpush2.msra.mxu0 0.0
    %3758 = vmatprep.subr.mxu0 0.0
    %3759 = vmatpush2.msra.mxu0 0.0
    %3760 = vmatprep.subr.mxu0 0.0
    %3761 = vmatpush2.msra.mxu0 0.0
    %3762 = vmatprep.subr.mxu0 0.0
    %3763 = vmatpush2.msra.mxu0 0.0
    %3764 = vmatprep.subr.mxu0 0.0
    %3765 = vmatpush2.msra.mxu0 0.0
    %3766 = vmatprep.subr.mxu0 0.0
    %3767 = vmatpush2.msra.mxu0 0.0
    %3768 = vmatprep.subr.mxu0 0.0
    %3769 = vmatpush2.msra.mxu0 0.0
    %3770 = vmatprep.subr.mxu0 0.0
    %3771 = vmatpush2.msra.mxu0 0.0
    %3772 = vmatprep.subr.mxu0 0.0
    %3773 = vmatpush2.msra.mxu0 0.0
    %3774 = vmatprep.mubr.f32.mxu0 0.0
    %3775 = vmatmul.mubr.f32.gmra.mxu0 %v3708
    %v3776 = vpop.f32.mrf.mxu0
    %v3777 = vadd.f32 %v3506, %v3776
    %v3778 = vpop.f32.mrf.mxu0
    %3779 = vdwg.mxu0
    %v3780 = vmax.f32 %v3777, 0.0
    %s3781 = scalar_lea.vmem [#allocation3], 16
    %3782 = vst.msk [vmem:[%s3781] sm:$0xff] %vm244, %v3780
    %v3783 = vlaneseq
    %v3784 = vshrl.u32 %v3783, 7
    %v3785 = vsub.s32 0, %v3784
    %v3786 = vrot.slane %v3705, %v3785
    %3787 = vst.msk [vmem:[%s3781 + $0x8] sm:$0xff] %vm244, %v3786
    // Predicated region
    $region18: #{tpu_custom_call.1} parent=1 // pred_check
      _
    $region19: #{tpu_custom_call.1} parent=1 // pred_check_branch
      %3789 = sbr.rel (0) target = $region21
    $region20: #{tpu_custom_call.1} parent=1 // pred_region
      %s3791 = ssub.s32 512, 512
      %3792 = vsyncadd [#allocation4], %s3791
      %s3793 = sshll.u32 [#allocation3], 4
      %s3794 = int_to_ptr.vmem [resolvable:$true] %s3793
      %3799 = dma.vmem_to_hbm [thread:$0]  %s3794, 512, %s4, [#allocation4], 128, 128, 8
    $region21: #{tpu_custom_call.1} parent=1 // pred_fallthru
      _
    // Predicated region
    $region22: #{tpu_custom_call.1} parent=1 // pred_check
      _
    $region23: #{tpu_custom_call.1} parent=1 // pred_check_branch
      %3801 = sbr.rel (0) target = $region25
    $region24: #{tpu_custom_call.1} parent=1 // pred_region
      %3802 = dma.done [#allocation4], 512
    $region25: #{tpu_custom_call.1} parent=1 // pred_fallthru
      _
    %3803 = vsyncpa [#allocation4], 1

</llo_original>
